<compile_context>
chip_gen: v7x
topology: tpu7x:2x2x1
jax: 0.10.0
libtpu: 0.0.40
codegen_flags: <defaults>
</compile_context>

<pallas_src>
import math

import jax
import jax.numpy as jnp
from jax.experimental import pallas as pl
from jax.experimental.pallas import tpu as pltpu

f32 = jnp.float32
bf16 = jnp.bfloat16


# ----------------------------------------------------------------------------
# Pallas kernel: one (batch, query-tile) per grid step.
# query projection -> scaled softmax attention over precomputed key/value ->
# f_up projection -> fused concat([context, feats]) 1x1 conv + BN + ReLU.
# ----------------------------------------------------------------------------
def ocr_kernel(feats_ref, key_ref, val_ref, mask_ref,
               wq1_ref, bq1_ref, wq2_ref, bq2_ref,      # f_pixel (two conv+BN+ReLU)
               wu_ref, bu_ref,                          # f_up
               wo_ctx_ref, wo_feat_ref, bo_ref,         # conv_bn_dropout (split concat)
               out_ref):
    x = feats_ref[0]            # (TQ, Cp)   bf16
    k = key_ref[0]              # (Mp, Kcp)  bf16   precomputed f_object(proxy)
    v = val_ref[0]              # (Mp, Kcp)  bf16   precomputed f_down(proxy)

    def proj(a_bf16, w_ref, b_ref):
        # folded 1x1 conv + BN + ReLU; weights already (in, out), bf16.
        y = jnp.dot(a_bf16, w_ref[...], preferred_element_type=f32) + b_ref[...]
        return jnp.maximum(y, 0.0)

    # f_pixel: query (TQ, Kcp).  key_channels**-0.5 is folded into wq2/bq2.
    q = proj(proj(x, wq1_ref, bq1_ref).astype(bf16), wq2_ref, bq2_ref)

    # sim = softmax(q @ k^T + mask); mask row is 0 for valid proxy cols, -1e30 padded.
    sim = jax.lax.dot_general(
        q.astype(bf16), k,
        dimension_numbers=(((1,), (1,)), ((), ())),
        preferred_element_type=f32)
    sim = sim + mask_ref[...]
    sim = sim - jnp.max(sim, axis=-1, keepdims=True)
    e = jnp.exp(sim)
    attn = e * pl.reciprocal(jnp.sum(e, axis=-1, keepdims=True), approx=True)

    # context = attn @ value, then f_up
    ctx = jnp.dot(attn.astype(bf16), v, preferred_element_type=f32)
    up = proj(ctx.astype(bf16), wu_ref, bu_ref)          # (TQ, Cp)

    # conv_bn_dropout(cat([context, feats], channel)) as a split matmul
    o = (jnp.dot(up.astype(bf16), wo_ctx_ref[...], preferred_element_type=f32)
         + jnp.dot(x, wo_feat_ref[...], preferred_element_type=f32)
         + bo_ref[...])
    out_ref[0] = jnp.maximum(o, 0.0).astype(out_ref.dtype)


# ----------------------------------------------------------------------------
# Wrapper helpers
# ----------------------------------------------------------------------------
def _round_up(x, m):
    return ((x + m - 1) // m) * m


def _vmem_capacity_bytes():
    try:
        return int(pltpu.get_tpu_info().vmem_capacity_bytes)
    except Exception:
        return 64 << 20          # conservative default (v7x per-TensorCore)


def _pick_tq(np_rows, tq_target):
    tq_target = max(16, (tq_target // 16) * 16)         # bf16 sublane packing: 16 rows
    if np_rows <= tq_target:
        return _round_up(np_rows, 16)
    # prefer a TQ that divides H*W -> no row padding / wasted last tile
    for tq in range(tq_target, tq_target // 2, -16):
        if np_rows % tq == 0:
            return tq
    return tq_target


# ----------------------------------------------------------------------------
# Wrapper: layout plumbing, key/value precompute, weight folding + pallas_call
# ----------------------------------------------------------------------------
def spatial_ocr_forward(feats_nchw, proxy_nchw, params, key_channels, out_channels,
                        *, tq_target=None, out_dtype=jnp.float32):
    N, C, H, W = feats_nchw.shape
    _, Cproxy, Hp, Wp = proxy_nchw.shape
    assert Cproxy == C
    Np, M = H * W, Hp * Wp

    LANE = 128
    Cp = _round_up(C, LANE)
    Kcp = _round_up(key_channels, LANE)
    Mp = _round_up(M, LANE)
    Coutp = _round_up(out_channels, LANE)

    vmem_cap = _vmem_capacity_bytes()
    if tq_target is None:
        tq_target = 1024 if vmem_cap >= (96 << 20) else 512   # v5e/v6e vs v7x
    TQ = _pick_tq(Np, tq_target)
    Npp = _round_up(Np, TQ)
    n_q = Npp // TQ

    (wq1, bq1, wq2, bq2, wk1, bk1, wk2, bk2,
     wv, bv, wu, bu, wo_ctx, wo_feat, bo) = params

    # --- host-side (XLA): bf16 layout + key/value precompute -------------------
    # Cast to bf16 BEFORE the NCHW -> (N, HW, C) transpose (halves HBM traffic).
    feats_tok = jnp.transpose(feats_nchw.astype(bf16).reshape(N, C, Np), (0, 2, 1))
    feats_tok = jnp.pad(feats_tok, ((0, 0), (0, Npp - Np), (0, Cp - C)))
    proxy_tok = jnp.transpose(proxy_nchw.astype(bf16).reshape(N, C, M), (0, 2, 1))

    def lin(a, w, b):   # folded 1x1 conv + BN + ReLU, bf16 operands / f32 accumulate
        y = jnp.einsum("nmc,oc->nmo", a.astype(bf16), w.astype(bf16),
                       preferred_element_type=f32) + b
        return jnp.maximum(y, 0.0)

    # key / value depend only on proxy -> once per batch, never per query tile.
    key_tok = lin(lin(proxy_tok, wk1, bk1), wk2, bk2)            # (N, M, Kc)
    val_tok = lin(proxy_tok, wv, bv)                             # (N, M, Kc)
    key_pad = jnp.pad(key_tok, ((0, 0), (0, Mp - M), (0, Kcp - key_channels))).astype(bf16)
    val_pad = jnp.pad(val_tok, ((0, 0), (0, Mp - M), (0, Kcp - key_channels))).astype(bf16)

    # Additive softmax mask for zero-padded proxy columns (single VPU add in-kernel).
    mask = jnp.pad(jnp.zeros((1, M), f32), ((0, 0), (0, Mp - M)),
                   constant_values=-1e30)

    # --- weight prep: fold softmax scale into wq2/bq2, pad, transpose, bf16 ----
    scale = key_channels ** -0.5
    wq2s, bq2s = wq2 * scale, bq2 * scale        # relu(c*(Wx+b)) == c*relu(Wx+b), c>0

    def prep_w(w, in_p, out_p):          # (out, in) f32 -> (in_p, out_p) bf16
        w = jnp.pad(w, ((0, out_p - w.shape[0]), (0, in_p - w.shape[1])))
        return jnp.transpose(w, (1, 0)).astype(bf16)

    def prep_b(b, out_p):                # (1, out) f32 -> (1, out_p) f32
        return jnp.pad(b, ((0, 0), (0, out_p - b.shape[1]))).astype(f32)

    w_in = (
        prep_w(wq1, Cp, Kcp), prep_b(bq1, Kcp),
        prep_w(wq2s, Kcp, Kcp), prep_b(bq2s, Kcp),
        prep_w(wu, Kcp, Cp), prep_b(bu, Cp),
        prep_w(wo_ctx, Cp, Coutp), prep_w(wo_feat, Cp, Coutp), prep_b(bo, Coutp),
    )
    const_bytes = int(mask.size) * 4 + sum(int(a.size) * a.dtype.itemsize for a in w_in)

    # VMEM budget derived from the actual tile footprint (+ headroom), capped by HW.
    need = (2 * TQ * Cp * 2                              # feats blocks (bf16, 2 bufs)
            + 2 * 2 * Mp * Kcp * 2                       # key/value blocks
            + 2 * TQ * Coutp * 2                         # output blocks (bf16)
            + 2 * const_bytes                            # weights / biases / mask
            + TQ * (3 * Mp + 3 * Kcp + Cp + Coutp) * 4   # f32 intermediates
            + (8 << 20))                                 # compiler temporaries
    vmem_limit = int(min(max(need, 32 << 20), int(vmem_cap * 0.9)))

    # Advisory cost estimate (helps XLA schedule the surrounding layout ops).
    mm = lambda m_, k_, n_: 2 * m_ * k_ * n_
    per_img = (mm(Npp, Cp, Kcp) + mm(Npp, Kcp, Kcp)          # f_pixel (query)
               + mm(Npp, Kcp, Mp) + mm(Npp, Mp, Kcp)         # attention
               + mm(Npp, Kcp, Cp) + 2 * mm(Npp, Cp, Coutp)   # f_up + output conv
               + 6 * Npp * Mp)                               # softmax epilogue
    cost = pl.CostEstimate(
        flops=int(N * per_img),
        transcendentals=int(N * Npp * Mp),
        bytes_accessed=int(feats_tok.size * 2 + key_pad.size * 2 + val_pad.size * 2
                           + N * Npp * Coutp * 2 + const_bytes),
    )

    def const_spec(a, single_buffer):
        idx = lambda b, qi, _n=a.ndim: (0,) * _n
        if single_buffer and hasattr(pl, "Buffered"):
            try:
                # constants are DMA'd once; double-buffering them is pure VMEM waste
                return pl.BlockSpec(a.shape, idx, pipeline_mode=pl.Buffered(1))
            except TypeError:
                pass
        return pl.BlockSpec(a.shape, idx)

    def run(single_buffer_consts):
        grid_spec = pltpu.PrefetchScalarGridSpec(
            num_scalar_prefetch=0,
            grid=(N, n_q),
            in_specs=[
                pl.BlockSpec((1, TQ, Cp), lambda b, qi: (b, qi, 0)),
                pl.BlockSpec((1, Mp, Kcp), lambda b, qi: (b, 0, 0)),
                pl.BlockSpec((1, Mp, Kcp), lambda b, qi: (b, 0, 0)),
                const_spec(mask, single_buffer_consts),
            ] + [const_spec(a, single_buffer_consts) for a in w_in],
            out_specs=pl.BlockSpec((1, TQ, Coutp), lambda b, qi: (b, qi, 0)),
        )
        return pl.pallas_call(
            ocr_kernel,
            out_shape=jax.ShapeDtypeStruct((N, Npp, Coutp), bf16),
            grid_spec=grid_spec,
            compiler_params=pltpu.CompilerParams(
                dimension_semantics=("parallel", "parallel"),
                vmem_limit_bytes=vmem_limit,
            ),
            cost_estimate=cost,
        )(feats_tok, key_pad, val_pad, mask, *w_in)

    try:
        out_tok = run(True)      # single-buffered constant weights (VMEM headroom, v7x)
    except Exception:
        out_tok = run(False)     # fallback if pipeline_mode=Buffered(1) is unsupported

    # Unpad (bf16), go back to NCHW, cast once at the boundary.
    out_tok = out_tok[:, :Np, :out_channels]
    out = jnp.transpose(out_tok, (0, 2, 1)).reshape(N, out_channels, H, W)
    return out.astype(out_dtype)


# ----------------------------------------------------------------------------
# Deterministic parameter construction (conv weights + BN folded, eval mode)
# ----------------------------------------------------------------------------
def _fold_conv_bn(w, gamma, beta, mean, var, eps=1e-5):
    scale = gamma / jnp.sqrt(var + eps)
    w_f = scale[:, None] * w                      # (out, in)
    b_f = (beta - scale * mean)[None, :]          # (1, out)
    return w_f.astype(jnp.float32), b_f.astype(jnp.float32)


def make_params(in_channels, key_channels, out_channels, seed=0):
    key = jax.random.PRNGKey(seed)

    def conv_bn(key, cout, cin):
        kw, = jax.random.split(key, 1)
        w = jax.random.normal(kw, (cout, cin), jnp.float32) * (1.0 / math.sqrt(cin))
        idx = jnp.arange(cout, dtype=jnp.float32)
        gamma = 1.0 + 0.05 * jnp.cos(idx)
        beta = 0.02 * jnp.sin(idx)
        mean = 0.01 * idx
        var = 1.0 + 0.1 * (idx % 4)
        return _fold_conv_bn(w, gamma, beta, mean, var)

    keys = jax.random.split(key, 8)
    wq1, bq1 = conv_bn(keys[0], key_channels, in_channels)
    wq2, bq2 = conv_bn(keys[1], key_channels, key_channels)
    wk1, bk1 = conv_bn(keys[2], key_channels, in_channels)
    wk2, bk2 = conv_bn(keys[3], key_channels, key_channels)
    wv, bv = conv_bn(keys[4], key_channels, in_channels)
    wu, bu = conv_bn(keys[5], in_channels, key_channels)
    # conv_bn_dropout: (out, 2*in); split into context / feats halves (concat order)
    wo, bo = conv_bn(keys[6], out_channels, 2 * in_channels)
    wo_ctx, wo_feat = wo[:, :in_channels], wo[:, in_channels:]
    return (wq1, bq1, wq2, bq2, wk1, bk1, wk2, bk2,
            wv, bv, wu, bu, wo_ctx, wo_feat, bo)


# ----------------------------------------------------------------------------
# Pure-JAX reference with matching MXU precision (bf16 operands, f32 accumulate)
# ----------------------------------------------------------------------------
def reference_forward(feats, proxy, params, key_channels, out_channels):
    (wq1, bq1, wq2, bq2, wk1, bk1, wk2, bk2,
     wv, bv, wu, bu, wo_ctx, wo_feat, bo) = params
    N, C, H, W = feats.shape
    _, _, Hp, Wp = proxy.shape
    bf = lambda a: a.astype(jnp.bfloat16)

    def lin(a, w, b):   # a: (N,T,in) ; w: (out,in) ; b: (1,out)
        y = jnp.einsum("ntc,oc->nto", bf(a), bf(w), preferred_element_type=f32) + b
        return jnp.maximum(y, 0.0)

    x = jnp.transpose(feats.reshape(N, C, H * W), (0, 2, 1))
    p = jnp.transpose(proxy.reshape(N, C, Hp * Wp), (0, 2, 1))
    q = lin(lin(x, wq1, bq1), wq2, bq2)
    k = lin(lin(p, wk1, bk1), wk2, bk2)
    v = lin(p, wv, bv)
    sim = jnp.einsum("nqc,nkc->nqk", bf(q), bf(k),
                     preferred_element_type=f32) * (key_channels ** -0.5)
    attn = jax.nn.softmax(sim, axis=-1)
    ctx = jnp.einsum("nqk,nkc->nqc", bf(attn), bf(v), preferred_element_type=f32)
    up = lin(ctx, wu, bu)
    o = (jnp.einsum("ntc,oc->nto", bf(up), bf(wo_ctx), preferred_element_type=f32)
         + jnp.einsum("ntc,oc->nto", bf(x), bf(wo_feat), preferred_element_type=f32)
         + bo)
    o = jnp.maximum(o, 0.0)
    return jnp.transpose(o, (0, 2, 1)).reshape(N, out_channels, H, W)


if __name__ == "__main__":
    # Small shapes consistent with SpatialOCR_Module.forward
    N, C, H, W = 2, 32, 16, 16        # feats: NCHW
    Kc, Cout = 16, 32                 # key_channels, out_channels
    Hp, Wp = 8, 1                     # proxy (object regions) spatial extent

    key = jax.random.PRNGKey(0)
    k1, k2 = jax.random.split(key)
    feats = jax.random.normal(k1, (N, C, H, W), jnp.float32)
    proxy = jax.random.normal(k2, (N, C, Hp, Wp), jnp.float32)

    params = make_params(C, Kc, Cout, seed=0)

    # tq_target=128 so the 16x16 test image exercises >1 query tile per batch.
    out = spatial_ocr_forward(feats, proxy, params, Kc, Cout, tq_target=128)
    out = jax.block_until_ready(out)

    ref = reference_forward(feats, proxy, params, Kc, Cout)
    assert out.shape == (N, Cout, H, W)
    assert jnp.allclose(out, ref, atol=2e-2, rtol=2e-2), "mismatch vs reference"

    print("KERNEL_OK")
</pallas_src>

<mosaic_0001>
module attributes {stable_mosaic.version = 11 : i64} {
  func.func @ocr_kernel(%arg0: i32, %arg1: i32, %arg2: memref<1x128x128xbf16, #tpu.memory_space<vmem>>, %arg3: memref<1x128x128xbf16, #tpu.memory_space<vmem>>, %arg4: memref<1x128x128xbf16, #tpu.memory_space<vmem>>, %arg5: memref<1x128xf32, #tpu.memory_space<vmem>>, %arg6: memref<128x128xbf16, #tpu.memory_space<vmem>>, %arg7: memref<1x128xf32, #tpu.memory_space<vmem>>, %arg8: memref<128x128xbf16, #tpu.memory_space<vmem>>, %arg9: memref<1x128xf32, #tpu.memory_space<vmem>>, %arg10: memref<128x128xbf16, #tpu.memory_space<vmem>>, %arg11: memref<1x128xf32, #tpu.memory_space<vmem>>, %arg12: memref<128x128xbf16, #tpu.memory_space<vmem>>, %arg13: memref<128x128xbf16, #tpu.memory_space<vmem>>, %arg14: memref<1x128xf32, #tpu.memory_space<vmem>>, %arg15: memref<1x128x128xbf16, #tpu.memory_space<vmem>>) attributes {dimension_semantics = [#tpu.dimension_semantics<parallel>, #tpu.dimension_semantics<parallel>], iteration_bounds = array<i64: 2, 2>, scalar_prefetch = 0 : i64, scratch_operands = 0 : i64, tpu.core_type = #tpu.core_type<tc>, window_params = [{transform_indices = @transform_0, window_bounds = array<i64: 1, 128, 128>}, {transform_indices = @transform_1, window_bounds = array<i64: 1, 128, 128>}, {transform_indices = @transform_2, window_bounds = array<i64: 1, 128, 128>}, {pipeline_mode = #tpu.pipeline_mode<synchronous>, transform_indices = @transform_3, window_bounds = array<i64: 1, 128>}, {pipeline_mode = #tpu.pipeline_mode<synchronous>, transform_indices = @transform_4, window_bounds = array<i64: 128, 128>}, {pipeline_mode = #tpu.pipeline_mode<synchronous>, transform_indices = @transform_5, window_bounds = array<i64: 1, 128>}, {pipeline_mode = #tpu.pipeline_mode<synchronous>, transform_indices = @transform_6, window_bounds = array<i64: 128, 128>}, {pipeline_mode = #tpu.pipeline_mode<synchronous>, transform_indices = @transform_7, window_bounds = array<i64: 1, 128>}, {pipeline_mode = #tpu.pipeline_mode<synchronous>, transform_indices = @transform_8, window_bounds = array<i64: 128, 128>}, {pipeline_mode = #tpu.pipeline_mode<synchronous>, transform_indices = @transform_9, window_bounds = array<i64: 1, 128>}, {pipeline_mode = #tpu.pipeline_mode<synchronous>, transform_indices = @transform_10, window_bounds = array<i64: 128, 128>}, {pipeline_mode = #tpu.pipeline_mode<synchronous>, transform_indices = @transform_11, window_bounds = array<i64: 128, 128>}, {pipeline_mode = #tpu.pipeline_mode<synchronous>, transform_indices = @transform_12, window_bounds = array<i64: 1, 128>}, {transform_indices = @transform_13, window_bounds = array<i64: 1, 128, 128>}]} {
    %c0 = arith.constant 0 : index
    %c0_0 = arith.constant 0 : index
    %c0_1 = arith.constant 0 : index
    %0 = vector.load %arg2[%c0, %c0_0, %c0_1] : memref<1x128x128xbf16, #tpu.memory_space<vmem>>, vector<1x128x128xbf16>
    %1 = vector.shape_cast %0 : vector<1x128x128xbf16> to vector<128x128xbf16>
    %c0_2 = arith.constant 0 : index
    %c0_3 = arith.constant 0 : index
    %c0_4 = arith.constant 0 : index
    %2 = vector.load %arg3[%c0_2, %c0_3, %c0_4] : memref<1x128x128xbf16, #tpu.memory_space<vmem>>, vector<1x128x128xbf16>
    %3 = vector.shape_cast %2 : vector<1x128x128xbf16> to vector<128x128xbf16>
    %c0_5 = arith.constant 0 : index
    %c0_6 = arith.constant 0 : index
    %c0_7 = arith.constant 0 : index
    %4 = vector.load %arg4[%c0_5, %c0_6, %c0_7] : memref<1x128x128xbf16, #tpu.memory_space<vmem>>, vector<1x128x128xbf16>
    %5 = vector.shape_cast %4 : vector<1x128x128xbf16> to vector<128x128xbf16>
    %c0_8 = arith.constant 0 : index
    %c0_9 = arith.constant 0 : index
    %6 = vector.load %arg6[%c0_8, %c0_9] : memref<128x128xbf16, #tpu.memory_space<vmem>>, vector<128x128xbf16>
    %cst = arith.constant dense<0.000000e+00> : vector<128x128xf32>
    %7 = tpu.matmul %1, %6, %cst {dimension_numbers = #tpu.dot_dimension_numbers<[1], [0], [0], [1], [0, 0, 1, 1], [], []>} : vector<128x128xbf16>, vector<128x128xbf16>, vector<128x128xf32> -> vector<128x128xf32>
    %c0_10 = arith.constant 0 : index
    %c0_11 = arith.constant 0 : index
    %8 = vector.load %arg7[%c0_10, %c0_11] : memref<1x128xf32, #tpu.memory_space<vmem>>, vector<1x128xf32>
    %9 = vector.broadcast %8 : vector<1x128xf32> to vector<128x128xf32>
    %10 = arith.addf %7, %9 : vector<128x128xf32>
    %cst_12 = arith.constant 0.000000e+00 : f32
    %11 = vector.broadcast %cst_12 : f32 to vector<128x128xf32>
    %12 = arith.maximumf %10, %11 : vector<128x128xf32>
    %13 = arith.truncf %12 : vector<128x128xf32> to vector<128x128xbf16>
    %c0_13 = arith.constant 0 : index
    %c0_14 = arith.constant 0 : index
    %14 = vector.load %arg8[%c0_13, %c0_14] : memref<128x128xbf16, #tpu.memory_space<vmem>>, vector<128x128xbf16>
    %cst_15 = arith.constant dense<0.000000e+00> : vector<128x128xf32>
    %15 = tpu.matmul %13, %14, %cst_15 {dimension_numbers = #tpu.dot_dimension_numbers<[1], [0], [0], [1], [0, 0, 1, 1], [], []>} : vector<128x128xbf16>, vector<128x128xbf16>, vector<128x128xf32> -> vector<128x128xf32>
    %c0_16 = arith.constant 0 : index
    %c0_17 = arith.constant 0 : index
    %16 = vector.load %arg9[%c0_16, %c0_17] : memref<1x128xf32, #tpu.memory_space<vmem>>, vector<1x128xf32>
    %17 = vector.broadcast %16 : vector<1x128xf32> to vector<128x128xf32>
    %18 = arith.addf %15, %17 : vector<128x128xf32>
    %cst_18 = arith.constant 0.000000e+00 : f32
    %19 = vector.broadcast %cst_18 : f32 to vector<128x128xf32>
    %20 = arith.maximumf %18, %19 : vector<128x128xf32>
    %21 = arith.truncf %20 : vector<128x128xf32> to vector<128x128xbf16>
    %cst_19 = arith.constant dense<0.000000e+00> : vector<128x128xf32>
    %22 = tpu.matmul %21, %3, %cst_19 {dimension_numbers = #tpu.dot_dimension_numbers<[1], [1], [0], [0], [0, 0, 1, 0], [], []>} : vector<128x128xbf16>, vector<128x128xbf16>, vector<128x128xf32> -> vector<128x128xf32>
    %c0_20 = arith.constant 0 : index
    %c0_21 = arith.constant 0 : index
    %23 = vector.load %arg5[%c0_20, %c0_21] : memref<1x128xf32, #tpu.memory_space<vmem>>, vector<1x128xf32>
    %24 = vector.broadcast %23 : vector<1x128xf32> to vector<128x128xf32>
    %25 = arith.addf %22, %24 : vector<128x128xf32>
    %cst_22 = arith.constant dense<0xFF800000> : vector<128xf32>
    %26 = vector.multi_reduction <maximumf>, %25, %cst_22 [1] : vector<128x128xf32> to vector<128xf32>
    %27 = vector.shape_cast %26 : vector<128xf32> to vector<128x1xf32>
    %28 = vector.broadcast %27 : vector<128x1xf32> to vector<128x128xf32>
    %29 = arith.subf %25, %28 : vector<128x128xf32>
    %30 = math.exp %29 : vector<128x128xf32>
    %cst_23 = arith.constant dense<0.000000e+00> : vector<128xf32>
    %31 = vector.multi_reduction <add>, %30, %cst_23 [1] : vector<128x128xf32> to vector<128xf32>
    %32 = vector.shape_cast %31 : vector<128xf32> to vector<128x1xf32>
    %33 = tpu.reciprocal %32 {approx = true} : vector<128x1xf32> -> vector<128x1xf32>
    %34 = vector.broadcast %33 : vector<128x1xf32> to vector<128x128xf32>
    %35 = arith.mulf %30, %34 : vector<128x128xf32>
    %36 = arith.truncf %35 : vector<128x128xf32> to vector<128x128xbf16>
    %cst_24 = arith.constant dense<0.000000e+00> : vector<128x128xf32>
    %37 = tpu.matmul %36, %5, %cst_24 {dimension_numbers = #tpu.dot_dimension_numbers<[1], [0], [0], [1], [0, 0, 1, 1], [], []>} : vector<128x128xbf16>, vector<128x128xbf16>, vector<128x128xf32> -> vector<128x128xf32>
    %38 = arith.truncf %37 : vector<128x128xf32> to vector<128x128xbf16>
    %c0_25 = arith.constant 0 : index
    %c0_26 = arith.constant 0 : index
    %39 = vector.load %arg10[%c0_25, %c0_26] : memref<128x128xbf16, #tpu.memory_space<vmem>>, vector<128x128xbf16>
    %cst_27 = arith.constant dense<0.000000e+00> : vector<128x128xf32>
    %40 = tpu.matmul %38, %39, %cst_27 {dimension_numbers = #tpu.dot_dimension_numbers<[1], [0], [0], [1], [0, 0, 1, 1], [], []>} : vector<128x128xbf16>, vector<128x128xbf16>, vector<128x128xf32> -> vector<128x128xf32>
    %c0_28 = arith.constant 0 : index
    %c0_29 = arith.constant 0 : index
    %41 = vector.load %arg11[%c0_28, %c0_29] : memref<1x128xf32, #tpu.memory_space<vmem>>, vector<1x128xf32>
    %42 = vector.broadcast %41 : vector<1x128xf32> to vector<128x128xf32>
    %43 = arith.addf %40, %42 : vector<128x128xf32>
    %cst_30 = arith.constant 0.000000e+00 : f32
    %44 = vector.broadcast %cst_30 : f32 to vector<128x128xf32>
    %45 = arith.maximumf %43, %44 : vector<128x128xf32>
    %46 = arith.truncf %45 : vector<128x128xf32> to vector<128x128xbf16>
    %c0_31 = arith.constant 0 : index
    %c0_32 = arith.constant 0 : index
    %47 = vector.load %arg12[%c0_31, %c0_32] : memref<128x128xbf16, #tpu.memory_space<vmem>>, vector<128x128xbf16>
    %cst_33 = arith.constant dense<0.000000e+00> : vector<128x128xf32>
    %48 = tpu.matmul %46, %47, %cst_33 {dimension_numbers = #tpu.dot_dimension_numbers<[1], [0], [0], [1], [0, 0, 1, 1], [], []>} : vector<128x128xbf16>, vector<128x128xbf16>, vector<128x128xf32> -> vector<128x128xf32>
    %c0_34 = arith.constant 0 : index
    %c0_35 = arith.constant 0 : index
    %49 = vector.load %arg13[%c0_34, %c0_35] : memref<128x128xbf16, #tpu.memory_space<vmem>>, vector<128x128xbf16>
    %cst_36 = arith.constant dense<0.000000e+00> : vector<128x128xf32>
    %50 = tpu.matmul %1, %49, %cst_36 {dimension_numbers = #tpu.dot_dimension_numbers<[1], [0], [0], [1], [0, 0, 1, 1], [], []>} : vector<128x128xbf16>, vector<128x128xbf16>, vector<128x128xf32> -> vector<128x128xf32>
    %51 = arith.addf %48, %50 : vector<128x128xf32>
    %c0_37 = arith.constant 0 : index
    %c0_38 = arith.constant 0 : index
    %52 = vector.load %arg14[%c0_37, %c0_38] : memref<1x128xf32, #tpu.memory_space<vmem>>, vector<1x128xf32>
    %53 = vector.broadcast %52 : vector<1x128xf32> to vector<128x128xf32>
    %54 = arith.addf %51, %53 : vector<128x128xf32>
    %cst_39 = arith.constant 0.000000e+00 : f32
    %55 = vector.broadcast %cst_39 : f32 to vector<128x128xf32>
    %56 = arith.maximumf %54, %55 : vector<128x128xf32>
    %57 = arith.truncf %56 : vector<128x128xf32> to vector<128x128xbf16>
    %c0_40 = arith.constant 0 : index
    %c0_41 = arith.constant 0 : index
    %c0_42 = arith.constant 0 : index
    %58 = vector.load %arg15[%c0_40, %c0_41, %c0_42] : memref<1x128x128xbf16, #tpu.memory_space<vmem>>, vector<1x128x128xbf16>
    %59 = vector.shape_cast %58 : vector<1x128x128xbf16> to vector<128x128xbf16>
    %60 = vector.shape_cast %57 : vector<128x128xbf16> to vector<1x128x128xbf16>
    tpu.vector_store %arg15[%c0_40, %c0_41, %c0_42], %60 {strides = array<i32>} : memref<1x128x128xbf16, #tpu.memory_space<vmem>>, vector<1x128x128xbf16>,
    return
  }
  func.func @transform_0(%arg0: i32, %arg1: i32) -> (i32, i32, i32) {
    %c0_i32 = arith.constant 0 : i32
    %c0_i32_0 = arith.constant 0 : i32
    return %arg0, %arg1, %c0_i32 : i32, i32, i32
  }
  func.func @transform_1(%arg0: i32, %arg1: i32) -> (i32, i32, i32) {
    %c0_i32 = arith.constant 0 : i32
    %c0_i32_0 = arith.constant 0 : i32
    %c0_i32_1 = arith.constant 0 : i32
    return %arg0, %c0_i32, %c0_i32_0 : i32, i32, i32
  }
  func.func @transform_2(%arg0: i32, %arg1: i32) -> (i32, i32, i32) {
    %c0_i32 = arith.constant 0 : i32
    %c0_i32_0 = arith.constant 0 : i32
    %c0_i32_1 = arith.constant 0 : i32
    return %arg0, %c0_i32, %c0_i32_0 : i32, i32, i32
  }
  func.func @transform_3(%arg0: i32, %arg1: i32) -> (i32, i32) {
    %c0_i32 = arith.constant 0 : i32
    %c0_i32_0 = arith.constant 0 : i32
    %c0_i32_1 = arith.constant 0 : i32
    return %c0_i32, %c0_i32_0 : i32, i32
  }
  func.func @transform_4(%arg0: i32, %arg1: i32) -> (i32, i32) {
    %c0_i32 = arith.constant 0 : i32
    %c0_i32_0 = arith.constant 0 : i32
    %c0_i32_1 = arith.constant 0 : i32
    return %c0_i32, %c0_i32_0 : i32, i32
  }
  func.func @transform_5(%arg0: i32, %arg1: i32) -> (i32, i32) {
    %c0_i32 = arith.constant 0 : i32
    %c0_i32_0 = arith.constant 0 : i32
    %c0_i32_1 = arith.constant 0 : i32
    return %c0_i32, %c0_i32_0 : i32, i32
  }
  func.func @transform_6(%arg0: i32, %arg1: i32) -> (i32, i32) {
    %c0_i32 = arith.constant 0 : i32
    %c0_i32_0 = arith.constant 0 : i32
    %c0_i32_1 = arith.constant 0 : i32
    return %c0_i32, %c0_i32_0 : i32, i32
  }
  func.func @transform_7(%arg0: i32, %arg1: i32) -> (i32, i32) {
    %c0_i32 = arith.constant 0 : i32
    %c0_i32_0 = arith.constant 0 : i32
    %c0_i32_1 = arith.constant 0 : i32
    return %c0_i32, %c0_i32_0 : i32, i32
  }
  func.func @transform_8(%arg0: i32, %arg1: i32) -> (i32, i32) {
    %c0_i32 = arith.constant 0 : i32
    %c0_i32_0 = arith.constant 0 : i32
    %c0_i32_1 = arith.constant 0 : i32
    return %c0_i32, %c0_i32_0 : i32, i32
  }
  func.func @transform_9(%arg0: i32, %arg1: i32) -> (i32, i32) {
    %c0_i32 = arith.constant 0 : i32
    %c0_i32_0 = arith.constant 0 : i32
    %c0_i32_1 = arith.constant 0 : i32
    return %c0_i32, %c0_i32_0 : i32, i32
  }
  func.func @transform_10(%arg0: i32, %arg1: i32) -> (i32, i32) {
    %c0_i32 = arith.constant 0 : i32
    %c0_i32_0 = arith.constant 0 : i32
    %c0_i32_1 = arith.constant 0 : i32
    return %c0_i32, %c0_i32_0 : i32, i32
  }
  func.func @transform_11(%arg0: i32, %arg1: i32) -> (i32, i32) {
    %c0_i32 = arith.constant 0 : i32
    %c0_i32_0 = arith.constant 0 : i32
    %c0_i32_1 = arith.constant 0 : i32
    return %c0_i32, %c0_i32_0 : i32, i32
  }
  func.func @transform_12(%arg0: i32, %arg1: i32) -> (i32, i32) {
    %c0_i32 = arith.constant 0 : i32
    %c0_i32_0 = arith.constant 0 : i32
    %c0_i32_1 = arith.constant 0 : i32
    return %c0_i32, %c0_i32_0 : i32, i32
  }
  func.func @transform_13(%arg0: i32, %arg1: i32) -> (i32, i32, i32) {
    %c0_i32 = arith.constant 0 : i32
    %c0_i32_0 = arith.constant 0 : i32
    return %arg0, %arg1, %c0_i32 : i32, i32, i32
  }
}

module attributes {stable_mosaic.version = 11 : i64} {
  func.func @ocr_kernel(%arg0: i32, %arg1: i32, %arg2: memref<1x128x128xbf16, #tpu.memory_space<vmem>>, %arg3: memref<1x128x128xbf16, #tpu.memory_space<vmem>>, %arg4: memref<1x128x128xbf16, #tpu.memory_space<vmem>>, %arg5: memref<1x128xf32, #tpu.memory_space<vmem>>, %arg6: memref<128x128xbf16, #tpu.memory_space<vmem>>, %arg7: memref<1x128xf32, #tpu.memory_space<vmem>>, %arg8: memref<128x128xbf16, #tpu.memory_space<vmem>>, %arg9: memref<1x128xf32, #tpu.memory_space<vmem>>, %arg10: memref<128x128xbf16, #tpu.memory_space<vmem>>, %arg11: memref<1x128xf32, #tpu.memory_space<vmem>>, %arg12: memref<128x128xbf16, #tpu.memory_space<vmem>>, %arg13: memref<128x128xbf16, #tpu.memory_space<vmem>>, %arg14: memref<1x128xf32, #tpu.memory_space<vmem>>, %arg15: memref<1x128x128xbf16, #tpu.memory_space<vmem>>) attributes {dimension_semantics = [#tpu.dimension_semantics<parallel>, #tpu.dimension_semantics<parallel>], iteration_bounds = array<i64: 2, 2>, scalar_prefetch = 0 : i64, scratch_operands = 0 : i64, tpu.core_type = #tpu.core_type<tc>, window_params = [{transform_indices = @transform_0, window_bounds = array<i64: 1, 128, 128>}, {transform_indices = @transform_1, window_bounds = array<i64: 1, 128, 128>}, {transform_indices = @transform_2, window_bounds = array<i64: 1, 128, 128>}, {pipeline_mode = #tpu.pipeline_mode<synchronous>, transform_indices = @transform_3, window_bounds = array<i64: 1, 128>}, {pipeline_mode = #tpu.pipeline_mode<synchronous>, transform_indices = @transform_4, window_bounds = array<i64: 128, 128>}, {pipeline_mode = #tpu.pipeline_mode<synchronous>, transform_indices = @transform_5, window_bounds = array<i64: 1, 128>}, {pipeline_mode = #tpu.pipeline_mode<synchronous>, transform_indices = @transform_6, window_bounds = array<i64: 128, 128>}, {pipeline_mode = #tpu.pipeline_mode<synchronous>, transform_indices = @transform_7, window_bounds = array<i64: 1, 128>}, {pipeline_mode = #tpu.pipeline_mode<synchronous>, transform_indices = @transform_8, window_bounds = array<i64: 128, 128>}, {pipeline_mode = #tpu.pipeline_mode<synchronous>, transform_indices = @transform_9, window_bounds = array<i64: 1, 128>}, {pipeline_mode = #tpu.pipeline_mode<synchronous>, transform_indices = @transform_10, window_bounds = array<i64: 128, 128>}, {pipeline_mode = #tpu.pipeline_mode<synchronous>, transform_indices = @transform_11, window_bounds = array<i64: 128, 128>}, {pipeline_mode = #tpu.pipeline_mode<synchronous>, transform_indices = @transform_12, window_bounds = array<i64: 1, 128>}, {transform_indices = @transform_13, window_bounds = array<i64: 1, 128, 128>}]} {
    %c0 = arith.constant 0 : index
    %c0_0 = arith.constant 0 : index
    %c0_1 = arith.constant 0 : index
    %0 = vector.load %arg2[%c0, %c0_0, %c0_1] : memref<1x128x128xbf16, #tpu.memory_space<vmem>>, vector<1x128x128xbf16>
    %1 = vector.shape_cast %0 : vector<1x128x128xbf16> to vector<128x128xbf16>
    %c0_2 = arith.constant 0 : index
    %c0_3 = arith.constant 0 : index
    %c0_4 = arith.constant 0 : index
    %2 = vector.load %arg3[%c0_2, %c0_3, %c0_4] : memref<1x128x128xbf16, #tpu.memory_space<vmem>>, vector<1x128x128xbf16>
    %3 = vector.shape_cast %2 : vector<1x128x128xbf16> to vector<128x128xbf16>
    %c0_5 = arith.constant 0 : index
    %c0_6 = arith.constant 0 : index
    %c0_7 = arith.constant 0 : index
    %4 = vector.load %arg4[%c0_5, %c0_6, %c0_7] : memref<1x128x128xbf16, #tpu.memory_space<vmem>>, vector<1x128x128xbf16>
    %5 = vector.shape_cast %4 : vector<1x128x128xbf16> to vector<128x128xbf16>
    %c0_8 = arith.constant 0 : index
    %c0_9 = arith.constant 0 : index
    %6 = vector.load %arg6[%c0_8, %c0_9] : memref<128x128xbf16, #tpu.memory_space<vmem>>, vector<128x128xbf16>
    %cst = arith.constant dense<0.000000e+00> : vector<128x128xf32>
    %7 = tpu.matmul %1, %6, %cst {dimension_numbers = #tpu.dot_dimension_numbers<[1], [0], [0], [1], [0, 0, 1, 1], [], []>} : vector<128x128xbf16>, vector<128x128xbf16>, vector<128x128xf32> -> vector<128x128xf32>
    %c0_10 = arith.constant 0 : index
    %c0_11 = arith.constant 0 : index
    %8 = vector.load %arg7[%c0_10, %c0_11] : memref<1x128xf32, #tpu.memory_space<vmem>>, vector<1x128xf32>
    %9 = vector.broadcast %8 : vector<1x128xf32> to vector<128x128xf32>
    %10 = arith.addf %7, %9 : vector<128x128xf32>
    %cst_12 = arith.constant 0.000000e+00 : f32
    %11 = vector.broadcast %cst_12 : f32 to vector<128x128xf32>
    %12 = arith.maximumf %10, %11 : vector<128x128xf32>
    %13 = arith.truncf %12 : vector<128x128xf32> to vector<128x128xbf16>
    %c0_13 = arith.constant 0 : index
    %c0_14 = arith.constant 0 : index
    %14 = vector.load %arg8[%c0_13, %c0_14] : memref<128x128xbf16, #tpu.memory_space<vmem>>, vector<128x128xbf16>
    %cst_15 = arith.constant dense<0.000000e+00> : vector<128x128xf32>
    %15 = tpu.matmul %13, %14, %cst_15 {dimension_numbers = #tpu.dot_dimension_numbers<[1], [0], [0], [1], [0, 0, 1, 1], [], []>} : vector<128x128xbf16>, vector<128x128xbf16>, vector<128x128xf32> -> vector<128x128xf32>
    %c0_16 = arith.constant 0 : index
    %c0_17 = arith.constant 0 : index
    %16 = vector.load %arg9[%c0_16, %c0_17] : memref<1x128xf32, #tpu.memory_space<vmem>>, vector<1x128xf32>
    %17 = vector.broadcast %16 : vector<1x128xf32> to vector<128x128xf32>
    %18 = arith.addf %15, %17 : vector<128x128xf32>
    %cst_18 = arith.constant 0.000000e+00 : f32
    %19 = vector.broadcast %cst_18 : f32 to vector<128x128xf32>
    %20 = arith.maximumf %18, %19 : vector<128x128xf32>
    %21 = arith.truncf %20 : vector<128x128xf32> to vector<128x128xbf16>
    %cst_19 = arith.constant dense<0.000000e+00> : vector<128x128xf32>
    %22 = tpu.matmul %21, %3, %cst_19 {dimension_numbers = #tpu.dot_dimension_numbers<[1], [1], [0], [0], [0, 0, 1, 0], [], []>} : vector<128x128xbf16>, vector<128x128xbf16>, vector<128x128xf32> -> vector<128x128xf32>
    %c0_20 = arith.constant 0 : index
    %c0_21 = arith.constant 0 : index
    %23 = vector.load %arg5[%c0_20, %c0_21] : memref<1x128xf32, #tpu.memory_space<vmem>>, vector<1x128xf32>
    %24 = vector.broadcast %23 : vector<1x128xf32> to vector<128x128xf32>
    %25 = arith.addf %22, %24 : vector<128x128xf32>
    %cst_22 = arith.constant dense<0xFF800000> : vector<128xf32>
    %26 = vector.multi_reduction <maximumf>, %25, %cst_22 [1] : vector<128x128xf32> to vector<128xf32>
    %27 = vector.shape_cast %26 : vector<128xf32> to vector<128x1xf32>
    %28 = vector.broadcast %27 : vector<128x1xf32> to vector<128x128xf32>
    %29 = arith.subf %25, %28 : vector<128x128xf32>
    %30 = math.exp %29 : vector<128x128xf32>
    %cst_23 = arith.constant dense<0.000000e+00> : vector<128xf32>
    %31 = vector.multi_reduction <add>, %30, %cst_23 [1] : vector<128x128xf32> to vector<128xf32>
    %32 = vector.shape_cast %31 : vector<128xf32> to vector<128x1xf32>
    %33 = tpu.reciprocal %32 {approx = true} : vector<128x1xf32> -> vector<128x1xf32>
    %34 = vector.broadcast %33 : vector<128x1xf32> to vector<128x128xf32>
    %35 = arith.mulf %30, %34 : vector<128x128xf32>
    %36 = arith.truncf %35 : vector<128x128xf32> to vector<128x128xbf16>
    %cst_24 = arith.constant dense<0.000000e+00> : vector<128x128xf32>
    %37 = tpu.matmul %36, %5, %cst_24 {dimension_numbers = #tpu.dot_dimension_numbers<[1], [0], [0], [1], [0, 0, 1, 1], [], []>} : vector<128x128xbf16>, vector<128x128xbf16>, vector<128x128xf32> -> vector<128x128xf32>
    %38 = arith.truncf %37 : vector<128x128xf32> to vector<128x128xbf16>
    %c0_25 = arith.constant 0 : index
    %c0_26 = arith.constant 0 : index
    %39 = vector.load %arg10[%c0_25, %c0_26] : memref<128x128xbf16, #tpu.memory_space<vmem>>, vector<128x128xbf16>
    %cst_27 = arith.constant dense<0.000000e+00> : vector<128x128xf32>
    %40 = tpu.matmul %38, %39, %cst_27 {dimension_numbers = #tpu.dot_dimension_numbers<[1], [0], [0], [1], [0, 0, 1, 1], [], []>} : vector<128x128xbf16>, vector<128x128xbf16>, vector<128x128xf32> -> vector<128x128xf32>
    %c0_28 = arith.constant 0 : index
    %c0_29 = arith.constant 0 : index
    %41 = vector.load %arg11[%c0_28, %c0_29] : memref<1x128xf32, #tpu.memory_space<vmem>>, vector<1x128xf32>
    %42 = vector.broadcast %41 : vector<1x128xf32> to vector<128x128xf32>
    %43 = arith.addf %40, %42 : vector<128x128xf32>
    %cst_30 = arith.constant 0.000000e+00 : f32
    %44 = vector.broadcast %cst_30 : f32 to vector<128x128xf32>
    %45 = arith.maximumf %43, %44 : vector<128x128xf32>
    %46 = arith.truncf %45 : vector<128x128xf32> to vector<128x128xbf16>
    %c0_31 = arith.constant 0 : index
    %c0_32 = arith.constant 0 : index
    %47 = vector.load %arg12[%c0_31, %c0_32] : memref<128x128xbf16, #tpu.memory_space<vmem>>, vector<128x128xbf16>
    %cst_33 = arith.constant dense<0.000000e+00> : vector<128x128xf32>
    %48 = tpu.matmul %46, %47, %cst_33 {dimension_numbers = #tpu.dot_dimension_numbers<[1], [0], [0], [1], [0, 0, 1, 1], [], []>} : vector<128x128xbf16>, vector<128x128xbf16>, vector<128x128xf32> -> vector<128x128xf32>
    %c0_34 = arith.constant 0 : index
    %c0_35 = arith.constant 0 : index
    %49 = vector.load %arg13[%c0_34, %c0_35] : memref<128x128xbf16, #tpu.memory_space<vmem>>, vector<128x128xbf16>
    %cst_36 = arith.constant dense<0.000000e+00> : vector<128x128xf32>
    %50 = tpu.matmul %1, %49, %cst_36 {dimension_numbers = #tpu.dot_dimension_numbers<[1], [0], [0], [1], [0, 0, 1, 1], [], []>} : vector<128x128xbf16>, vector<128x128xbf16>, vector<128x128xf32> -> vector<128x128xf32>
    %51 = arith.addf %48, %50 : vector<128x128xf32>
    %c0_37 = arith.constant 0 : index
    %c0_38 = arith.constant 0 : index
    %52 = vector.load %arg14[%c0_37, %c0_38] : memref<1x128xf32, #tpu.memory_space<vmem>>, vector<1x128xf32>
    %53 = vector.broadcast %52 : vector<1x128xf32> to vector<128x128xf32>
    %54 = arith.addf %51, %53 : vector<128x128xf32>
    %cst_39 = arith.constant 0.000000e+00 : f32
    %55 = vector.broadcast %cst_39 : f32 to vector<128x128xf32>
    %56 = arith.maximumf %54, %55 : vector<128x128xf32>
    %57 = arith.truncf %56 : vector<128x128xf32> to vector<128x128xbf16>
    %c0_40 = arith.constant 0 : index
    %c0_41 = arith.constant 0 : index
    %c0_42 = arith.constant 0 : index
    %58 = vector.load %arg15[%c0_40, %c0_41, %c0_42] : memref<1x128x128xbf16, #tpu.memory_space<vmem>>, vector<1x128x128xbf16>
    %59 = vector.shape_cast %58 : vector<1x128x128xbf16> to vector<128x128xbf16>
    %60 = vector.shape_cast %57 : vector<128x128xbf16> to vector<1x128x128xbf16>
    tpu.vector_store %arg15[%c0_40, %c0_41, %c0_42], %60 {strides = array<i32>} : memref<1x128x128xbf16, #tpu.memory_space<vmem>>, vector<1x128x128xbf16>,
    return
  }
  func.func @transform_0(%arg0: i32, %arg1: i32) -> (i32, i32, i32) {
    %c0_i32 = arith.constant 0 : i32
    %c0_i32_0 = arith.constant 0 : i32
    return %arg0, %arg1, %c0_i32 : i32, i32, i32
  }
  func.func @transform_1(%arg0: i32, %arg1: i32) -> (i32, i32, i32) {
    %c0_i32 = arith.constant 0 : i32
    %c0_i32_0 = arith.constant 0 : i32
    %c0_i32_1 = arith.constant 0 : i32
    return %arg0, %c0_i32, %c0_i32_0 : i32, i32, i32
  }
  func.func @transform_2(%arg0: i32, %arg1: i32) -> (i32, i32, i32) {
    %c0_i32 = arith.constant 0 : i32
    %c0_i32_0 = arith.constant 0 : i32
    %c0_i32_1 = arith.constant 0 : i32
    return %arg0, %c0_i32, %c0_i32_0 : i32, i32, i32
  }
  func.func @transform_3(%arg0: i32, %arg1: i32) -> (i32, i32) {
    %c0_i32 = arith.constant 0 : i32
    %c0_i32_0 = arith.constant 0 : i32
    %c0_i32_1 = arith.constant 0 : i32
    return %c0_i32, %c0_i32_0 : i32, i32
  }
  func.func @transform_4(%arg0: i32, %arg1: i32) -> (i32, i32) {
    %c0_i32 = arith.constant 0 : i32
    %c0_i32_0 = arith.constant 0 : i32
    %c0_i32_1 = arith.constant 0 : i32
    return %c0_i32, %c0_i32_0 : i32, i32
  }
  func.func @transform_5(%arg0: i32, %arg1: i32) -> (i32, i32) {
    %c0_i32 = arith.constant 0 : i32
    %c0_i32_0 = arith.constant 0 : i32
    %c0_i32_1 = arith.constant 0 : i32
    return %c0_i32, %c0_i32_0 : i32, i32
  }
  func.func @transform_6(%arg0: i32, %arg1: i32) -> (i32, i32) {
    %c0_i32 = arith.constant 0 : i32
    %c0_i32_0 = arith.constant 0 : i32
    %c0_i32_1 = arith.constant 0 : i32
    return %c0_i32, %c0_i32_0 : i32, i32
  }
  func.func @transform_7(%arg0: i32, %arg1: i32) -> (i32, i32) {
    %c0_i32 = arith.constant 0 : i32
    %c0_i32_0 = arith.constant 0 : i32
    %c0_i32_1 = arith.constant 0 : i32
    return %c0_i32, %c0_i32_0 : i32, i32
  }
  func.func @transform_8(%arg0: i32, %arg1: i32) -> (i32, i32) {
    %c0_i32 = arith.constant 0 : i32
    %c0_i32_0 = arith.constant 0 : i32
    %c0_i32_1 = arith.constant 0 : i32
    return %c0_i32, %c0_i32_0 : i32, i32
  }
  func.func @transform_9(%arg0: i32, %arg1: i32) -> (i32, i32) {
    %c0_i32 = arith.constant 0 : i32
    %c0_i32_0 = arith.constant 0 : i32
    %c0_i32_1 = arith.constant 0 : i32
    return %c0_i32, %c0_i32_0 : i32, i32
  }
  func.func @transform_10(%arg0: i32, %arg1: i32) -> (i32, i32) {
    %c0_i32 = arith.constant 0 : i32
    %c0_i32_0 = arith.constant 0 : i32
    %c0_i32_1 = arith.constant 0 : i32
    return %c0_i32, %c0_i32_0 : i32, i32
  }
  func.func @transform_11(%arg0: i32, %arg1: i32) -> (i32, i32) {
    %c0_i32 = arith.constant 0 : i32
    %c0_i32_0 = arith.constant 0 : i32
    %c0_i32_1 = arith.constant 0 : i32
    return %c0_i32, %c0_i32_0 : i32, i32
  }
  func.func @transform_12(%arg0: i32, %arg1: i32) -> (i32, i32) {
    %c0_i32 = arith.constant 0 : i32
    %c0_i32_0 = arith.constant 0 : i32
    %c0_i32_1 = arith.constant 0 : i32
    return %c0_i32, %c0_i32_0 : i32, i32
  }
  func.func @transform_13(%arg0: i32, %arg1: i32) -> (i32, i32, i32) {
    %c0_i32 = arith.constant 0 : i32
    %c0_i32_0 = arith.constant 0 : i32
    return %arg0, %arg1, %c0_i32 : i32, i32, i32
  }
}

</mosaic_0001>

<llo_original>
// kernel: tpu_custom_call.1
$region0: #{tpu_custom_call.1}
  #allocation0 [shape = 'u32[]', space=smem, size = 0x4, offset = 0x4, fixed_abs, tag = 'smem constant byte address 0x4 - core index']
  #allocation1 [shape = 'u32[144,128]{1,0:T(1,128)}', space=vmem, size = 0x12000, scoped, tag = 'internal scratch']
  %s0 = inlined_call_operand.hbm [shape: bf16[2,256,128], index: 0, kind: input, shape index: {}]
  %s1 = inlined_call_operand.hbm [shape: bf16[2,128,128], index: 1, kind: input, shape index: {}]
  %s2 = inlined_call_operand.hbm [shape: bf16[2,128,128], index: 2, kind: input, shape index: {}]
  %s3 = inlined_call_operand.vmem [shape: f32[1,128], index: 3, kind: input, shape index: {}]
  %s4 = inlined_call_operand.hbm [shape: bf16[128,128], index: 4, kind: input, shape index: {}]
  %s5 = inlined_call_operand.vmem [shape: f32[1,128], index: 5, kind: input, shape index: {}]
  %s6 = inlined_call_operand.hbm [shape: bf16[128,128], index: 6, kind: input, shape index: {}]
  %s7 = inlined_call_operand.vmem [shape: f32[1,128], index: 7, kind: input, shape index: {}]
  %s8 = inlined_call_operand.hbm [shape: bf16[128,128], index: 8, kind: input, shape index: {}]
  %s9 = inlined_call_operand.vmem [shape: f32[1,128], index: 9, kind: input, shape index: {}]
  %s10 = inlined_call_operand.hbm [shape: bf16[128,128], index: 10, kind: input, shape index: {}]
  %s11 = inlined_call_operand.hbm [shape: bf16[128,128], index: 11, kind: input, shape index: {}]
  %s12 = inlined_call_operand.vmem [shape: f32[1,128], index: 12, kind: input, shape index: {}]
  %s13 = inlined_call_operand.hbm [shape: bf16[2,256,128], index: 13, kind: output, shape index: {}]
  %s14 = sld [smem:[#allocation0]]
  $region117: #{tpu_custom_call.1} parent=0
    _
  %s16 = ssub.s32 1, %s14
  %s17 = scalar_select 0, %s16, %s14
  $region1: #{tpu_custom_call.1} parent=0
    #allocation2 [shape = 'u8[65536]{0}', space=vmem, size = 0x10000, scoped, tag = 'input window, operand 0']
    #allocation3 [shape = 's32[2]{0}', space=sflag, size = 0x8, scoped, tag = 'scoped memory for tpu_custom_call.1']
    #allocation4 [shape = 's32[2]{0}', space=sflag, size = 0x8, scoped, tag = 'scoped memory for tpu_custom_call.1']
    #allocation5 [shape = 'u8[65536]{0}', space=vmem, size = 0x10000, scoped, tag = 'input window, operand 1']
    #allocation6 [shape = 's32[2]{0}', space=sflag, size = 0x8, scoped, tag = 'scoped memory for tpu_custom_call.1']
    #allocation7 [shape = 'u8[65536]{0}', space=vmem, size = 0x10000, scoped, tag = 'input window, operand 2']
    #allocation8 [shape = 'u8[32768]{0}', space=vmem, size = 0x8000, scoped, tag = 'input window, operand 4, single buffered']
    #allocation9 [shape = 's32[1]{0}', space=sflag, size = 0x4, scoped, tag = 'scoped memory for tpu_custom_call.1']
    #allocation10 [shape = 'u8[32768]{0}', space=vmem, size = 0x8000, scoped, tag = 'input window, operand 6, single buffered']
    #allocation11 [shape = 'u8[32768]{0}', space=vmem, size = 0x8000, scoped, tag = 'input window, operand 8, single buffered']
    #allocation12 [shape = 's32[1]{0}', space=sflag, size = 0x4, scoped, tag = 'scoped memory for tpu_custom_call.1']
    #allocation13 [shape = 'u8[32768]{0}', space=vmem, size = 0x8000, scoped, tag = 'input window, operand 10, single buffered']
    #allocation14 [shape = 'u8[32768]{0}', space=vmem, size = 0x8000, scoped, tag = 'input window, operand 11, single buffered']
    #allocation15 [shape = 's32[1]{0}', space=sflag, size = 0x4, scoped, tag = 'scoped memory for tpu_custom_call.1']
    #allocation16 [shape = 'u8[65536]{0}', space=vmem, size = 0x10000, scoped, tag = 'output window, operand 0']
    %18 = vsyncpa [#allocation3], 0
    %s19 = scalar_lea.sflag [#allocation3], 1
    %20 = vsyncpa %s19, 0
    %21 = vsyncpa [#allocation6], 0
    %s22 = scalar_lea.sflag [#allocation6], 1
    %23 = vsyncpa %s22, 0
    %24 = vsyncpa [#allocation9], 0
    %25 = vsyncpa [#allocation12], 0
    %26 = vsyncpa [#allocation15], 0
    %27 = vsyncpa [#allocation4], 0
    %s28 = scalar_lea.sflag [#allocation4], 1
    %29 = vsyncpa %s28, 0
    loop: start=0, step=1, limit=6
    $region2: #{tpu_custom_call.1} parent=1 // loop_pre_header
      _
    $region3: #{tpu_custom_call.1} parent=1 // loop_header
      %s31 = sphi 0, %s35
      %p32 = scmp.ge.s32.totalorder %s31, 6
      %s38 = sphi 0, %s50
      %s39 = sphi 0, %s46
      %s40 = sphi 0, %s38
      %s41 = sphi 0, %s39
      %s42 = sphi 0, %s40
      %s43 = sphi 0, %s41
      %s55 = sphi 0, %s57
      %s58 = sphi 0, %s55
      %s59 = sphi 0, %s58
      %s75 = sphi 0, %s59
      %s81 = sphi 0, %s83
      %s84 = sphi 0, %s81
      %s85 = sphi 0, %s84
      %s101 = sphi 0, %s85
      %s107 = sphi 0, %s109
      %s110 = sphi 0, %s107
      %s111 = sphi 0, %s110
      %s127 = sphi 0, %s111
      %s131 = sphi 0, %s131
      %s133 = sphi 0, %s131
      %s134 = sphi 0, %s133
      %s148 = sphi 0, %s134
      %s152 = sphi 0, %s152
      %s154 = sphi 0, %s152
      %s155 = sphi 0, %s154
      %s169 = sphi 0, %s155
      %s173 = sphi 0, %s173
      %s175 = sphi 0, %s173
      %s176 = sphi 0, %s175
      %s190 = sphi 0, %s176
      %s194 = sphi 0, %s194
      %s196 = sphi 0, %s194
      %s197 = sphi 0, %s196
      %s211 = sphi 0, %s197
      %s215 = sphi 0, %s215
      %s217 = sphi 0, %s215
      %s218 = sphi 0, %s217
      %s232 = sphi 0, %s218
      %s236 = sphi 0, %s236
      %s238 = sphi 0, %s236
      %s239 = sphi 0, %s238
      %s253 = sphi 0, %s239
      %s257 = sphi 0, %s257
      %s259 = sphi 0, %s257
      %s260 = sphi 0, %s259
      %s274 = sphi 0, %s260
      %s278 = sphi 0, %s278
      %s280 = sphi 0, %s278
      %s281 = sphi 0, %s280
      %s295 = sphi 0, %s281
      %s299 = sphi 0, %s299
      %s301 = sphi 0, %s299
      %s302 = sphi 0, %s301
      %s316 = sphi 0, %s302
      %s320 = sphi 0, %s320
      %s322 = sphi 0, %s320
      %s323 = sphi 0, %s322
      %s337 = sphi 0, %s323
      %s345 = sphi 0, %s347
      %s348 = sphi 0, %s345
      %s349 = sphi 0, %s348
      %s365 = sphi 0, %s349
    $region4: #{tpu_custom_call.1} parent=1 // loop_header_branch
      %34 = sbr.rel (%p32) target = $region8
    $region5: #{tpu_custom_call.1} parent=1 // loop_body
      %s36 = ssub.s32 %s31, 1
      %s37 = ssub.s32 %s31, 2
      %s44 = sadd.s32 1, %s39
      %p45 = scmp.ge.s32.totalorder %s44, 2
      %s46 = scalar_select %p45, 0, %s44
      %s47 = sadd.s32 1, %s38
      %s48 = scalar_select %p45, %s47, %s38
      %p49 = scmp.ge.s32.totalorder %s48, 2
      %s50 = scalar_select %p49, 0, %s48
      %s51 = ssub.s32 %s38, %s50
      %s52 = ssub.s32 %s39, %s46
      %s53 = sor.u32 %s51, %s52
      %p54 = scmp.eq.s32.totalorder %s53, 0
      %s56 = sadd.s32 %s55, 1
      %s57 = scalar_select %p54, %s55, %s56
      %p60 = pneg %p54
      %p61 = scmp.eq.s32.totalorder %s31, 3
      %p62 = por %p60, %p61
      %p63 = scmp.ne.s32.totalorder %s55, %s58
      %p64 = scmp.eq.s32.totalorder %s31, 0
      %p65 = por %p63, %p64
      %p66 = scmp.ne.s32.totalorder %s55, %s58
      %p67 = scmp.eq.s32.totalorder %s36, 3
      %p68 = por %p66, %p67
      %p69 = scmp.ne.s32.totalorder %s58, %s59
      %p70 = scmp.eq.s32.totalorder %s36, 0
      %p71 = por %p69, %p70
      %p72 = scmp.ne.s32.totalorder %s58, %s59
      %p73 = scmp.eq.s32.totalorder %s37, 3
      %p74 = por %p72, %p73
      %p76 = scmp.ne.s32.totalorder %s59, %s75
      %p77 = scmp.eq.s32.totalorder %s37, 0
      %p78 = por %p76, %p77
      %s79 = ssub.s32 %s38, %s50
      %p80 = scmp.eq.s32.totalorder %s79, 0
      %s82 = sadd.s32 %s81, 1
      %s83 = scalar_select %p80, %s81, %s82
      %p86 = pneg %p80
      %p87 = scmp.eq.s32.totalorder %s31, 3
      %p88 = por %p86, %p87
      %p89 = scmp.ne.s32.totalorder %s81, %s84
      %p90 = scmp.eq.s32.totalorder %s31, 0
      %p91 = por %p89, %p90
      %p92 = scmp.ne.s32.totalorder %s81, %s84
      %p93 = scmp.eq.s32.totalorder %s36, 3
      %p94 = por %p92, %p93
      %p95 = scmp.ne.s32.totalorder %s84, %s85
      %p96 = scmp.eq.s32.totalorder %s36, 0
      %p97 = por %p95, %p96
      %p98 = scmp.ne.s32.totalorder %s84, %s85
      %p99 = scmp.eq.s32.totalorder %s37, 3
      %p100 = por %p98, %p99
      %p102 = scmp.ne.s32.totalorder %s85, %s101
      %p103 = scmp.eq.s32.totalorder %s37, 0
      %p104 = por %p102, %p103
      %s105 = ssub.s32 %s38, %s50
      %p106 = scmp.eq.s32.totalorder %s105, 0
      %s108 = sadd.s32 %s107, 1
      %s109 = scalar_select %p106, %s107, %s108
      %p112 = pneg %p106
      %p113 = scmp.eq.s32.totalorder %s31, 3
      %p114 = por %p112, %p113
      %p115 = scmp.ne.s32.totalorder %s107, %s110
      %p116 = scmp.eq.s32.totalorder %s31, 0
      %p117 = por %p115, %p116
      %p118 = scmp.ne.s32.totalorder %s107, %s110
      %p119 = scmp.eq.s32.totalorder %s36, 3
      %p120 = por %p118, %p119
      %p121 = scmp.ne.s32.totalorder %s110, %s111
      %p122 = scmp.eq.s32.totalorder %s36, 0
      %p123 = por %p121, %p122
      %p124 = scmp.ne.s32.totalorder %s110, %s111
      %p125 = scmp.eq.s32.totalorder %s37, 3
      %p126 = por %p124, %p125
      %p128 = scmp.ne.s32.totalorder %s111, %s127
      %p129 = scmp.eq.s32.totalorder %s37, 0
      %p130 = por %p128, %p129
      %s132 = sadd.s32 %s131, 1
      %p135 = scmp.eq.s32.totalorder %s31, 3
      %p136 = scmp.ne.s32.totalorder %s131, %s133
      %p137 = scmp.eq.s32.totalorder %s31, 0
      %p138 = por %p136, %p137
      %p139 = scmp.ne.s32.totalorder %s131, %s133
      %p140 = scmp.eq.s32.totalorder %s36, 3
      %p141 = por %p139, %p140
      %p142 = scmp.ne.s32.totalorder %s133, %s134
      %p143 = scmp.eq.s32.totalorder %s36, 0
      %p144 = por %p142, %p143
      %p145 = scmp.ne.s32.totalorder %s133, %s134
      %p146 = scmp.eq.s32.totalorder %s37, 3
      %p147 = por %p145, %p146
      %p149 = scmp.ne.s32.totalorder %s134, %s148
      %p150 = scmp.eq.s32.totalorder %s37, 0
      %p151 = por %p149, %p150
      %s153 = sadd.s32 %s152, 1
      %p156 = scmp.eq.s32.totalorder %s31, 3
      %p157 = scmp.ne.s32.totalorder %s152, %s154
      %p158 = scmp.eq.s32.totalorder %s31, 0
      %p159 = por %p157, %p158
      %p160 = scmp.ne.s32.totalorder %s152, %s154
      %p161 = scmp.eq.s32.totalorder %s36, 3
      %p162 = por %p160, %p161
      %p163 = scmp.ne.s32.totalorder %s154, %s155
      %p164 = scmp.eq.s32.totalorder %s36, 0
      %p165 = por %p163, %p164
      %p166 = scmp.ne.s32.totalorder %s154, %s155
      %p167 = scmp.eq.s32.totalorder %s37, 3
      %p168 = por %p166, %p167
      %p170 = scmp.ne.s32.totalorder %s155, %s169
      %p171 = scmp.eq.s32.totalorder %s37, 0
      %p172 = por %p170, %p171
      %s174 = sadd.s32 %s173, 1
      %p177 = scmp.eq.s32.totalorder %s31, 3
      %p178 = scmp.ne.s32.totalorder %s173, %s175
      %p179 = scmp.eq.s32.totalorder %s31, 0
      %p180 = por %p178, %p179
      %p181 = scmp.ne.s32.totalorder %s173, %s175
      %p182 = scmp.eq.s32.totalorder %s36, 3
      %p183 = por %p181, %p182
      %p184 = scmp.ne.s32.totalorder %s175, %s176
      %p185 = scmp.eq.s32.totalorder %s36, 0
      %p186 = por %p184, %p185
      %p187 = scmp.ne.s32.totalorder %s175, %s176
      %p188 = scmp.eq.s32.totalorder %s37, 3
      %p189 = por %p187, %p188
      %p191 = scmp.ne.s32.totalorder %s176, %s190
      %p192 = scmp.eq.s32.totalorder %s37, 0
      %p193 = por %p191, %p192
      %s195 = sadd.s32 %s194, 1
      %p198 = scmp.eq.s32.totalorder %s31, 3
      %p199 = scmp.ne.s32.totalorder %s194, %s196
      %p200 = scmp.eq.s32.totalorder %s31, 0
      %p201 = por %p199, %p200
      %p202 = scmp.ne.s32.totalorder %s194, %s196
      %p203 = scmp.eq.s32.totalorder %s36, 3
      %p204 = por %p202, %p203
      %p205 = scmp.ne.s32.totalorder %s196, %s197
      %p206 = scmp.eq.s32.totalorder %s36, 0
      %p207 = por %p205, %p206
      %p208 = scmp.ne.s32.totalorder %s196, %s197
      %p209 = scmp.eq.s32.totalorder %s37, 3
      %p210 = por %p208, %p209
      %p212 = scmp.ne.s32.totalorder %s197, %s211
      %p213 = scmp.eq.s32.totalorder %s37, 0
      %p214 = por %p212, %p213
      %s216 = sadd.s32 %s215, 1
      %p219 = scmp.eq.s32.totalorder %s31, 3
      %p220 = scmp.ne.s32.totalorder %s215, %s217
      %p221 = scmp.eq.s32.totalorder %s31, 0
      %p222 = por %p220, %p221
      %p223 = scmp.ne.s32.totalorder %s215, %s217
      %p224 = scmp.eq.s32.totalorder %s36, 3
      %p225 = por %p223, %p224
      %p226 = scmp.ne.s32.totalorder %s217, %s218
      %p227 = scmp.eq.s32.totalorder %s36, 0
      %p228 = por %p226, %p227
      %p229 = scmp.ne.s32.totalorder %s217, %s218
      %p230 = scmp.eq.s32.totalorder %s37, 3
      %p231 = por %p229, %p230
      %p233 = scmp.ne.s32.totalorder %s218, %s232
      %p234 = scmp.eq.s32.totalorder %s37, 0
      %p235 = por %p233, %p234
      %s237 = sadd.s32 %s236, 1
      %p240 = scmp.eq.s32.totalorder %s31, 3
      %p241 = scmp.ne.s32.totalorder %s236, %s238
      %p242 = scmp.eq.s32.totalorder %s31, 0
      %p243 = por %p241, %p242
      %p244 = scmp.ne.s32.totalorder %s236, %s238
      %p245 = scmp.eq.s32.totalorder %s36, 3
      %p246 = por %p244, %p245
      %p247 = scmp.ne.s32.totalorder %s238, %s239
      %p248 = scmp.eq.s32.totalorder %s36, 0
      %p249 = por %p247, %p248
      %p250 = scmp.ne.s32.totalorder %s238, %s239
      %p251 = scmp.eq.s32.totalorder %s37, 3
      %p252 = por %p250, %p251
      %p254 = scmp.ne.s32.totalorder %s239, %s253
      %p255 = scmp.eq.s32.totalorder %s37, 0
      %p256 = por %p254, %p255
      %s258 = sadd.s32 %s257, 1
      %p261 = scmp.eq.s32.totalorder %s31, 3
      %p262 = scmp.ne.s32.totalorder %s257, %s259
      %p263 = scmp.eq.s32.totalorder %s31, 0
      %p264 = por %p262, %p263
      %p265 = scmp.ne.s32.totalorder %s257, %s259
      %p266 = scmp.eq.s32.totalorder %s36, 3
      %p267 = por %p265, %p266
      %p268 = scmp.ne.s32.totalorder %s259, %s260
      %p269 = scmp.eq.s32.totalorder %s36, 0
      %p270 = por %p268, %p269
      %p271 = scmp.ne.s32.totalorder %s259, %s260
      %p272 = scmp.eq.s32.totalorder %s37, 3
      %p273 = por %p271, %p272
      %p275 = scmp.ne.s32.totalorder %s260, %s274
      %p276 = scmp.eq.s32.totalorder %s37, 0
      %p277 = por %p275, %p276
      %s279 = sadd.s32 %s278, 1
      %p282 = scmp.eq.s32.totalorder %s31, 3
      %p283 = scmp.ne.s32.totalorder %s278, %s280
      %p284 = scmp.eq.s32.totalorder %s31, 0
      %p285 = por %p283, %p284
      %p286 = scmp.ne.s32.totalorder %s278, %s280
      %p287 = scmp.eq.s32.totalorder %s36, 3
      %p288 = por %p286, %p287
      %p289 = scmp.ne.s32.totalorder %s280, %s281
      %p290 = scmp.eq.s32.totalorder %s36, 0
      %p291 = por %p289, %p290
      %p292 = scmp.ne.s32.totalorder %s280, %s281
      %p293 = scmp.eq.s32.totalorder %s37, 3
      %p294 = por %p292, %p293
      %p296 = scmp.ne.s32.totalorder %s281, %s295
      %p297 = scmp.eq.s32.totalorder %s37, 0
      %p298 = por %p296, %p297
      %s300 = sadd.s32 %s299, 1
      %p303 = scmp.eq.s32.totalorder %s31, 3
      %p304 = scmp.ne.s32.totalorder %s299, %s301
      %p305 = scmp.eq.s32.totalorder %s31, 0
      %p306 = por %p304, %p305
      %p307 = scmp.ne.s32.totalorder %s299, %s301
      %p308 = scmp.eq.s32.totalorder %s36, 3
      %p309 = por %p307, %p308
      %p310 = scmp.ne.s32.totalorder %s301, %s302
      %p311 = scmp.eq.s32.totalorder %s36, 0
      %p312 = por %p310, %p311
      %p313 = scmp.ne.s32.totalorder %s301, %s302
      %p314 = scmp.eq.s32.totalorder %s37, 3
      %p315 = por %p313, %p314
      %p317 = scmp.ne.s32.totalorder %s302, %s316
      %p318 = scmp.eq.s32.totalorder %s37, 0
      %p319 = por %p317, %p318
      %s321 = sadd.s32 %s320, 1
      %p324 = scmp.eq.s32.totalorder %s31, 3
      %p325 = scmp.ne.s32.totalorder %s320, %s322
      %p326 = scmp.eq.s32.totalorder %s31, 0
      %p327 = por %p325, %p326
      %p328 = scmp.ne.s32.totalorder %s320, %s322
      %p329 = scmp.eq.s32.totalorder %s36, 3
      %p330 = por %p328, %p329
      %p331 = scmp.ne.s32.totalorder %s322, %s323
      %p332 = scmp.eq.s32.totalorder %s36, 0
      %p333 = por %p331, %p332
      %p334 = scmp.ne.s32.totalorder %s322, %s323
      %p335 = scmp.eq.s32.totalorder %s37, 3
      %p336 = por %p334, %p335
      %p338 = scmp.ne.s32.totalorder %s323, %s337
      %p339 = scmp.eq.s32.totalorder %s37, 0
      %p340 = por %p338, %p339
      %s341 = ssub.s32 %s38, %s50
      %s342 = ssub.s32 %s39, %s46
      %s343 = sor.u32 %s341, %s342
      %p344 = scmp.eq.s32.totalorder %s343, 0
      %s346 = sadd.s32 %s345, 1
      %s347 = scalar_select %p344, %s345, %s346
      %p350 = pneg %p344
      %p351 = scmp.eq.s32.totalorder %s31, 3
      %p352 = por %p350, %p351
      %p353 = scmp.ne.s32.totalorder %s345, %s348
      %p354 = scmp.eq.s32.totalorder %s31, 0
      %p355 = por %p353, %p354
      %p356 = scmp.ne.s32.totalorder %s345, %s348
      %p357 = scmp.eq.s32.totalorder %s36, 3
      %p358 = por %p356, %p357
      %p359 = scmp.ne.s32.totalorder %s348, %s349
      %p360 = scmp.eq.s32.totalorder %s36, 0
      %p361 = por %p359, %p360
      %p362 = scmp.ne.s32.totalorder %s348, %s349
      %p363 = scmp.eq.s32.totalorder %s37, 3
      %p364 = por %p362, %p363
      %p366 = scmp.ne.s32.totalorder %s349, %s365
      %p367 = scmp.eq.s32.totalorder %s37, 0
      %p368 = por %p366, %p367
      %p369 = scmp.le.s32.totalorder 1, %s31
      %p370 = scmp.lt.s32.totalorder %s31, 5
      %p371 = pnand %p369, %p370
      %p372 = pneg %p371
      // Predicated region
      $region9: #{tpu_custom_call.1} parent=5 // pred_check
        _
      $region10: #{tpu_custom_call.1} parent=5 // pred_check_branch
        %374 = sbr.rel (%p371) target = $region12
      $region11: #{tpu_custom_call.1} parent=5 // pred_region
        %s375 = ssub.s32 %s31, 1
        // Predicated region
        $region13: #{tpu_custom_call.1} parent=11 // pred_check
          %p376 = pneg %p144
        $region14: #{tpu_custom_call.1} parent=11 // pred_check_branch
          %378 = sbr.rel (%p376) target = $region16
        $region15: #{tpu_custom_call.1} parent=11 // pred_region
          _
        $region16: #{tpu_custom_call.1} parent=11 // pred_fallthru
          _
        // Predicated region
        $region17: #{tpu_custom_call.1} parent=11 // pred_check
          %p379 = pneg %p165
        $region18: #{tpu_custom_call.1} parent=11 // pred_check_branch
          %381 = sbr.rel (%p379) target = $region20
        $region19: #{tpu_custom_call.1} parent=11 // pred_region
          %s383 = ssub.s32 1024, 1024
          %384 = vsyncadd [#allocation9], %s383
          %s385 = sshll.u32 [#allocation8], 4
          %s386 = int_to_ptr.vmem [resolvable:$true] %s385
          %391 = dma.hbm_to_vmem [thread:$0]  %s4, 1024, %s386, [#allocation9], 64, 64, 4
        $region20: #{tpu_custom_call.1} parent=11 // pred_fallthru
          _
        // Predicated region
        $region21: #{tpu_custom_call.1} parent=11 // pred_check
          %p392 = pneg %p186
        $region22: #{tpu_custom_call.1} parent=11 // pred_check_branch
          %394 = sbr.rel (%p392) target = $region24
        $region23: #{tpu_custom_call.1} parent=11 // pred_region
          _
        $region24: #{tpu_custom_call.1} parent=11 // pred_fallthru
          _
        // Predicated region
        $region25: #{tpu_custom_call.1} parent=11 // pred_check
          %p395 = pneg %p207
        $region26: #{tpu_custom_call.1} parent=11 // pred_check_branch
          %397 = sbr.rel (%p395) target = $region28
        $region27: #{tpu_custom_call.1} parent=11 // pred_region
          %s399 = ssub.s32 1024, 1024
          %400 = vsyncadd [#allocation9], %s399
          %s401 = sshll.u32 [#allocation10], 4
          %s402 = int_to_ptr.vmem [resolvable:$true] %s401
          %407 = dma.hbm_to_vmem [thread:$0]  %s6, 1024, %s402, [#allocation9], 64, 64, 4
        $region28: #{tpu_custom_call.1} parent=11 // pred_fallthru
          _
        // Predicated region
        $region29: #{tpu_custom_call.1} parent=11 // pred_check
          %p408 = pneg %p228
        $region30: #{tpu_custom_call.1} parent=11 // pred_check_branch
          %410 = sbr.rel (%p408) target = $region32
        $region31: #{tpu_custom_call.1} parent=11 // pred_region
          _
        $region32: #{tpu_custom_call.1} parent=11 // pred_fallthru
          _
        // Predicated region
        $region33: #{tpu_custom_call.1} parent=11 // pred_check
          %p411 = pneg %p249
        $region34: #{tpu_custom_call.1} parent=11 // pred_check_branch
          %413 = sbr.rel (%p411) target = $region36
        $region35: #{tpu_custom_call.1} parent=11 // pred_region
          %s415 = ssub.s32 1024, 1024
          %416 = vsyncadd [#allocation12], %s415
          %s417 = sshll.u32 [#allocation11], 4
          %s418 = int_to_ptr.vmem [resolvable:$true] %s417
          %423 = dma.hbm_to_vmem [thread:$0]  %s8, 1024, %s418, [#allocation12], 64, 64, 4
        $region36: #{tpu_custom_call.1} parent=11 // pred_fallthru
          _
        // Predicated region
        $region37: #{tpu_custom_call.1} parent=11 // pred_check
          %p424 = pneg %p270
        $region38: #{tpu_custom_call.1} parent=11 // pred_check_branch
          %426 = sbr.rel (%p424) target = $region40
        $region39: #{tpu_custom_call.1} parent=11 // pred_region
          _
        $region40: #{tpu_custom_call.1} parent=11 // pred_fallthru
          _
        // Predicated region
        $region41: #{tpu_custom_call.1} parent=11 // pred_check
          %p427 = pneg %p291
        $region42: #{tpu_custom_call.1} parent=11 // pred_check_branch
          %429 = sbr.rel (%p427) target = $region44
        $region43: #{tpu_custom_call.1} parent=11 // pred_region
          %s431 = ssub.s32 1024, 1024
          %432 = vsyncadd [#allocation12], %s431
          %s433 = sshll.u32 [#allocation13], 4
          %s434 = int_to_ptr.vmem [resolvable:$true] %s433
          %439 = dma.hbm_to_vmem [thread:$0]  %s10, 1024, %s434, [#allocation12], 64, 64, 4
        $region44: #{tpu_custom_call.1} parent=11 // pred_fallthru
          _
        // Predicated region
        $region45: #{tpu_custom_call.1} parent=11 // pred_check
          %p440 = pneg %p312
        $region46: #{tpu_custom_call.1} parent=11 // pred_check_branch
          %442 = sbr.rel (%p440) target = $region48
        $region47: #{tpu_custom_call.1} parent=11 // pred_region
          %s444 = ssub.s32 1024, 1024
          %445 = vsyncadd [#allocation15], %s444
          %s446 = sshll.u32 [#allocation14], 4
          %s447 = int_to_ptr.vmem [resolvable:$true] %s446
          %452 = dma.hbm_to_vmem [thread:$0]  %s11, 1024, %s447, [#allocation15], 64, 64, 4
        $region48: #{tpu_custom_call.1} parent=11 // pred_fallthru
          _
        // Predicated region
        $region49: #{tpu_custom_call.1} parent=11 // pred_check
          %p453 = pneg %p333
        $region50: #{tpu_custom_call.1} parent=11 // pred_check_branch
          %455 = sbr.rel (%p453) target = $region52
        $region51: #{tpu_custom_call.1} parent=11 // pred_region
          _
        $region52: #{tpu_custom_call.1} parent=11 // pred_fallthru
          _
      $region12: #{tpu_custom_call.1} parent=5 // pred_fallthru
        _
      %p456 = scmp.lt.s32.totalorder %s31, 4
      // Predicated region
      $region53: #{tpu_custom_call.1} parent=5 // pred_check
        %p457 = pneg %p456
      $region54: #{tpu_custom_call.1} parent=5 // pred_check_branch
        %459 = sbr.rel (%p457) target = $region56
      $region55: #{tpu_custom_call.1} parent=5 // pred_region
        // Predicated region
        $region57: #{tpu_custom_call.1} parent=55 // pred_check
          %p460 = pneg %p65
        $region58: #{tpu_custom_call.1} parent=55 // pred_check_branch
          %462 = sbr.rel (%p460) target = $region60
        $region59: #{tpu_custom_call.1} parent=55 // pred_region
          %s463 = sand.u32 %s55, 1
          %s464 = scalar_lea.sflag [#allocation3], %s463
          %s465 = sand.u32 %s55, 1
          %s466 = smul.addr %s465, 64
          %s467 = scalar_lea.vmem [#allocation2], %s466
          %s468 = smul.u32 16, %s39
          %s470 = ssub.s32 1024, 1024
          %471 = vsyncadd %s464, %s470
          %s472 = smul.addr %s38, 32
          %s473 = sadd.s32 %s468, %s472
          %s474 = smul.addr %s473, 64
          %s475 = scalar_lea.hbm %s0, %s474
          %s476 = sshll.u32 %s467, 4
          %s477 = int_to_ptr.vmem [resolvable:$true] %s476
          %482 = dma.hbm_to_vmem [thread:$0]  %s475, 1024, %s477, %s464, 64, 64, 4
        $region60: #{tpu_custom_call.1} parent=55 // pred_fallthru
          _
        // Predicated region
        $region61: #{tpu_custom_call.1} parent=55 // pred_check
          %p483 = pneg %p91
        $region62: #{tpu_custom_call.1} parent=55 // pred_check_branch
          %485 = sbr.rel (%p483) target = $region64
        $region63: #{tpu_custom_call.1} parent=55 // pred_region
          %s486 = sand.u32 %s31, 1
          %s487 = scalar_lea.sflag [#allocation6], %s486
          %s488 = sand.u32 %s81, 1
          %s489 = smul.addr %s488, 64
          %s490 = scalar_lea.vmem [#allocation5], %s489
          %s492 = ssub.s32 1024, 1024
          %493 = vsyncadd %s487, %s492
          %s494 = smul.addr %s38, 16
          %s495 = smul.addr %s494, 64
          %s496 = scalar_lea.hbm %s1, %s495
          %s497 = sshll.u32 %s490, 4
          %s498 = int_to_ptr.vmem [resolvable:$true] %s497
          %503 = dma.hbm_to_vmem [thread:$0]  %s496, 1024, %s498, %s487, 64, 64, 4
        $region64: #{tpu_custom_call.1} parent=55 // pred_fallthru
          _
        // Predicated region
        $region65: #{tpu_custom_call.1} parent=55 // pred_check
          %p504 = pneg %p117
        $region66: #{tpu_custom_call.1} parent=55 // pred_check_branch
          %506 = sbr.rel (%p504) target = $region68
        $region67: #{tpu_custom_call.1} parent=55 // pred_region
          %s507 = sand.u32 %s31, 1
          %s508 = scalar_lea.sflag [#allocation6], %s507
          %s509 = sand.u32 %s107, 1
          %s510 = smul.addr %s509, 64
          %s511 = scalar_lea.vmem [#allocation7], %s510
          %s513 = ssub.s32 1024, 1024
          %514 = vsyncadd %s508, %s513
          %s515 = smul.addr %s38, 16
          %s516 = smul.addr %s515, 64
          %s517 = scalar_lea.hbm %s2, %s516
          %s518 = sshll.u32 %s511, 4
          %s519 = int_to_ptr.vmem [resolvable:$true] %s518
          %524 = dma.hbm_to_vmem [thread:$0]  %s517, 1024, %s519, %s508, 64, 64, 4
        $region68: #{tpu_custom_call.1} parent=55 // pred_fallthru
          _
      $region56: #{tpu_custom_call.1} parent=5 // pred_fallthru
        _
      %p525 = scmp.le.s32.totalorder 1, %s31
      %p526 = scmp.lt.s32.totalorder %s31, 5
      %p527 = pnand %p525, %p526
      %p528 = pneg %p527
      // Predicated region
      $region69: #{tpu_custom_call.1} parent=5 // pred_check
        _
      $region70: #{tpu_custom_call.1} parent=5 // pred_check_branch
        %530 = sbr.rel (%p527) target = $region72
      $region71: #{tpu_custom_call.1} parent=5 // pred_region
        %s531 = ssub.s32 %s31, 1
        %s532 = sand.u32 %s58, 1
        %s533 = scalar_lea.sflag [#allocation3], %s532
        %s534 = sand.u32 %s58, 1
        %s535 = smul.addr %s534, 64
        %s536 = scalar_lea.vmem [#allocation2], %s535
        // Predicated region
        $region73: #{tpu_custom_call.1} parent=71 // pred_check
          %p537 = pneg %p71
        $region74: #{tpu_custom_call.1} parent=71 // pred_check_branch
          %539 = sbr.rel (%p537) target = $region76
        $region75: #{tpu_custom_call.1} parent=71 // pred_region
          %540 = dma.done %s533, 1024
        $region76: #{tpu_custom_call.1} parent=71 // pred_fallthru
          _
        %s541 = sand.u32 %s36, 1
        %s542 = scalar_lea.sflag [#allocation6], %s541
        %s543 = sand.u32 %s84, 1
        %s544 = smul.addr %s543, 64
        %s545 = scalar_lea.vmem [#allocation5], %s544
        // Predicated region
        $region77: #{tpu_custom_call.1} parent=71 // pred_check
          %p546 = pneg %p97
        $region78: #{tpu_custom_call.1} parent=71 // pred_check_branch
          %548 = sbr.rel (%p546) target = $region80
        $region79: #{tpu_custom_call.1} parent=71 // pred_region
          %549 = dma.done %s542, 1024
        $region80: #{tpu_custom_call.1} parent=71 // pred_fallthru
          _
        %s550 = sand.u32 %s36, 1
        %s551 = scalar_lea.sflag [#allocation6], %s550
        %s552 = sand.u32 %s110, 1
        %s553 = smul.addr %s552, 64
        %s554 = scalar_lea.vmem [#allocation7], %s553
        // Predicated region
        $region81: #{tpu_custom_call.1} parent=71 // pred_check
          %p555 = pneg %p123
        $region82: #{tpu_custom_call.1} parent=71 // pred_check_branch
          %557 = sbr.rel (%p555) target = $region84
        $region83: #{tpu_custom_call.1} parent=71 // pred_region
          %558 = dma.done %s551, 1024
        $region84: #{tpu_custom_call.1} parent=71 // pred_fallthru
          _
        // Predicated region
        $region85: #{tpu_custom_call.1} parent=71 // pred_check
          %p559 = pneg %p165
        $region86: #{tpu_custom_call.1} parent=71 // pred_check_branch
          %561 = sbr.rel (%p559) target = $region88
        $region87: #{tpu_custom_call.1} parent=71 // pred_region
          %562 = dma.done [#allocation9], 1024
        $region88: #{tpu_custom_call.1} parent=71 // pred_fallthru
          _
        // Predicated region
        $region89: #{tpu_custom_call.1} parent=71 // pred_check
          %p563 = pneg %p207
        $region90: #{tpu_custom_call.1} parent=71 // pred_check_branch
          %565 = sbr.rel (%p563) target = $region92
        $region91: #{tpu_custom_call.1} parent=71 // pred_region
          %566 = dma.done [#allocation9], 1024
        $region92: #{tpu_custom_call.1} parent=71 // pred_fallthru
          _
        // Predicated region
        $region93: #{tpu_custom_call.1} parent=71 // pred_check
          %p567 = pneg %p249
        $region94: #{tpu_custom_call.1} parent=71 // pred_check_branch
          %569 = sbr.rel (%p567) target = $region96
        $region95: #{tpu_custom_call.1} parent=71 // pred_region
          %570 = dma.done [#allocation12], 1024
        $region96: #{tpu_custom_call.1} parent=71 // pred_fallthru
          _
        // Predicated region
        $region97: #{tpu_custom_call.1} parent=71 // pred_check
          %p571 = pneg %p291
        $region98: #{tpu_custom_call.1} parent=71 // pred_check_branch
          %573 = sbr.rel (%p571) target = $region100
        $region99: #{tpu_custom_call.1} parent=71 // pred_region
          %574 = dma.done [#allocation12], 1024
        $region100: #{tpu_custom_call.1} parent=71 // pred_fallthru
          _
        // Predicated region
        $region101: #{tpu_custom_call.1} parent=71 // pred_check
          %p575 = pneg %p312
        $region102: #{tpu_custom_call.1} parent=71 // pred_check_branch
          %577 = sbr.rel (%p575) target = $region104
        $region103: #{tpu_custom_call.1} parent=71 // pred_region
          %578 = dma.done [#allocation15], 1024
        $region104: #{tpu_custom_call.1} parent=71 // pred_fallthru
          _
        %s579 = sand.u32 %s58, 1
        %s580 = scalar_lea.sflag [#allocation3], %s579
        %s581 = sand.u32 %s58, 1
        %s582 = smul.addr %s581, 64
        %s583 = scalar_lea.vmem [#allocation2], %s582
        %p584 = pneg %p71
        %p585 = pneg %p68
        %s586 = sand.u32 %s36, 1
        %s587 = scalar_lea.sflag [#allocation6], %s586
        %s588 = sand.u32 %s84, 1
        %s589 = smul.addr %s588, 64
        %s590 = scalar_lea.vmem [#allocation5], %s589
        %p591 = pneg %p97
        %p592 = pneg %p94
        %s593 = sand.u32 %s36, 1
        %s594 = scalar_lea.sflag [#allocation6], %s593
        %s595 = sand.u32 %s110, 1
        %s596 = smul.addr %s595, 64
        %s597 = scalar_lea.vmem [#allocation7], %s596
        %p598 = pneg %p123
        %p599 = pneg %p120
        %p600 = pneg %p144
        %p601 = pneg %p141
        %p602 = pneg %p165
        %p603 = pneg %p162
        %p604 = pneg %p186
        %p605 = pneg %p183
        %p606 = pneg %p207
        %p607 = pneg %p204
        %p608 = pneg %p228
        %p609 = pneg %p225
        %p610 = pneg %p249
        %p611 = pneg %p246
        %p612 = pneg %p270
        %p613 = pneg %p267
        %p614 = pneg %p291
        %p615 = pneg %p288
        %p616 = pneg %p312
        %p617 = pneg %p309
        %p618 = pneg %p333
        %p619 = pneg %p330
        %p620 = pneg %p361
        %p621 = pneg %p358
        %s622 = sand.u32 %s348, 1
        %s623 = scalar_lea.sflag [#allocation4], %s622
        %s624 = sand.u32 %s348, 1
        %s625 = smul.addr %s624, 64
        %s626 = scalar_lea.vmem [#allocation16], %s625
        %s627 = smul.u32 16, %s41
        %s628 = smul.u32 16, %s41
        %v630 = vld [vmem:[%s536] sm:$0xf]
        %v631 = vld [vmem:[%s536 + $0x4] sm:$0xf]
        %v632 = vld [vmem:[%s536 + $0x8] sm:$0xf]
        %v633 = vld [vmem:[%s536 + $0xc] sm:$0xf]
        %v634 = vld [vmem:[%s536 + $0x10] sm:$0xf]
        %v635 = vld [vmem:[%s536 + $0x14] sm:$0xf]
        %v636 = vld [vmem:[%s536 + $0x18] sm:$0xf]
        %v637 = vld [vmem:[%s536 + $0x1c] sm:$0xf]
        %v638 = vld [vmem:[%s536 + $0x20] sm:$0xf]
        %v639 = vld [vmem:[%s536 + $0x24] sm:$0xf]
        %v640 = vld [vmem:[%s536 + $0x28] sm:$0xf]
        %v641 = vld [vmem:[%s536 + $0x2c] sm:$0xf]
        %v642 = vld [vmem:[%s536 + $0x30] sm:$0xf]
        %v643 = vld [vmem:[%s536 + $0x34] sm:$0xf]
        %v644 = vld [vmem:[%s536 + $0x38] sm:$0xf]
        %v645 = vld [vmem:[%s536 + $0x3c] sm:$0xf]
        %v646 = vld [vmem:[%s545] sm:$0xf]
        %v647 = vld [vmem:[%s545 + $0x4] sm:$0xf]
        %v648 = vld [vmem:[%s545 + $0x8] sm:$0xf]
        %v649 = vld [vmem:[%s545 + $0xc] sm:$0xf]
        %v650 = vld [vmem:[%s545 + $0x10] sm:$0xf]
        %v651 = vld [vmem:[%s545 + $0x14] sm:$0xf]
        %v652 = vld [vmem:[%s545 + $0x18] sm:$0xf]
        %v653 = vld [vmem:[%s545 + $0x1c] sm:$0xf]
        %v654 = vld [vmem:[%s545 + $0x20] sm:$0xf]
        %v655 = vld [vmem:[%s545 + $0x24] sm:$0xf]
        %v656 = vld [vmem:[%s545 + $0x28] sm:$0xf]
        %v657 = vld [vmem:[%s545 + $0x2c] sm:$0xf]
        %v658 = vld [vmem:[%s545 + $0x30] sm:$0xf]
        %v659 = vld [vmem:[%s545 + $0x34] sm:$0xf]
        %v660 = vld [vmem:[%s545 + $0x38] sm:$0xf]
        %v661 = vld [vmem:[%s545 + $0x3c] sm:$0xf]
        %v662 = vld [vmem:[%s554] sm:$0xf]
        %v663 = vld [vmem:[%s554 + $0x4] sm:$0xf]
        %v664 = vld [vmem:[%s554 + $0x8] sm:$0xf]
        %v665 = vld [vmem:[%s554 + $0xc] sm:$0xf]
        %v666 = vld [vmem:[%s554 + $0x10] sm:$0xf]
        %v667 = vld [vmem:[%s554 + $0x14] sm:$0xf]
        %v668 = vld [vmem:[%s554 + $0x18] sm:$0xf]
        %v669 = vld [vmem:[%s554 + $0x1c] sm:$0xf]
        %v670 = vld [vmem:[%s554 + $0x20] sm:$0xf]
        %v671 = vld [vmem:[%s554 + $0x24] sm:$0xf]
        %v672 = vld [vmem:[%s554 + $0x28] sm:$0xf]
        %v673 = vld [vmem:[%s554 + $0x2c] sm:$0xf]
        %v674 = vld [vmem:[%s554 + $0x30] sm:$0xf]
        %v675 = vld [vmem:[%s554 + $0x34] sm:$0xf]
        %v676 = vld [vmem:[%s554 + $0x38] sm:$0xf]
        %v677 = vld [vmem:[%s554 + $0x3c] sm:$0xf]
        %v678 = vld [vmem:[#allocation8] sm:$0xf]
        %v679 = vld [vmem:[#allocation8 + $0x4] sm:$0xf]
        %v680 = vld [vmem:[#allocation8 + $0x8] sm:$0xf]
        %v681 = vld [vmem:[#allocation8 + $0xc] sm:$0xf]
        %v682 = vld [vmem:[#allocation8 + $0x10] sm:$0xf]
        %v683 = vld [vmem:[#allocation8 + $0x14] sm:$0xf]
        %v684 = vld [vmem:[#allocation8 + $0x18] sm:$0xf]
        %v685 = vld [vmem:[#allocation8 + $0x1c] sm:$0xf]
        %v686 = vld [vmem:[#allocation8 + $0x20] sm:$0xf]
        %v687 = vld [vmem:[#allocation8 + $0x24] sm:$0xf]
        %v688 = vld [vmem:[#allocation8 + $0x28] sm:$0xf]
        %v689 = vld [vmem:[#allocation8 + $0x2c] sm:$0xf]
        %v690 = vld [vmem:[#allocation8 + $0x30] sm:$0xf]
        %v691 = vld [vmem:[#allocation8 + $0x34] sm:$0xf]
        %v692 = vld [vmem:[#allocation8 + $0x38] sm:$0xf]
        %v693 = vld [vmem:[#allocation8 + $0x3c] sm:$0xf]
        %v694 = vld [vmem:[%s5] sm:$0x1]
        %v696 = vlaneseq
        %v697 = vshrl.u32 %v696, 7
        %v698 = vsub.s32 0, %v697
        %v699 = vrot.slane %v694, %v698
        %v717 = vunpack.c.l.b16 %v630
        %v718 = vunpack.c.l.b16 %v631
        %v719 = vunpack.c.l.b16 %v632
        %v720 = vunpack.c.l.b16 %v633
        %v721 = vunpack.c.l.b16 %v634
        %v722 = vunpack.c.l.b16 %v635
        %v723 = vunpack.c.l.b16 %v636
        %v724 = vunpack.c.l.b16 %v637
        %v725 = vunpack.c.l.b16 %v638
        %v726 = vunpack.c.l.b16 %v639
        %v727 = vunpack.c.l.b16 %v640
        %v728 = vunpack.c.l.b16 %v641
        %v729 = vunpack.c.l.b16 %v642
        %v730 = vunpack.c.l.b16 %v643
        %v731 = vunpack.c.l.b16 %v644
        %v732 = vunpack.c.l.b16 %v645
        %v733 = vpack.c.b16 %v718, %v717
        %v734 = vpack.c.b16 %v720, %v719
        %v735 = vpack.c.b16 %v722, %v721
        %v736 = vpack.c.b16 %v724, %v723
        %v737 = vpack.c.b16 %v726, %v725
        %v738 = vpack.c.b16 %v728, %v727
        %v739 = vpack.c.b16 %v730, %v729
        %v740 = vpack.c.b16 %v732, %v731
        %v765 = vunpack.c.l.b16 %v678
        %v766 = vunpack.c.l.b16 %v679
        %v767 = vunpack.c.l.b16 %v680
        %v768 = vunpack.c.l.b16 %v681
        %v769 = vunpack.c.l.b16 %v682
        %v770 = vunpack.c.l.b16 %v683
        %v771 = vunpack.c.l.b16 %v684
        %v772 = vunpack.c.l.b16 %v685
        %v773 = vunpack.c.l.b16 %v686
        %v774 = vunpack.c.l.b16 %v687
        %v775 = vunpack.c.l.b16 %v688
        %v776 = vunpack.c.l.b16 %v689
        %v777 = vunpack.c.l.b16 %v690
        %v778 = vunpack.c.l.b16 %v691
        %v779 = vunpack.c.l.b16 %v692
        %v780 = vunpack.c.l.b16 %v693
        %v781 = vpack.c.b16 %v766, %v765
        %v782 = vpack.c.b16 %v768, %v767
        %v783 = vpack.c.b16 %v770, %v769
        %v784 = vpack.c.b16 %v772, %v771
        %v785 = vpack.c.b16 %v774, %v773
        %v786 = vpack.c.b16 %v776, %v775
        %v787 = vpack.c.b16 %v778, %v777
        %v788 = vpack.c.b16 %v780, %v779
        %797 = vmatprep.subr.bf16.mxu0 0
        %798 = vmatpush1.bf16.msra.mxu0 %v781
        %799 = vmatprep.subr.bf16.mxu0 0
        %800 = vmatpush1.bf16.msra.mxu0 %v782
        %801 = vmatprep.subr.bf16.mxu0 0
        %802 = vmatpush1.bf16.msra.mxu0 %v783
        %803 = vmatprep.subr.bf16.mxu0 0
        %804 = vmatpush1.bf16.msra.mxu0 %v784
        %805 = vmatprep.subr.bf16.mxu0 0
        %806 = vmatpush1.bf16.msra.mxu0 %v785
        %807 = vmatprep.subr.bf16.mxu0 0
        %808 = vmatpush1.bf16.msra.mxu0 %v786
        %809 = vmatprep.subr.bf16.mxu0 0
        %810 = vmatpush1.bf16.msra.mxu0 %v787
        %811 = vmatprep.subr.bf16.mxu0 0
        %812 = vmatpush1.bf16.msra.mxu0 %v788
        %813 = vmatprep.subr.bf16.mxu0 0
        %814 = vmatpush1.bf16.msra.mxu0 0
        %815 = vmatprep.subr.bf16.mxu0 0
        %816 = vmatpush1.bf16.msra.mxu0 0
        %817 = vmatprep.subr.bf16.mxu0 0
        %818 = vmatpush1.bf16.msra.mxu0 0
        %819 = vmatprep.subr.bf16.mxu0 0
        %820 = vmatpush1.bf16.msra.mxu0 0
        %821 = vmatprep.subr.bf16.mxu0 0
        %822 = vmatpush1.bf16.msra.mxu0 0
        %823 = vmatprep.subr.bf16.mxu0 0
        %824 = vmatpush1.bf16.msra.mxu0 0
        %825 = vmatprep.subr.bf16.mxu0 0
        %826 = vmatpush1.bf16.msra.mxu0 0
        %827 = vmatprep.subr.bf16.mxu0 0
        %828 = vmatpush1.bf16.msra.mxu0 0
        %829 = vmatprep.mubr.bf16.mxu0 0
        %830 = vmatmul.mubr.bf16.gmra.mrb[0].mxu0 %v733
        %v831 = vpop.f32.mrb[0].mxu0
        %v832 = vadd.f32 %v699, %v831
        %v833 = vpop.f32.mrb[0].mxu0
        %v834 = vpop.f32.mrb[0].mxu0
        %v835 = vadd.f32 %v699, %v834
        %v836 = vpop.f32.mrb[0].mxu0
        %837 = vmatprep.mubr.bf16.mxu0 0
        %838 = vmatmul.mubr.bf16.gmra.mrb[0].mxu0 %v734
        %v839 = vpop.f32.mrb[0].mxu0
        %v840 = vadd.f32 %v699, %v839
        %v841 = vpop.f32.mrb[0].mxu0
        %v842 = vpop.f32.mrb[0].mxu0
        %v843 = vadd.f32 %v699, %v842
        %v844 = vpop.f32.mrb[0].mxu0
        %845 = vmatprep.mubr.bf16.mxu0 0
        %846 = vmatmul.mubr.bf16.gmra.mrb[0].mxu0 %v735
        %v847 = vpop.f32.mrb[0].mxu0
        %v848 = vadd.f32 %v699, %v847
        %v849 = vpop.f32.mrb[0].mxu0
        %v850 = vpop.f32.mrb[0].mxu0
        %v851 = vadd.f32 %v699, %v850
        %v852 = vpop.f32.mrb[0].mxu0
        %853 = vmatprep.mubr.bf16.mxu0 0
        %854 = vmatmul.mubr.bf16.gmra.mrb[0].mxu0 %v736
        %v855 = vpop.f32.mrb[0].mxu0
        %v856 = vadd.f32 %v699, %v855
        %v857 = vpop.f32.mrb[0].mxu0
        %v858 = vpop.f32.mrb[0].mxu0
        %v859 = vadd.f32 %v699, %v858
        %v860 = vpop.f32.mrb[0].mxu0
        %861 = vmatprep.mubr.bf16.mxu0 0
        %862 = vmatmul.mubr.bf16.gmra.mrb[0].mxu0 %v737
        %v863 = vpop.f32.mrb[0].mxu0
        %v864 = vadd.f32 %v699, %v863
        %v865 = vpop.f32.mrb[0].mxu0
        %v866 = vpop.f32.mrb[0].mxu0
        %v867 = vadd.f32 %v699, %v866
        %v868 = vpop.f32.mrb[0].mxu0
        %869 = vmatprep.mubr.bf16.mxu0 0
        %870 = vmatmul.mubr.bf16.gmra.mrb[0].mxu0 %v738
        %v871 = vpop.f32.mrb[0].mxu0
        %v872 = vadd.f32 %v699, %v871
        %v873 = vpop.f32.mrb[0].mxu0
        %v874 = vpop.f32.mrb[0].mxu0
        %v875 = vadd.f32 %v699, %v874
        %v876 = vpop.f32.mrb[0].mxu0
        %877 = vmatprep.mubr.bf16.mxu0 0
        %878 = vmatmul.mubr.bf16.gmra.mrb[0].mxu0 %v739
        %v879 = vpop.f32.mrb[0].mxu0
        %v880 = vadd.f32 %v699, %v879
        %v881 = vpop.f32.mrb[0].mxu0
        %v882 = vpop.f32.mrb[0].mxu0
        %v883 = vadd.f32 %v699, %v882
        %v884 = vpop.f32.mrb[0].mxu0
        %885 = vmatprep.mubr.bf16.mxu0 0
        %886 = vmatmul.mubr.bf16.gmra.mrb[0].mxu0 %v740
        %v887 = vpop.f32.mrb[0].mxu0
        %v888 = vadd.f32 %v699, %v887
        %v889 = vpop.f32.mrb[0].mxu0
        %v890 = vpop.f32.mrb[0].mxu0
        %v891 = vadd.f32 %v699, %v890
        %v892 = vpop.f32.mrb[0].mxu0
        %893 = vdwg.mxu0
        %v894 = vmax.f32 %v832, 0.0
        %v895 = vmax.f32 %v835, 0.0
        %v896 = vmax.f32 %v840, 0.0
        %v897 = vmax.f32 %v843, 0.0
        %v898 = vmax.f32 %v848, 0.0
        %v899 = vmax.f32 %v851, 0.0
        %v900 = vmax.f32 %v856, 0.0
        %v901 = vmax.f32 %v859, 0.0
        %v902 = vmax.f32 %v864, 0.0
        %v903 = vmax.f32 %v867, 0.0
        %v904 = vmax.f32 %v872, 0.0
        %v905 = vmax.f32 %v875, 0.0
        %v906 = vmax.f32 %v880, 0.0
        %v907 = vmax.f32 %v883, 0.0
        %v908 = vmax.f32 %v888, 0.0
        %v909 = vmax.f32 %v891, 0.0
        %v910 = vpack.c.bf16 %v895, %v894
        %v911 = vpack.c.bf16 %v897, %v896
        %v912 = vpack.c.bf16 %v899, %v898
        %v913 = vpack.c.bf16 %v901, %v900
        %v914 = vpack.c.bf16 %v903, %v902
        %v915 = vpack.c.bf16 %v905, %v904
        %v916 = vpack.c.bf16 %v907, %v906
        %v917 = vpack.c.bf16 %v909, %v908
        %v918 = vld [vmem:[#allocation10] sm:$0xf]
        %v919 = vld [vmem:[#allocation10 + $0x4] sm:$0xf]
        %v920 = vld [vmem:[#allocation10 + $0x8] sm:$0xf]
        %v921 = vld [vmem:[#allocation10 + $0xc] sm:$0xf]
        %v922 = vld [vmem:[#allocation10 + $0x10] sm:$0xf]
        %v923 = vld [vmem:[#allocation10 + $0x14] sm:$0xf]
        %v924 = vld [vmem:[#allocation10 + $0x18] sm:$0xf]
        %v925 = vld [vmem:[#allocation10 + $0x1c] sm:$0xf]
        %v926 = vld [vmem:[#allocation10 + $0x20] sm:$0xf]
        %v927 = vld [vmem:[#allocation10 + $0x24] sm:$0xf]
        %v928 = vld [vmem:[#allocation10 + $0x28] sm:$0xf]
        %v929 = vld [vmem:[#allocation10 + $0x2c] sm:$0xf]
        %v930 = vld [vmem:[#allocation10 + $0x30] sm:$0xf]
        %v931 = vld [vmem:[#allocation10 + $0x34] sm:$0xf]
        %v932 = vld [vmem:[#allocation10 + $0x38] sm:$0xf]
        %v933 = vld [vmem:[#allocation10 + $0x3c] sm:$0xf]
        %v934 = vld [vmem:[%s7] sm:$0x1]
        %v936 = vlaneseq
        %v937 = vshrl.u32 %v936, 7
        %v938 = vsub.s32 0, %v937
        %v939 = vrot.slane %v934, %v938
        %v957 = vunpack.c.l.b16 %v918
        %v958 = vunpack.c.l.b16 %v919
        %v959 = vunpack.c.l.b16 %v920
        %v960 = vunpack.c.l.b16 %v921
        %v961 = vunpack.c.l.b16 %v922
        %v962 = vunpack.c.l.b16 %v923
        %v963 = vunpack.c.l.b16 %v924
        %v964 = vunpack.c.l.b16 %v925
        %v965 = vunpack.c.l.b16 %v926
        %v966 = vunpack.c.l.b16 %v927
        %v967 = vunpack.c.l.b16 %v928
        %v968 = vunpack.c.l.b16 %v929
        %v969 = vunpack.c.l.b16 %v930
        %v970 = vunpack.c.l.b16 %v931
        %v971 = vunpack.c.l.b16 %v932
        %v972 = vunpack.c.l.b16 %v933
        %v973 = vpack.c.b16 %v958, %v957
        %v974 = vpack.c.b16 %v960, %v959
        %v975 = vpack.c.b16 %v962, %v961
        %v976 = vpack.c.b16 %v964, %v963
        %v977 = vpack.c.b16 %v966, %v965
        %v978 = vpack.c.b16 %v968, %v967
        %v979 = vpack.c.b16 %v970, %v969
        %v980 = vpack.c.b16 %v972, %v971
        %989 = vmatprep.subr.bf16.mxu0 0
        %990 = vmatpush1.bf16.msra.mxu0 %v973
        %991 = vmatprep.subr.bf16.mxu0 0
        %992 = vmatpush1.bf16.msra.mxu0 %v974
        %993 = vmatprep.subr.bf16.mxu0 0
        %994 = vmatpush1.bf16.msra.mxu0 %v975
        %995 = vmatprep.subr.bf16.mxu0 0
        %996 = vmatpush1.bf16.msra.mxu0 %v976
        %997 = vmatprep.subr.bf16.mxu0 0
        %998 = vmatpush1.bf16.msra.mxu0 %v977
        %999 = vmatprep.subr.bf16.mxu0 0
        %1000 = vmatpush1.bf16.msra.mxu0 %v978
        %1001 = vmatprep.subr.bf16.mxu0 0
        %1002 = vmatpush1.bf16.msra.mxu0 %v979
        %1003 = vmatprep.subr.bf16.mxu0 0
        %1004 = vmatpush1.bf16.msra.mxu0 %v980
        %1005 = vmatprep.subr.bf16.mxu0 0
        %1006 = vmatpush1.bf16.msra.mxu0 0
        %1007 = vmatprep.subr.bf16.mxu0 0
        %1008 = vmatpush1.bf16.msra.mxu0 0
        %1009 = vmatprep.subr.bf16.mxu0 0
        %1010 = vmatpush1.bf16.msra.mxu0 0
        %1011 = vmatprep.subr.bf16.mxu0 0
        %1012 = vmatpush1.bf16.msra.mxu0 0
        %1013 = vmatprep.subr.bf16.mxu0 0
        %1014 = vmatpush1.bf16.msra.mxu0 0
        %1015 = vmatprep.subr.bf16.mxu0 0
        %1016 = vmatpush1.bf16.msra.mxu0 0
        %1017 = vmatprep.subr.bf16.mxu0 0
        %1018 = vmatpush1.bf16.msra.mxu0 0
        %1019 = vmatprep.subr.bf16.mxu0 0
        %1020 = vmatpush1.bf16.msra.mxu0 0
        %1021 = vmatprep.mubr.bf16.mxu0 0
        %1022 = vmatmul.mubr.bf16.gmra.mrb[0].mxu0 %v910
        %v1023 = vpop.f32.mrb[0].mxu0
        %v1024 = vadd.f32 %v939, %v1023
        %v1025 = vpop.f32.mrb[0].mxu0
        %v1026 = vpop.f32.mrb[0].mxu0
        %v1027 = vadd.f32 %v939, %v1026
        %v1028 = vpop.f32.mrb[0].mxu0
        %1029 = vmatprep.mubr.bf16.mxu0 0
        %1030 = vmatmul.mubr.bf16.gmra.mrb[0].mxu0 %v911
        %v1031 = vpop.f32.mrb[0].mxu0
        %v1032 = vadd.f32 %v939, %v1031
        %v1033 = vpop.f32.mrb[0].mxu0
        %v1034 = vpop.f32.mrb[0].mxu0
        %v1035 = vadd.f32 %v939, %v1034
        %v1036 = vpop.f32.mrb[0].mxu0
        %1037 = vmatprep.mubr.bf16.mxu0 0
        %1038 = vmatmul.mubr.bf16.gmra.mrb[0].mxu0 %v912
        %v1039 = vpop.f32.mrb[0].mxu0
        %v1040 = vadd.f32 %v939, %v1039
        %v1041 = vpop.f32.mrb[0].mxu0
        %v1042 = vpop.f32.mrb[0].mxu0
        %v1043 = vadd.f32 %v939, %v1042
        %v1044 = vpop.f32.mrb[0].mxu0
        %1045 = vmatprep.mubr.bf16.mxu0 0
        %1046 = vmatmul.mubr.bf16.gmra.mrb[0].mxu0 %v913
        %v1047 = vpop.f32.mrb[0].mxu0
        %v1048 = vadd.f32 %v939, %v1047
        %v1049 = vpop.f32.mrb[0].mxu0
        %v1050 = vpop.f32.mrb[0].mxu0
        %v1051 = vadd.f32 %v939, %v1050
        %v1052 = vpop.f32.mrb[0].mxu0
        %1053 = vmatprep.mubr.bf16.mxu0 0
        %1054 = vmatmul.mubr.bf16.gmra.mrb[0].mxu0 %v914
        %v1055 = vpop.f32.mrb[0].mxu0
        %v1056 = vadd.f32 %v939, %v1055
        %v1057 = vpop.f32.mrb[0].mxu0
        %v1058 = vpop.f32.mrb[0].mxu0
        %v1059 = vadd.f32 %v939, %v1058
        %v1060 = vpop.f32.mrb[0].mxu0
        %1061 = vmatprep.mubr.bf16.mxu0 0
        %1062 = vmatmul.mubr.bf16.gmra.mrb[0].mxu0 %v915
        %v1063 = vpop.f32.mrb[0].mxu0
        %v1064 = vadd.f32 %v939, %v1063
        %v1065 = vpop.f32.mrb[0].mxu0
        %v1066 = vpop.f32.mrb[0].mxu0
        %v1067 = vadd.f32 %v939, %v1066
        %v1068 = vpop.f32.mrb[0].mxu0
        %1069 = vmatprep.mubr.bf16.mxu0 0
        %1070 = vmatmul.mubr.bf16.gmra.mrb[0].mxu0 %v916
        %v1071 = vpop.f32.mrb[0].mxu0
        %v1072 = vadd.f32 %v939, %v1071
        %v1073 = vpop.f32.mrb[0].mxu0
        %v1074 = vpop.f32.mrb[0].mxu0
        %v1075 = vadd.f32 %v939, %v1074
        %v1076 = vpop.f32.mrb[0].mxu0
        %1077 = vmatprep.mubr.bf16.mxu0 0
        %1078 = vmatmul.mubr.bf16.gmra.mrb[0].mxu0 %v917
        %v1079 = vpop.f32.mrb[0].mxu0
        %v1080 = vadd.f32 %v939, %v1079
        %v1081 = vpop.f32.mrb[0].mxu0
        %v1082 = vpop.f32.mrb[0].mxu0
        %v1083 = vadd.f32 %v939, %v1082
        %v1084 = vpop.f32.mrb[0].mxu0
        %1085 = vdwg.mxu0
        %v1086 = vmax.f32 %v1024, 0.0
        %v1087 = vmax.f32 %v1027, 0.0
        %v1088 = vmax.f32 %v1032, 0.0
        %v1089 = vmax.f32 %v1035, 0.0
        %v1090 = vmax.f32 %v1040, 0.0
        %v1091 = vmax.f32 %v1043, 0.0
        %v1092 = vmax.f32 %v1048, 0.0
        %v1093 = vmax.f32 %v1051, 0.0
        %v1094 = vmax.f32 %v1056, 0.0
        %v1095 = vmax.f32 %v1059, 0.0
        %v1096 = vmax.f32 %v1064, 0.0
        %v1097 = vmax.f32 %v1067, 0.0
        %v1098 = vmax.f32 %v1072, 0.0
        %v1099 = vmax.f32 %v1075, 0.0
        %v1100 = vmax.f32 %v1080, 0.0
        %v1101 = vmax.f32 %v1083, 0.0
        %v1102 = vpack.c.bf16 %v1087, %v1086
        %v1103 = vpack.c.bf16 %v1089, %v1088
        %v1104 = vpack.c.bf16 %v1091, %v1090
        %v1105 = vpack.c.bf16 %v1093, %v1092
        %v1106 = vpack.c.bf16 %v1095, %v1094
        %v1107 = vpack.c.bf16 %v1097, %v1096
        %v1108 = vpack.c.bf16 %v1099, %v1098
        %v1109 = vpack.c.bf16 %v1101, %v1100
        %v1110 = vld [vmem:[%s3] sm:$0x1]
        %v1112 = vlaneseq
        %v1113 = vshrl.u32 %v1112, 7
        %v1114 = vsub.s32 0, %v1113
        %v1115 = vrot.slane %v1110, %v1114
        %v1133 = vunpack.c.l.b16 %v646
        %v1134 = vunpack.c.l.b16 %v647
        %v1135 = vunpack.c.l.b16 %v648
        %v1136 = vunpack.c.l.b16 %v649
        %v1137 = vunpack.c.l.b16 %v650
        %v1138 = vunpack.c.l.b16 %v651
        %v1139 = vunpack.c.l.b16 %v652
        %v1140 = vunpack.c.l.b16 %v653
        %v1141 = vunpack.c.l.b16 %v654
        %v1142 = vunpack.c.l.b16 %v655
        %v1143 = vunpack.c.l.b16 %v656
        %v1144 = vunpack.c.l.b16 %v657
        %v1145 = vunpack.c.l.b16 %v658
        %v1146 = vunpack.c.l.b16 %v659
        %v1147 = vunpack.c.l.b16 %v660
        %v1148 = vunpack.c.l.b16 %v661
        %v1149 = vpack.c.b16 %v1134, %v1133
        %v1150 = vpack.c.b16 %v1136, %v1135
        %v1151 = vpack.c.b16 %v1138, %v1137
        %v1152 = vpack.c.b16 %v1140, %v1139
        %v1153 = vpack.c.b16 %v1142, %v1141
        %v1154 = vpack.c.b16 %v1144, %v1143
        %v1155 = vpack.c.b16 %v1146, %v1145
        %v1156 = vpack.c.b16 %v1148, %v1147
        %1165 = vmatprep.subr.bf16.mxu0 0
        %1166 = vmatpush1.bf16.xpose.msra.mxu0 %v1149
        %1167 = vmatprep.subr.bf16.mxu0 0
        %1168 = vmatpush1.bf16.xpose.msra.mxu0 %v1150
        %1169 = vmatprep.subr.bf16.mxu0 0
        %1170 = vmatpush1.bf16.xpose.msra.mxu0 %v1151
        %1171 = vmatprep.subr.bf16.mxu0 0
        %1172 = vmatpush1.bf16.xpose.msra.mxu0 %v1152
        %1173 = vmatprep.subr.bf16.mxu0 0
        %1174 = vmatpush1.bf16.xpose.msra.mxu0 %v1153
        %1175 = vmatprep.subr.bf16.mxu0 0
        %1176 = vmatpush1.bf16.xpose.msra.mxu0 %v1154
        %1177 = vmatprep.subr.bf16.mxu0 0
        %1178 = vmatpush1.bf16.xpose.msra.mxu0 %v1155
        %1179 = vmatprep.subr.bf16.mxu0 0
        %1180 = vmatpush1.bf16.xpose.msra.mxu0 %v1156
        %1181 = vmatprep.subr.bf16.mxu0 0
        %1182 = vmatpush1.bf16.xpose.msra.mxu0 0
        %1183 = vmatprep.subr.bf16.mxu0 0
        %1184 = vmatpush1.bf16.xpose.msra.mxu0 0
        %1185 = vmatprep.subr.bf16.mxu0 0
        %1186 = vmatpush1.bf16.xpose.msra.mxu0 0
        %1187 = vmatprep.subr.bf16.mxu0 0
        %1188 = vmatpush1.bf16.xpose.msra.mxu0 0
        %1189 = vmatprep.subr.bf16.mxu0 0
        %1190 = vmatpush1.bf16.xpose.msra.mxu0 0
        %1191 = vmatprep.subr.bf16.mxu0 0
        %1192 = vmatpush1.bf16.xpose.msra.mxu0 0
        %1193 = vmatprep.subr.bf16.mxu0 0
        %1194 = vmatpush1.bf16.xpose.msra.mxu0 0
        %1195 = vmatprep.subr.bf16.mxu0 0
        %1196 = vmatpush1.bf16.xpose.msra.mxu0 0
        %1197 = vmatprep.mubr.bf16.mxu0 0
        %1198 = vmatmul.mubr.bf16.gmra.mrb[0].mxu0 %v1102
        %v1199 = vpop.f32.mrb[0].mxu0
        %v1200 = vadd.f32 %v1115, %v1199
        %v1201 = vpop.f32.mrb[0].mxu0
        %v1202 = vpop.f32.mrb[0].mxu0
        %v1203 = vadd.f32 %v1115, %v1202
        %v1204 = vpop.f32.mrb[0].mxu0
        %1205 = vmatprep.mubr.bf16.mxu0 0
        %1206 = vmatmul.mubr.bf16.gmra.mrb[0].mxu0 %v1103
        %v1207 = vpop.f32.mrb[0].mxu0
        %v1208 = vadd.f32 %v1115, %v1207
        %v1209 = vpop.f32.mrb[0].mxu0
        %v1210 = vpop.f32.mrb[0].mxu0
        %v1211 = vadd.f32 %v1115, %v1210
        %v1212 = vpop.f32.mrb[0].mxu0
        %1213 = vmatprep.mubr.bf16.mxu0 0
        %1214 = vmatmul.mubr.bf16.gmra.mrb[0].mxu0 %v1104
        %v1215 = vpop.f32.mrb[0].mxu0
        %v1216 = vadd.f32 %v1115, %v1215
        %v1217 = vpop.f32.mrb[0].mxu0
        %v1218 = vpop.f32.mrb[0].mxu0
        %v1219 = vadd.f32 %v1115, %v1218
        %v1220 = vpop.f32.mrb[0].mxu0
        %1221 = vmatprep.mubr.bf16.mxu0 0
        %1222 = vmatmul.mubr.bf16.gmra.mrb[0].mxu0 %v1105
        %v1223 = vpop.f32.mrb[0].mxu0
        %v1224 = vadd.f32 %v1115, %v1223
        %v1225 = vpop.f32.mrb[0].mxu0
        %v1226 = vpop.f32.mrb[0].mxu0
        %v1227 = vadd.f32 %v1115, %v1226
        %v1228 = vpop.f32.mrb[0].mxu0
        %1229 = vmatprep.mubr.bf16.mxu0 0
        %1230 = vmatmul.mubr.bf16.gmra.mrb[0].mxu0 %v1106
        %v1231 = vpop.f32.mrb[0].mxu0
        %v1232 = vadd.f32 %v1115, %v1231
        %v1233 = vpop.f32.mrb[0].mxu0
        %v1234 = vpop.f32.mrb[0].mxu0
        %v1235 = vadd.f32 %v1115, %v1234
        %v1236 = vpop.f32.mrb[0].mxu0
        %1237 = vmatprep.mubr.bf16.mxu0 0
        %1238 = vmatmul.mubr.bf16.gmra.mrb[0].mxu0 %v1107
        %v1239 = vpop.f32.mrb[0].mxu0
        %v1240 = vadd.f32 %v1115, %v1239
        %v1241 = vpop.f32.mrb[0].mxu0
        %v1242 = vpop.f32.mrb[0].mxu0
        %v1243 = vadd.f32 %v1115, %v1242
        %v1244 = vpop.f32.mrb[0].mxu0
        %1245 = vmatprep.mubr.bf16.mxu0 0
        %1246 = vmatmul.mubr.bf16.gmra.mrb[0].mxu0 %v1108
        %v1247 = vpop.f32.mrb[0].mxu0
        %v1248 = vadd.f32 %v1115, %v1247
        %v1249 = vpop.f32.mrb[0].mxu0
        %v1250 = vpop.f32.mrb[0].mxu0
        %v1251 = vadd.f32 %v1115, %v1250
        %v1252 = vpop.f32.mrb[0].mxu0
        %1253 = vmatprep.mubr.bf16.mxu0 0
        %1254 = vmatmul.mubr.bf16.gmra.mrb[0].mxu0 %v1109
        %v1255 = vpop.f32.mrb[0].mxu0
        %v1256 = vadd.f32 %v1115, %v1255
        %v1257 = vpop.f32.mrb[0].mxu0
        %v1258 = vpop.f32.mrb[0].mxu0
        %v1259 = vadd.f32 %v1115, %v1258
        %v1260 = vpop.f32.mrb[0].mxu0
        %1261 = vdwg.mxu0
        %1262 = vmax.xlane.f32.xlu0 %v1200
        %v1263 = vpop.xlane.xlu0 %1262
        %1264 = vmax.xlane.f32.xlu0 %v1203
        %v1265 = vpop.xlane.xlu0 %1264
        %1266 = vmax.xlane.f32.xlu0 %v1208
        %v1267 = vpop.xlane.xlu0 %1266
        %1268 = vmax.xlane.f32.xlu0 %v1211
        %v1269 = vpop.xlane.xlu0 %1268
        %1270 = vmax.xlane.f32.xlu0 %v1216
        %v1271 = vpop.xlane.xlu0 %1270
        %1272 = vmax.xlane.f32.xlu0 %v1219
        %v1273 = vpop.xlane.xlu0 %1272
        %1274 = vmax.xlane.f32.xlu0 %v1224
        %v1275 = vpop.xlane.xlu0 %1274
        %1276 = vmax.xlane.f32.xlu0 %v1227
        %v1277 = vpop.xlane.xlu0 %1276
        %1278 = vmax.xlane.f32.xlu0 %v1232
        %v1279 = vpop.xlane.xlu0 %1278
        %1280 = vmax.xlane.f32.xlu0 %v1235
        %v1281 = vpop.xlane.xlu0 %1280
        %1282 = vmax.xlane.f32.xlu0 %v1240
        %v1283 = vpop.xlane.xlu0 %1282
        %1284 = vmax.xlane.f32.xlu0 %v1243
        %v1285 = vpop.xlane.xlu0 %1284
        %1286 = vmax.xlane.f32.xlu0 %v1248
        %v1287 = vpop.xlane.xlu0 %1286
        %1288 = vmax.xlane.f32.xlu0 %v1251
        %v1289 = vpop.xlane.xlu0 %1288
        %1290 = vmax.xlane.f32.xlu0 %v1256
        %v1291 = vpop.xlane.xlu0 %1290
        %1292 = vmax.xlane.f32.xlu0 %v1259
        %v1293 = vpop.xlane.xlu0 %1292
        %v1294 = vsub.f32 %v1200, %v1263
        %v1295 = vsub.f32 %v1203, %v1265
        %v1296 = vsub.f32 %v1208, %v1267
        %v1297 = vsub.f32 %v1211, %v1269
        %v1298 = vsub.f32 %v1216, %v1271
        %v1299 = vsub.f32 %v1219, %v1273
        %v1300 = vsub.f32 %v1224, %v1275
        %v1301 = vsub.f32 %v1227, %v1277
        %v1302 = vsub.f32 %v1232, %v1279
        %v1303 = vsub.f32 %v1235, %v1281
        %v1304 = vsub.f32 %v1240, %v1283
        %v1305 = vsub.f32 %v1243, %v1285
        %v1306 = vsub.f32 %v1248, %v1287
        %v1307 = vsub.f32 %v1251, %v1289
        %v1308 = vsub.f32 %v1256, %v1291
        %v1309 = vsub.f32 %v1259, %v1293
        %v1310 = vmul.f32 %v1294, 1.442695
        %v1311 = vpow.pop %v1310
        %v1312 = vmul.f32 %v1295, 1.442695
        %v1313 = vpow.pop %v1312
        %v1314 = vmul.f32 %v1296, 1.442695
        %v1315 = vpow.pop %v1314
        %v1316 = vmul.f32 %v1297, 1.442695
        %v1317 = vpow.pop %v1316
        %v1318 = vmul.f32 %v1298, 1.442695
        %v1319 = vpow.pop %v1318
        %v1320 = vmul.f32 %v1299, 1.442695
        %v1321 = vpow.pop %v1320
        %v1322 = vmul.f32 %v1300, 1.442695
        %v1323 = vpow.pop %v1322
        %v1324 = vmul.f32 %v1301, 1.442695
        %v1325 = vpow.pop %v1324
        %v1326 = vmul.f32 %v1302, 1.442695
        %v1327 = vpow.pop %v1326
        %v1328 = vmul.f32 %v1303, 1.442695
        %v1329 = vpow.pop %v1328
        %v1330 = vmul.f32 %v1304, 1.442695
        %v1331 = vpow.pop %v1330
        %v1332 = vmul.f32 %v1305, 1.442695
        %v1333 = vpow.pop %v1332
        %v1334 = vmul.f32 %v1306, 1.442695
        %v1335 = vpow.pop %v1334
        %v1336 = vmul.f32 %v1307, 1.442695
        %v1337 = vpow.pop %v1336
        %v1338 = vmul.f32 %v1308, 1.442695
        %v1339 = vpow.pop %v1338
        %v1340 = vmul.f32 %v1309, 1.442695
        %v1341 = vpow.pop %v1340
        %1342 = vadd.xlane.f32.xlu0 %v1311
        %v1343 = vpop.xlane.xlu0 %1342
        %1344 = vadd.xlane.f32.xlu0 %v1313
        %v1345 = vpop.xlane.xlu0 %1344
        %1346 = vadd.xlane.f32.xlu0 %v1315
        %v1347 = vpop.xlane.xlu0 %1346
        %1348 = vadd.xlane.f32.xlu0 %v1317
        %v1349 = vpop.xlane.xlu0 %1348
        %1350 = vadd.xlane.f32.xlu0 %v1319
        %v1351 = vpop.xlane.xlu0 %1350
        %1352 = vadd.xlane.f32.xlu0 %v1321
        %v1353 = vpop.xlane.xlu0 %1352
        %1354 = vadd.xlane.f32.xlu0 %v1323
        %v1355 = vpop.xlane.xlu0 %1354
        %1356 = vadd.xlane.f32.xlu0 %v1325
        %v1357 = vpop.xlane.xlu0 %1356
        %1358 = vadd.xlane.f32.xlu0 %v1327
        %v1359 = vpop.xlane.xlu0 %1358
        %1360 = vadd.xlane.f32.xlu0 %v1329
        %v1361 = vpop.xlane.xlu0 %1360
        %1362 = vadd.xlane.f32.xlu0 %v1331
        %v1363 = vpop.xlane.xlu0 %1362
        %1364 = vadd.xlane.f32.xlu0 %v1333
        %v1365 = vpop.xlane.xlu0 %1364
        %1366 = vadd.xlane.f32.xlu0 %v1335
        %v1367 = vpop.xlane.xlu0 %1366
        %1368 = vadd.xlane.f32.xlu0 %v1337
        %v1369 = vpop.xlane.xlu0 %1368
        %1370 = vadd.xlane.f32.xlu0 %v1339
        %v1371 = vpop.xlane.xlu0 %1370
        %1372 = vadd.xlane.f32.xlu0 %v1341
        %v1373 = vpop.xlane.xlu0 %1372
        %v1374 = vrcp.pop %v1343
        %v1375 = vrcp.pop %v1345
        %v1376 = vrcp.pop %v1347
        %v1377 = vrcp.pop %v1349
        %v1378 = vrcp.pop %v1351
        %v1379 = vrcp.pop %v1353
        %v1380 = vrcp.pop %v1355
        %v1381 = vrcp.pop %v1357
        %v1382 = vrcp.pop %v1359
        %v1383 = vrcp.pop %v1361
        %v1384 = vrcp.pop %v1363
        %v1385 = vrcp.pop %v1365
        %v1386 = vrcp.pop %v1367
        %v1387 = vrcp.pop %v1369
        %v1388 = vrcp.pop %v1371
        %v1389 = vrcp.pop %v1373
        %v1390 = vmul.f32 %v1311, %v1374
        %v1391 = vmul.f32 %v1313, %v1375
        %v1392 = vmul.f32 %v1315, %v1376
        %v1393 = vmul.f32 %v1317, %v1377
        %v1394 = vmul.f32 %v1319, %v1378
        %v1395 = vmul.f32 %v1321, %v1379
        %v1396 = vmul.f32 %v1323, %v1380
        %v1397 = vmul.f32 %v1325, %v1381
        %v1398 = vmul.f32 %v1327, %v1382
        %v1399 = vmul.f32 %v1329, %v1383
        %v1400 = vmul.f32 %v1331, %v1384
        %v1401 = vmul.f32 %v1333, %v1385
        %v1402 = vmul.f32 %v1335, %v1386
        %v1403 = vmul.f32 %v1337, %v1387
        %v1404 = vmul.f32 %v1339, %v1388
        %v1405 = vmul.f32 %v1341, %v1389
        %v1406 = vpack.c.bf16 %v1391, %v1390
        %v1407 = vpack.c.bf16 %v1393, %v1392
        %v1408 = vpack.c.bf16 %v1395, %v1394
        %v1409 = vpack.c.bf16 %v1397, %v1396
        %v1410 = vpack.c.bf16 %v1399, %v1398
        %v1411 = vpack.c.bf16 %v1401, %v1400
        %v1412 = vpack.c.bf16 %v1403, %v1402
        %v1413 = vpack.c.bf16 %v1405, %v1404
        %v1430 = vunpack.c.l.b16 %v662
        %v1431 = vunpack.c.l.b16 %v663
        %v1432 = vunpack.c.l.b16 %v664
        %v1433 = vunpack.c.l.b16 %v665
        %v1434 = vunpack.c.l.b16 %v666
        %v1435 = vunpack.c.l.b16 %v667
        %v1436 = vunpack.c.l.b16 %v668
        %v1437 = vunpack.c.l.b16 %v669
        %v1438 = vunpack.c.l.b16 %v670
        %v1439 = vunpack.c.l.b16 %v671
        %v1440 = vunpack.c.l.b16 %v672
        %v1441 = vunpack.c.l.b16 %v673
        %v1442 = vunpack.c.l.b16 %v674
        %v1443 = vunpack.c.l.b16 %v675
        %v1444 = vunpack.c.l.b16 %v676
        %v1445 = vunpack.c.l.b16 %v677
        %v1446 = vpack.c.b16 %v1431, %v1430
        %v1447 = vpack.c.b16 %v1433, %v1432
        %v1448 = vpack.c.b16 %v1435, %v1434
        %v1449 = vpack.c.b16 %v1437, %v1436
        %v1450 = vpack.c.b16 %v1439, %v1438
        %v1451 = vpack.c.b16 %v1441, %v1440
        %v1452 = vpack.c.b16 %v1443, %v1442
        %v1453 = vpack.c.b16 %v1445, %v1444
        %1462 = vmatprep.subr.bf16.mxu0 0
        %1463 = vmatpush1.bf16.msra.mxu0 %v1446
        %1464 = vmatprep.subr.bf16.mxu0 0
        %1465 = vmatpush1.bf16.msra.mxu0 %v1447
        %1466 = vmatprep.subr.bf16.mxu0 0
        %1467 = vmatpush1.bf16.msra.mxu0 %v1448
        %1468 = vmatprep.subr.bf16.mxu0 0
        %1469 = vmatpush1.bf16.msra.mxu0 %v1449
        %1470 = vmatprep.subr.bf16.mxu0 0
        %1471 = vmatpush1.bf16.msra.mxu0 %v1450
        %1472 = vmatprep.subr.bf16.mxu0 0
        %1473 = vmatpush1.bf16.msra.mxu0 %v1451
        %1474 = vmatprep.subr.bf16.mxu0 0
        %1475 = vmatpush1.bf16.msra.mxu0 %v1452
        %1476 = vmatprep.subr.bf16.mxu0 0
        %1477 = vmatpush1.bf16.msra.mxu0 %v1453
        %1478 = vmatprep.subr.bf16.mxu0 0
        %1479 = vmatpush1.bf16.msra.mxu0 0
        %1480 = vmatprep.subr.bf16.mxu0 0
        %1481 = vmatpush1.bf16.msra.mxu0 0
        %1482 = vmatprep.subr.bf16.mxu0 0
        %1483 = vmatpush1.bf16.msra.mxu0 0
        %1484 = vmatprep.subr.bf16.mxu0 0
        %1485 = vmatpush1.bf16.msra.mxu0 0
        %1486 = vmatprep.subr.bf16.mxu0 0
        %1487 = vmatpush1.bf16.msra.mxu0 0
        %1488 = vmatprep.subr.bf16.mxu0 0
        %1489 = vmatpush1.bf16.msra.mxu0 0
        %1490 = vmatprep.subr.bf16.mxu0 0
        %1491 = vmatpush1.bf16.msra.mxu0 0
        %1492 = vmatprep.subr.bf16.mxu0 0
        %1493 = vmatpush1.bf16.msra.mxu0 0
        %1494 = vmatprep.mubr.bf16.mxu0 0
        %1495 = vmatmul.mubr.bf16.gmra.mrb[0].mxu0 %v1406
        %v1496 = vpop.f32.mrb[0].mxu0
        %v1497 = vadd.f32 0.0, %v1496
        %v1498 = vpop.f32.mrb[0].mxu0
        %v1499 = vpop.f32.mrb[0].mxu0
        %v1500 = vadd.f32 0.0, %v1499
        %v1501 = vpop.f32.mrb[0].mxu0
        %1502 = vmatprep.mubr.bf16.mxu0 0
        %1503 = vmatmul.mubr.bf16.gmra.mrb[0].mxu0 %v1407
        %v1504 = vpop.f32.mrb[0].mxu0
        %v1505 = vadd.f32 0.0, %v1504
        %v1506 = vpop.f32.mrb[0].mxu0
        %v1507 = vpop.f32.mrb[0].mxu0
        %v1508 = vadd.f32 0.0, %v1507
        %v1509 = vpop.f32.mrb[0].mxu0
        %1510 = vmatprep.mubr.bf16.mxu0 0
        %1511 = vmatmul.mubr.bf16.gmra.mrb[0].mxu0 %v1408
        %v1512 = vpop.f32.mrb[0].mxu0
        %v1513 = vadd.f32 0.0, %v1512
        %v1514 = vpop.f32.mrb[0].mxu0
        %v1515 = vpop.f32.mrb[0].mxu0
        %v1516 = vadd.f32 0.0, %v1515
        %v1517 = vpop.f32.mrb[0].mxu0
        %1518 = vmatprep.mubr.bf16.mxu0 0
        %1519 = vmatmul.mubr.bf16.gmra.mrb[0].mxu0 %v1409
        %v1520 = vpop.f32.mrb[0].mxu0
        %v1521 = vadd.f32 0.0, %v1520
        %v1522 = vpop.f32.mrb[0].mxu0
        %v1523 = vpop.f32.mrb[0].mxu0
        %v1524 = vadd.f32 0.0, %v1523
        %v1525 = vpop.f32.mrb[0].mxu0
        %1526 = vmatprep.mubr.bf16.mxu0 0
        %1527 = vmatmul.mubr.bf16.gmra.mrb[0].mxu0 %v1410
        %v1528 = vpop.f32.mrb[0].mxu0
        %v1529 = vadd.f32 0.0, %v1528
        %v1530 = vpop.f32.mrb[0].mxu0
        %v1531 = vpop.f32.mrb[0].mxu0
        %v1532 = vadd.f32 0.0, %v1531
        %v1533 = vpop.f32.mrb[0].mxu0
        %1534 = vmatprep.mubr.bf16.mxu0 0
        %1535 = vmatmul.mubr.bf16.gmra.mrb[0].mxu0 %v1411
        %v1536 = vpop.f32.mrb[0].mxu0
        %v1537 = vadd.f32 0.0, %v1536
        %v1538 = vpop.f32.mrb[0].mxu0
        %v1539 = vpop.f32.mrb[0].mxu0
        %v1540 = vadd.f32 0.0, %v1539
        %v1541 = vpop.f32.mrb[0].mxu0
        %1542 = vmatprep.mubr.bf16.mxu0 0
        %1543 = vmatmul.mubr.bf16.gmra.mrb[0].mxu0 %v1412
        %v1544 = vpop.f32.mrb[0].mxu0
        %v1545 = vadd.f32 0.0, %v1544
        %v1546 = vpop.f32.mrb[0].mxu0
        %v1547 = vpop.f32.mrb[0].mxu0
        %v1548 = vadd.f32 0.0, %v1547
        %v1549 = vpop.f32.mrb[0].mxu0
        %1550 = vmatprep.mubr.bf16.mxu0 0
        %1551 = vmatmul.mubr.bf16.gmra.mrb[0].mxu0 %v1413
        %v1552 = vpop.f32.mrb[0].mxu0
        %v1553 = vadd.f32 0.0, %v1552
        %v1554 = vpop.f32.mrb[0].mxu0
        %v1555 = vpop.f32.mrb[0].mxu0
        %v1556 = vadd.f32 0.0, %v1555
        %v1557 = vpop.f32.mrb[0].mxu0
        %1558 = vdwg.mxu0
        %v1559 = vpack.c.bf16 %v1500, %v1497
        %v1560 = vpack.c.bf16 %v1508, %v1505
        %v1561 = vpack.c.bf16 %v1516, %v1513
        %v1562 = vpack.c.bf16 %v1524, %v1521
        %v1563 = vpack.c.bf16 %v1532, %v1529
        %v1564 = vpack.c.bf16 %v1540, %v1537
        %v1565 = vpack.c.bf16 %v1548, %v1545
        %v1566 = vpack.c.bf16 %v1556, %v1553
        %v1567 = vld [vmem:[#allocation11] sm:$0xf]
        %v1568 = vld [vmem:[#allocation11 + $0x4] sm:$0xf]
        %v1569 = vld [vmem:[#allocation11 + $0x8] sm:$0xf]
        %v1570 = vld [vmem:[#allocation11 + $0xc] sm:$0xf]
        %v1571 = vld [vmem:[#allocation11 + $0x10] sm:$0xf]
        %v1572 = vld [vmem:[#allocation11 + $0x14] sm:$0xf]
        %v1573 = vld [vmem:[#allocation11 + $0x18] sm:$0xf]
        %v1574 = vld [vmem:[#allocation11 + $0x1c] sm:$0xf]
        %v1575 = vld [vmem:[#allocation11 + $0x20] sm:$0xf]
        %v1576 = vld [vmem:[#allocation11 + $0x24] sm:$0xf]
        %v1577 = vld [vmem:[#allocation11 + $0x28] sm:$0xf]
        %v1578 = vld [vmem:[#allocation11 + $0x2c] sm:$0xf]
        %v1579 = vld [vmem:[#allocation11 + $0x30] sm:$0xf]
        %v1580 = vld [vmem:[#allocation11 + $0x34] sm:$0xf]
        %v1581 = vld [vmem:[#allocation11 + $0x38] sm:$0xf]
        %v1582 = vld [vmem:[#allocation11 + $0x3c] sm:$0xf]
        %v1583 = vld [vmem:[%s9] sm:$0x1]
        %v1585 = vlaneseq
        %v1586 = vshrl.u32 %v1585, 7
        %v1587 = vsub.s32 0, %v1586
        %v1588 = vrot.slane %v1583, %v1587
        %v1606 = vunpack.c.l.b16 %v1567
        %v1607 = vunpack.c.l.b16 %v1568
        %v1608 = vunpack.c.l.b16 %v1569
        %v1609 = vunpack.c.l.b16 %v1570
        %v1610 = vunpack.c.l.b16 %v1571
        %v1611 = vunpack.c.l.b16 %v1572
        %v1612 = vunpack.c.l.b16 %v1573
        %v1613 = vunpack.c.l.b16 %v1574
        %v1614 = vunpack.c.l.b16 %v1575
        %v1615 = vunpack.c.l.b16 %v1576
        %v1616 = vunpack.c.l.b16 %v1577
        %v1617 = vunpack.c.l.b16 %v1578
        %v1618 = vunpack.c.l.b16 %v1579
        %v1619 = vunpack.c.l.b16 %v1580
        %v1620 = vunpack.c.l.b16 %v1581
        %v1621 = vunpack.c.l.b16 %v1582
        %v1622 = vpack.c.b16 %v1607, %v1606
        %v1623 = vpack.c.b16 %v1609, %v1608
        %v1624 = vpack.c.b16 %v1611, %v1610
        %v1625 = vpack.c.b16 %v1613, %v1612
        %v1626 = vpack.c.b16 %v1615, %v1614
        %v1627 = vpack.c.b16 %v1617, %v1616
        %v1628 = vpack.c.b16 %v1619, %v1618
        %v1629 = vpack.c.b16 %v1621, %v1620
        %1638 = vmatprep.subr.bf16.mxu0 0
        %1639 = vmatpush1.bf16.msra.mxu0 %v1622
        %1640 = vmatprep.subr.bf16.mxu0 0
        %1641 = vmatpush1.bf16.msra.mxu0 %v1623
        %1642 = vmatprep.subr.bf16.mxu0 0
        %1643 = vmatpush1.bf16.msra.mxu0 %v1624
        %1644 = vmatprep.subr.bf16.mxu0 0
        %1645 = vmatpush1.bf16.msra.mxu0 %v1625
        %1646 = vmatprep.subr.bf16.mxu0 0
        %1647 = vmatpush1.bf16.msra.mxu0 %v1626
        %1648 = vmatprep.subr.bf16.mxu0 0
        %1649 = vmatpush1.bf16.msra.mxu0 %v1627
        %1650 = vmatprep.subr.bf16.mxu0 0
        %1651 = vmatpush1.bf16.msra.mxu0 %v1628
        %1652 = vmatprep.subr.bf16.mxu0 0
        %1653 = vmatpush1.bf16.msra.mxu0 %v1629
        %1654 = vmatprep.subr.bf16.mxu0 0
        %1655 = vmatpush1.bf16.msra.mxu0 0
        %1656 = vmatprep.subr.bf16.mxu0 0
        %1657 = vmatpush1.bf16.msra.mxu0 0
        %1658 = vmatprep.subr.bf16.mxu0 0
        %1659 = vmatpush1.bf16.msra.mxu0 0
        %1660 = vmatprep.subr.bf16.mxu0 0
        %1661 = vmatpush1.bf16.msra.mxu0 0
        %1662 = vmatprep.subr.bf16.mxu0 0
        %1663 = vmatpush1.bf16.msra.mxu0 0
        %1664 = vmatprep.subr.bf16.mxu0 0
        %1665 = vmatpush1.bf16.msra.mxu0 0
        %1666 = vmatprep.subr.bf16.mxu0 0
        %1667 = vmatpush1.bf16.msra.mxu0 0
        %1668 = vmatprep.subr.bf16.mxu0 0
        %1669 = vmatpush1.bf16.msra.mxu0 0
        %1670 = vmatprep.mubr.bf16.mxu0 0
        %1671 = vmatmul.mubr.bf16.gmra.mrb[0].mxu0 %v1559
        %v1672 = vpop.f32.mrb[0].mxu0
        %v1673 = vadd.f32 %v1588, %v1672
        %v1674 = vpop.f32.mrb[0].mxu0
        %v1675 = vpop.f32.mrb[0].mxu0
        %v1676 = vadd.f32 %v1588, %v1675
        %v1677 = vpop.f32.mrb[0].mxu0
        %1678 = vmatprep.mubr.bf16.mxu0 0
        %1679 = vmatmul.mubr.bf16.gmra.mrb[0].mxu0 %v1560
        %v1680 = vpop.f32.mrb[0].mxu0
        %v1681 = vadd.f32 %v1588, %v1680
        %v1682 = vpop.f32.mrb[0].mxu0
        %v1683 = vpop.f32.mrb[0].mxu0
        %v1684 = vadd.f32 %v1588, %v1683
        %v1685 = vpop.f32.mrb[0].mxu0
        %1686 = vmatprep.mubr.bf16.mxu0 0
        %1687 = vmatmul.mubr.bf16.gmra.mrb[0].mxu0 %v1561
        %v1688 = vpop.f32.mrb[0].mxu0
        %v1689 = vadd.f32 %v1588, %v1688
        %v1690 = vpop.f32.mrb[0].mxu0
        %v1691 = vpop.f32.mrb[0].mxu0
        %v1692 = vadd.f32 %v1588, %v1691
        %v1693 = vpop.f32.mrb[0].mxu0
        %1694 = vmatprep.mubr.bf16.mxu0 0
        %1695 = vmatmul.mubr.bf16.gmra.mrb[0].mxu0 %v1562
        %v1696 = vpop.f32.mrb[0].mxu0
        %v1697 = vadd.f32 %v1588, %v1696
        %v1698 = vpop.f32.mrb[0].mxu0
        %v1699 = vpop.f32.mrb[0].mxu0
        %v1700 = vadd.f32 %v1588, %v1699
        %v1701 = vpop.f32.mrb[0].mxu0
        %1702 = vmatprep.mubr.bf16.mxu0 0
        %1703 = vmatmul.mubr.bf16.gmra.mrb[0].mxu0 %v1563
        %v1704 = vpop.f32.mrb[0].mxu0
        %v1705 = vadd.f32 %v1588, %v1704
        %v1706 = vpop.f32.mrb[0].mxu0
        %v1707 = vpop.f32.mrb[0].mxu0
        %v1708 = vadd.f32 %v1588, %v1707
        %v1709 = vpop.f32.mrb[0].mxu0
        %1710 = vmatprep.mubr.bf16.mxu0 0
        %1711 = vmatmul.mubr.bf16.gmra.mrb[0].mxu0 %v1564
        %v1712 = vpop.f32.mrb[0].mxu0
        %v1713 = vadd.f32 %v1588, %v1712
        %v1714 = vpop.f32.mrb[0].mxu0
        %v1715 = vpop.f32.mrb[0].mxu0
        %v1716 = vadd.f32 %v1588, %v1715
        %v1717 = vpop.f32.mrb[0].mxu0
        %1718 = vmatprep.mubr.bf16.mxu0 0
        %1719 = vmatmul.mubr.bf16.gmra.mrb[0].mxu0 %v1565
        %v1720 = vpop.f32.mrb[0].mxu0
        %v1721 = vadd.f32 %v1588, %v1720
        %v1722 = vpop.f32.mrb[0].mxu0
        %v1723 = vpop.f32.mrb[0].mxu0
        %v1724 = vadd.f32 %v1588, %v1723
        %v1725 = vpop.f32.mrb[0].mxu0
        %1726 = vmatprep.mubr.bf16.mxu0 0
        %1727 = vmatmul.mubr.bf16.gmra.mrb[0].mxu0 %v1566
        %v1728 = vpop.f32.mrb[0].mxu0
        %v1729 = vadd.f32 %v1588, %v1728
        %v1730 = vpop.f32.mrb[0].mxu0
        %v1731 = vpop.f32.mrb[0].mxu0
        %v1732 = vadd.f32 %v1588, %v1731
        %v1733 = vpop.f32.mrb[0].mxu0
        %1734 = vdwg.mxu0
        %v1735 = vmax.f32 %v1673, 0.0
        %v1736 = vmax.f32 %v1676, 0.0
        %v1737 = vmax.f32 %v1681, 0.0
        %v1738 = vmax.f32 %v1684, 0.0
        %v1739 = vmax.f32 %v1689, 0.0
        %v1740 = vmax.f32 %v1692, 0.0
        %v1741 = vmax.f32 %v1697, 0.0
        %v1742 = vmax.f32 %v1700, 0.0
        %v1743 = vmax.f32 %v1705, 0.0
        %v1744 = vmax.f32 %v1708, 0.0
        %v1745 = vmax.f32 %v1713, 0.0
        %v1746 = vmax.f32 %v1716, 0.0
        %v1747 = vmax.f32 %v1721, 0.0
        %v1748 = vmax.f32 %v1724, 0.0
        %v1749 = vmax.f32 %v1729, 0.0
        %v1750 = vmax.f32 %v1732, 0.0
        %v1751 = vpack.c.bf16 %v1736, %v1735
        %v1752 = vpack.c.bf16 %v1738, %v1737
        %v1753 = vpack.c.bf16 %v1740, %v1739
        %v1754 = vpack.c.bf16 %v1742, %v1741
        %v1755 = vpack.c.bf16 %v1744, %v1743
        %v1756 = vpack.c.bf16 %v1746, %v1745
        %v1757 = vpack.c.bf16 %v1748, %v1747
        %v1758 = vpack.c.bf16 %v1750, %v1749
        %v1759 = vld [vmem:[#allocation13] sm:$0xf]
        %v1760 = vld [vmem:[#allocation13 + $0x4] sm:$0xf]
        %v1761 = vld [vmem:[#allocation13 + $0x8] sm:$0xf]
        %v1762 = vld [vmem:[#allocation13 + $0xc] sm:$0xf]
        %v1763 = vld [vmem:[#allocation13 + $0x10] sm:$0xf]
        %v1764 = vld [vmem:[#allocation13 + $0x14] sm:$0xf]
        %v1765 = vld [vmem:[#allocation13 + $0x18] sm:$0xf]
        %v1766 = vld [vmem:[#allocation13 + $0x1c] sm:$0xf]
        %v1767 = vld [vmem:[#allocation13 + $0x20] sm:$0xf]
        %v1768 = vld [vmem:[#allocation13 + $0x24] sm:$0xf]
        %v1769 = vld [vmem:[#allocation13 + $0x28] sm:$0xf]
        %v1770 = vld [vmem:[#allocation13 + $0x2c] sm:$0xf]
        %v1771 = vld [vmem:[#allocation13 + $0x30] sm:$0xf]
        %v1772 = vld [vmem:[#allocation13 + $0x34] sm:$0xf]
        %v1773 = vld [vmem:[#allocation13 + $0x38] sm:$0xf]
        %v1774 = vld [vmem:[#allocation13 + $0x3c] sm:$0xf]
        %v1775 = vld [vmem:[#allocation14] sm:$0xf]
        %v1776 = vld [vmem:[#allocation14 + $0x4] sm:$0xf]
        %v1777 = vld [vmem:[#allocation14 + $0x8] sm:$0xf]
        %v1778 = vld [vmem:[#allocation14 + $0xc] sm:$0xf]
        %v1779 = vld [vmem:[#allocation14 + $0x10] sm:$0xf]
        %v1780 = vld [vmem:[#allocation14 + $0x14] sm:$0xf]
        %v1781 = vld [vmem:[#allocation14 + $0x18] sm:$0xf]
        %v1782 = vld [vmem:[#allocation14 + $0x1c] sm:$0xf]
        %v1783 = vld [vmem:[#allocation14 + $0x20] sm:$0xf]
        %v1784 = vld [vmem:[#allocation14 + $0x24] sm:$0xf]
        %v1785 = vld [vmem:[#allocation14 + $0x28] sm:$0xf]
        %v1786 = vld [vmem:[#allocation14 + $0x2c] sm:$0xf]
        %v1787 = vld [vmem:[#allocation14 + $0x30] sm:$0xf]
        %v1788 = vld [vmem:[#allocation14 + $0x34] sm:$0xf]
        %v1789 = vld [vmem:[#allocation14 + $0x38] sm:$0xf]
        %v1790 = vld [vmem:[#allocation14 + $0x3c] sm:$0xf]
        %v1807 = vunpack.c.l.b16 %v1775
        %v1808 = vunpack.c.l.b16 %v1776
        %v1809 = vunpack.c.l.b16 %v1777
        %v1810 = vunpack.c.l.b16 %v1778
        %v1811 = vunpack.c.l.b16 %v1779
        %v1812 = vunpack.c.l.b16 %v1780
        %v1813 = vunpack.c.l.b16 %v1781
        %v1814 = vunpack.c.l.b16 %v1782
        %v1815 = vunpack.c.l.b16 %v1783
        %v1816 = vunpack.c.l.b16 %v1784
        %v1817 = vunpack.c.l.b16 %v1785
        %v1818 = vunpack.c.l.b16 %v1786
        %v1819 = vunpack.c.l.b16 %v1787
        %v1820 = vunpack.c.l.b16 %v1788
        %v1821 = vunpack.c.l.b16 %v1789
        %v1822 = vunpack.c.l.b16 %v1790
        %v1823 = vpack.c.b16 %v1808, %v1807
        %v1824 = vpack.c.b16 %v1810, %v1809
        %v1825 = vpack.c.b16 %v1812, %v1811
        %v1826 = vpack.c.b16 %v1814, %v1813
        %v1827 = vpack.c.b16 %v1816, %v1815
        %v1828 = vpack.c.b16 %v1818, %v1817
        %v1829 = vpack.c.b16 %v1820, %v1819
        %v1830 = vpack.c.b16 %v1822, %v1821
        %1839 = vmatprep.subr.bf16.mxu0 0
        %1840 = vmatpush1.bf16.msra.mxu0 %v1823
        %1841 = vmatprep.subr.bf16.mxu0 0
        %1842 = vmatpush1.bf16.msra.mxu0 %v1824
        %1843 = vmatprep.subr.bf16.mxu0 0
        %1844 = vmatpush1.bf16.msra.mxu0 %v1825
        %1845 = vmatprep.subr.bf16.mxu0 0
        %1846 = vmatpush1.bf16.msra.mxu0 %v1826
        %1847 = vmatprep.subr.bf16.mxu0 0
        %1848 = vmatpush1.bf16.msra.mxu0 %v1827
        %1849 = vmatprep.subr.bf16.mxu0 0
        %1850 = vmatpush1.bf16.msra.mxu0 %v1828
        %1851 = vmatprep.subr.bf16.mxu0 0
        %1852 = vmatpush1.bf16.msra.mxu0 %v1829
        %1853 = vmatprep.subr.bf16.mxu0 0
        %1854 = vmatpush1.bf16.msra.mxu0 %v1830
        %1855 = vmatprep.subr.bf16.mxu0 0
        %1856 = vmatpush1.bf16.msra.mxu0 0
        %1857 = vmatprep.subr.bf16.mxu0 0
        %1858 = vmatpush1.bf16.msra.mxu0 0
        %1859 = vmatprep.subr.bf16.mxu0 0
        %1860 = vmatpush1.bf16.msra.mxu0 0
        %1861 = vmatprep.subr.bf16.mxu0 0
        %1862 = vmatpush1.bf16.msra.mxu0 0
        %1863 = vmatprep.subr.bf16.mxu0 0
        %1864 = vmatpush1.bf16.msra.mxu0 0
        %1865 = vmatprep.subr.bf16.mxu0 0
        %1866 = vmatpush1.bf16.msra.mxu0 0
        %1867 = vmatprep.subr.bf16.mxu0 0
        %1868 = vmatpush1.bf16.msra.mxu0 0
        %1869 = vmatprep.subr.bf16.mxu0 0
        %1870 = vmatpush1.bf16.msra.mxu0 0
        %1871 = vmatprep.mubr.bf16.mxu0 0
        %1872 = vmatmul.mubr.bf16.gmra.mrb[0].mxu0 %v733
        %v1873 = vpop.f32.mrb[0].mxu0
        %v1874 = vadd.f32 0.0, %v1873
        %v1875 = vpop.f32.mrb[0].mxu0
        %v1876 = vpop.f32.mrb[0].mxu0
        %v1877 = vadd.f32 0.0, %v1876
        %v1878 = vpop.f32.mrb[0].mxu0
        %1879 = vmatprep.mubr.bf16.mxu0 0
        %1880 = vmatmul.mubr.bf16.gmra.mrb[0].mxu0 %v734
        %v1881 = vpop.f32.mrb[0].mxu0
        %v1882 = vadd.f32 0.0, %v1881
        %v1883 = vpop.f32.mrb[0].mxu0
        %v1884 = vpop.f32.mrb[0].mxu0
        %v1885 = vadd.f32 0.0, %v1884
        %v1886 = vpop.f32.mrb[0].mxu0
        %1887 = vmatprep.mubr.bf16.mxu0 0
        %1888 = vmatmul.mubr.bf16.gmra.mrb[0].mxu0 %v735
        %v1889 = vpop.f32.mrb[0].mxu0
        %v1890 = vadd.f32 0.0, %v1889
        %v1891 = vpop.f32.mrb[0].mxu0
        %v1892 = vpop.f32.mrb[0].mxu0
        %v1893 = vadd.f32 0.0, %v1892
        %v1894 = vpop.f32.mrb[0].mxu0
        %1895 = vmatprep.mubr.bf16.mxu0 0
        %1896 = vmatmul.mubr.bf16.gmra.mrb[0].mxu0 %v736
        %v1897 = vpop.f32.mrb[0].mxu0
        %v1898 = vadd.f32 0.0, %v1897
        %v1899 = vpop.f32.mrb[0].mxu0
        %v1900 = vpop.f32.mrb[0].mxu0
        %v1901 = vadd.f32 0.0, %v1900
        %v1902 = vpop.f32.mrb[0].mxu0
        %1903 = vmatprep.mubr.bf16.mxu0 0
        %1904 = vmatmul.mubr.bf16.gmra.mrb[0].mxu0 %v737
        %v1905 = vpop.f32.mrb[0].mxu0
        %v1906 = vadd.f32 0.0, %v1905
        %v1907 = vpop.f32.mrb[0].mxu0
        %v1908 = vpop.f32.mrb[0].mxu0
        %v1909 = vadd.f32 0.0, %v1908
        %v1910 = vpop.f32.mrb[0].mxu0
        %1911 = vmatprep.mubr.bf16.mxu0 0
        %1912 = vmatmul.mubr.bf16.gmra.mrb[0].mxu0 %v738
        %v1913 = vpop.f32.mrb[0].mxu0
        %v1914 = vadd.f32 0.0, %v1913
        %v1915 = vpop.f32.mrb[0].mxu0
        %v1916 = vpop.f32.mrb[0].mxu0
        %v1917 = vadd.f32 0.0, %v1916
        %v1918 = vpop.f32.mrb[0].mxu0
        %1919 = vmatprep.mubr.bf16.mxu0 0
        %1920 = vmatmul.mubr.bf16.gmra.mrb[0].mxu0 %v739
        %v1921 = vpop.f32.mrb[0].mxu0
        %v1922 = vadd.f32 0.0, %v1921
        %v1923 = vpop.f32.mrb[0].mxu0
        %v1924 = vpop.f32.mrb[0].mxu0
        %v1925 = vadd.f32 0.0, %v1924
        %v1926 = vpop.f32.mrb[0].mxu0
        %1927 = vmatprep.mubr.bf16.mxu0 0
        %1928 = vmatmul.mubr.bf16.gmra.mrb[0].mxu0 %v740
        %v1929 = vpop.f32.mrb[0].mxu0
        %v1930 = vadd.f32 0.0, %v1929
        %v1931 = vpop.f32.mrb[0].mxu0
        %v1932 = vpop.f32.mrb[0].mxu0
        %v1933 = vadd.f32 0.0, %v1932
        %v1934 = vpop.f32.mrb[0].mxu0
        %1935 = vdwg.mxu0
        %v1952 = vunpack.c.l.b16 %v1759
        %v1953 = vunpack.c.l.b16 %v1760
        %v1954 = vunpack.c.l.b16 %v1761
        %v1955 = vunpack.c.l.b16 %v1762
        %v1956 = vunpack.c.l.b16 %v1763
        %v1957 = vunpack.c.l.b16 %v1764
        %v1958 = vunpack.c.l.b16 %v1765
        %v1959 = vunpack.c.l.b16 %v1766
        %v1960 = vunpack.c.l.b16 %v1767
        %v1961 = vunpack.c.l.b16 %v1768
        %v1962 = vunpack.c.l.b16 %v1769
        %v1963 = vunpack.c.l.b16 %v1770
        %v1964 = vunpack.c.l.b16 %v1771
        %v1965 = vunpack.c.l.b16 %v1772
        %v1966 = vunpack.c.l.b16 %v1773
        %v1967 = vunpack.c.l.b16 %v1774
        %v1968 = vpack.c.b16 %v1953, %v1952
        %v1969 = vpack.c.b16 %v1955, %v1954
        %v1970 = vpack.c.b16 %v1957, %v1956
        %v1971 = vpack.c.b16 %v1959, %v1958
        %v1972 = vpack.c.b16 %v1961, %v1960
        %v1973 = vpack.c.b16 %v1963, %v1962
        %v1974 = vpack.c.b16 %v1965, %v1964
        %v1975 = vpack.c.b16 %v1967, %v1966
        %1984 = vmatprep.subr.bf16.mxu0 0
        %1985 = vmatpush1.bf16.msra.mxu0 %v1968
        %1986 = vmatprep.subr.bf16.mxu0 0
        %1987 = vmatpush1.bf16.msra.mxu0 %v1969
        %1988 = vmatprep.subr.bf16.mxu0 0
        %1989 = vmatpush1.bf16.msra.mxu0 %v1970
        %1990 = vmatprep.subr.bf16.mxu0 0
        %1991 = vmatpush1.bf16.msra.mxu0 %v1971
        %1992 = vmatprep.subr.bf16.mxu0 0
        %1993 = vmatpush1.bf16.msra.mxu0 %v1972
        %1994 = vmatprep.subr.bf16.mxu0 0
        %1995 = vmatpush1.bf16.msra.mxu0 %v1973
        %1996 = vmatprep.subr.bf16.mxu0 0
        %1997 = vmatpush1.bf16.msra.mxu0 %v1974
        %1998 = vmatprep.subr.bf16.mxu0 0
        %1999 = vmatpush1.bf16.msra.mxu0 %v1975
        %2000 = vmatprep.subr.bf16.mxu0 0
        %2001 = vmatpush1.bf16.msra.mxu0 0
        %2002 = vmatprep.subr.bf16.mxu0 0
        %2003 = vmatpush1.bf16.msra.mxu0 0
        %2004 = vmatprep.subr.bf16.mxu0 0
        %2005 = vmatpush1.bf16.msra.mxu0 0
        %2006 = vmatprep.subr.bf16.mxu0 0
        %2007 = vmatpush1.bf16.msra.mxu0 0
        %2008 = vmatprep.subr.bf16.mxu0 0
        %2009 = vmatpush1.bf16.msra.mxu0 0
        %2010 = vmatprep.subr.bf16.mxu0 0
        %2011 = vmatpush1.bf16.msra.mxu0 0
        %2012 = vmatprep.subr.bf16.mxu0 0
        %2013 = vmatpush1.bf16.msra.mxu0 0
        %2014 = vmatprep.subr.bf16.mxu0 0
        %2015 = vmatpush1.bf16.msra.mxu0 0
        %2016 = vmatprep.mubr.bf16.mxu0 0
        %2017 = vmatmul.mubr.bf16.gmra.mrb[0].mxu0 %v1751
        %v2018 = vpop.f32.mrb[0].mxu0
        %v2019 = vadd.f32 %v1874, %v2018
        %v2020 = vpop.f32.mrb[0].mxu0
        %v2021 = vpop.f32.mrb[0].mxu0
        %v2022 = vadd.f32 %v1877, %v2021
        %v2023 = vpop.f32.mrb[0].mxu0
        %2024 = vmatprep.mubr.bf16.mxu0 0
        %2025 = vmatmul.mubr.bf16.gmra.mrb[0].mxu0 %v1752
        %v2026 = vpop.f32.mrb[0].mxu0
        %v2027 = vadd.f32 %v1882, %v2026
        %v2028 = vpop.f32.mrb[0].mxu0
        %v2029 = vpop.f32.mrb[0].mxu0
        %v2030 = vadd.f32 %v1885, %v2029
        %v2031 = vpop.f32.mrb[0].mxu0
        %2032 = vmatprep.mubr.bf16.mxu0 0
        %2033 = vmatmul.mubr.bf16.gmra.mrb[0].mxu0 %v1753
        %v2034 = vpop.f32.mrb[0].mxu0
        %v2035 = vadd.f32 %v1890, %v2034
        %v2036 = vpop.f32.mrb[0].mxu0
        %v2037 = vpop.f32.mrb[0].mxu0
        %v2038 = vadd.f32 %v1893, %v2037
        %v2039 = vpop.f32.mrb[0].mxu0
        %2040 = vmatprep.mubr.bf16.mxu0 0
        %2041 = vmatmul.mubr.bf16.gmra.mrb[0].mxu0 %v1754
        %v2042 = vpop.f32.mrb[0].mxu0
        %v2043 = vadd.f32 %v1898, %v2042
        %v2044 = vpop.f32.mrb[0].mxu0
        %v2045 = vpop.f32.mrb[0].mxu0
        %v2046 = vadd.f32 %v1901, %v2045
        %v2047 = vpop.f32.mrb[0].mxu0
        %2048 = vmatprep.mubr.bf16.mxu0 0
        %2049 = vmatmul.mubr.bf16.gmra.mrb[0].mxu0 %v1755
        %v2050 = vpop.f32.mrb[0].mxu0
        %v2051 = vadd.f32 %v1906, %v2050
        %v2052 = vpop.f32.mrb[0].mxu0
        %v2053 = vpop.f32.mrb[0].mxu0
        %v2054 = vadd.f32 %v1909, %v2053
        %v2055 = vpop.f32.mrb[0].mxu0
        %2056 = vmatprep.mubr.bf16.mxu0 0
        %2057 = vmatmul.mubr.bf16.gmra.mrb[0].mxu0 %v1756
        %v2058 = vpop.f32.mrb[0].mxu0
        %v2059 = vadd.f32 %v1914, %v2058
        %v2060 = vpop.f32.mrb[0].mxu0
        %v2061 = vpop.f32.mrb[0].mxu0
        %v2062 = vadd.f32 %v1917, %v2061
        %v2063 = vpop.f32.mrb[0].mxu0
        %2064 = vmatprep.mubr.bf16.mxu0 0
        %2065 = vmatmul.mubr.bf16.gmra.mrb[0].mxu0 %v1757
        %v2066 = vpop.f32.mrb[0].mxu0
        %v2067 = vadd.f32 %v1922, %v2066
        %v2068 = vpop.f32.mrb[0].mxu0
        %v2069 = vpop.f32.mrb[0].mxu0
        %v2070 = vadd.f32 %v1925, %v2069
        %v2071 = vpop.f32.mrb[0].mxu0
        %2072 = vmatprep.mubr.bf16.mxu0 0
        %2073 = vmatmul.mubr.bf16.gmra.mrb[0].mxu0 %v1758
        %v2074 = vpop.f32.mrb[0].mxu0
        %v2075 = vadd.f32 %v1930, %v2074
        %v2076 = vpop.f32.mrb[0].mxu0
        %v2077 = vpop.f32.mrb[0].mxu0
        %v2078 = vadd.f32 %v1933, %v2077
        %v2079 = vpop.f32.mrb[0].mxu0
        %2080 = vdwg.mxu0
        %v2081 = vld [vmem:[%s12] sm:$0x1]
        %v2083 = vlaneseq
        %v2084 = vshrl.u32 %v2083, 7
        %v2085 = vsub.s32 0, %v2084
        %v2086 = vrot.slane %v2081, %v2085
        %v2088 = vadd.f32 %v2019, %v2086
        %v2089 = vadd.f32 %v2022, %v2086
        %v2090 = vadd.f32 %v2027, %v2086
        %v2091 = vadd.f32 %v2030, %v2086
        %v2092 = vadd.f32 %v2035, %v2086
        %v2093 = vadd.f32 %v2038, %v2086
        %v2094 = vadd.f32 %v2043, %v2086
        %v2095 = vadd.f32 %v2046, %v2086
        %v2096 = vadd.f32 %v2051, %v2086
        %v2097 = vadd.f32 %v2054, %v2086
        %v2098 = vadd.f32 %v2059, %v2086
        %v2099 = vadd.f32 %v2062, %v2086
        %v2100 = vadd.f32 %v2067, %v2086
        %v2101 = vadd.f32 %v2070, %v2086
        %v2102 = vadd.f32 %v2075, %v2086
        %v2103 = vadd.f32 %v2078, %v2086
        %v2104 = vmax.f32 %v2088, 0.0
        %v2105 = vmax.f32 %v2089, 0.0
        %v2106 = vmax.f32 %v2090, 0.0
        %v2107 = vmax.f32 %v2091, 0.0
        %v2108 = vmax.f32 %v2092, 0.0
        %v2109 = vmax.f32 %v2093, 0.0
        %v2110 = vmax.f32 %v2094, 0.0
        %v2111 = vmax.f32 %v2095, 0.0
        %v2112 = vmax.f32 %v2096, 0.0
        %v2113 = vmax.f32 %v2097, 0.0
        %v2114 = vmax.f32 %v2098, 0.0
        %v2115 = vmax.f32 %v2099, 0.0
        %v2116 = vmax.f32 %v2100, 0.0
        %v2117 = vmax.f32 %v2101, 0.0
        %v2118 = vmax.f32 %v2102, 0.0
        %v2119 = vmax.f32 %v2103, 0.0
        %v2120 = vpack.c.bf16 %v2105, %v2104
        %v2121 = vpack.c.bf16 %v2107, %v2106
        %v2122 = vpack.c.bf16 %v2109, %v2108
        %v2123 = vpack.c.bf16 %v2111, %v2110
        %v2124 = vpack.c.bf16 %v2113, %v2112
        %v2125 = vpack.c.bf16 %v2115, %v2114
        %v2126 = vpack.c.bf16 %v2117, %v2116
        %v2127 = vpack.c.bf16 %v2119, %v2118
        %v2136 = vunpack.c.l.b16 %v2120
        %v2137 = vunpack.c.h.b16 %v2120
        %v2138 = vunpack.c.l.b16 %v2121
        %v2139 = vunpack.c.h.b16 %v2121
        %v2140 = vunpack.c.l.b16 %v2122
        %v2141 = vunpack.c.h.b16 %v2122
        %v2142 = vunpack.c.l.b16 %v2123
        %v2143 = vunpack.c.h.b16 %v2123
        %v2144 = vunpack.c.l.b16 %v2124
        %v2145 = vunpack.c.h.b16 %v2124
        %v2146 = vunpack.c.l.b16 %v2125
        %v2147 = vunpack.c.h.b16 %v2125
        %v2148 = vunpack.c.l.b16 %v2126
        %v2149 = vunpack.c.h.b16 %v2126
        %v2150 = vunpack.c.l.b16 %v2127
        %v2151 = vunpack.c.h.b16 %v2127
        %v2152 = vpack.c.b16 %v2136, %v2136
        %v2153 = vpack.c.b16 %v2137, %v2137
        %v2154 = vpack.c.b16 %v2138, %v2138
        %v2155 = vpack.c.b16 %v2139, %v2139
        %v2156 = vpack.c.b16 %v2140, %v2140
        %v2157 = vpack.c.b16 %v2141, %v2141
        %v2158 = vpack.c.b16 %v2142, %v2142
        %v2159 = vpack.c.b16 %v2143, %v2143
        %v2160 = vpack.c.b16 %v2144, %v2144
        %v2161 = vpack.c.b16 %v2145, %v2145
        %v2162 = vpack.c.b16 %v2146, %v2146
        %v2163 = vpack.c.b16 %v2147, %v2147
        %v2164 = vpack.c.b16 %v2148, %v2148
        %v2165 = vpack.c.b16 %v2149, %v2149
        %v2166 = vpack.c.b16 %v2150, %v2150
        %v2167 = vpack.c.b16 %v2151, %v2151
        %2184 = vst [vmem:[%s626] sm:$0xf] %v2152
        %2185 = vst [vmem:[%s626 + $0x4] sm:$0xf] %v2153
        %2186 = vst [vmem:[%s626 + $0x8] sm:$0xf] %v2154
        %2187 = vst [vmem:[%s626 + $0xc] sm:$0xf] %v2155
        %2188 = vst [vmem:[%s626 + $0x10] sm:$0xf] %v2156
        %2189 = vst [vmem:[%s626 + $0x14] sm:$0xf] %v2157
        %2190 = vst [vmem:[%s626 + $0x18] sm:$0xf] %v2158
        %2191 = vst [vmem:[%s626 + $0x1c] sm:$0xf] %v2159
        %2192 = vst [vmem:[%s626 + $0x20] sm:$0xf] %v2160
        %2193 = vst [vmem:[%s626 + $0x24] sm:$0xf] %v2161
        %2194 = vst [vmem:[%s626 + $0x28] sm:$0xf] %v2162
        %2195 = vst [vmem:[%s626 + $0x2c] sm:$0xf] %v2163
        %2196 = vst [vmem:[%s626 + $0x30] sm:$0xf] %v2164
        %2197 = vst [vmem:[%s626 + $0x34] sm:$0xf] %v2165
        %2198 = vst [vmem:[%s626 + $0x38] sm:$0xf] %v2166
        %2199 = vst [vmem:[%s626 + $0x3c] sm:$0xf] %v2167
        %s2200 = sand.u32 %s348, 1
        %s2201 = scalar_lea.sflag [#allocation4], %s2200
        %s2202 = sand.u32 %s348, 1
        %s2203 = smul.addr %s2202, 64
        %s2204 = scalar_lea.vmem [#allocation16], %s2203
        // Predicated region
        $region105: #{tpu_custom_call.1} parent=71 // pred_check
          %p2205 = pneg %p358
        $region106: #{tpu_custom_call.1} parent=71 // pred_check_branch
          %2207 = sbr.rel (%p2205) target = $region108
        $region107: #{tpu_custom_call.1} parent=71 // pred_region
          %s2208 = smul.u32 16, %s41
          %s2210 = ssub.s32 1024, 1024
          %2211 = vsyncadd %s2201, %s2210
          %s2212 = smul.addr %s40, 32
          %s2213 = sadd.s32 %s2208, %s2212
          %s2214 = smul.addr %s2213, 64
          %s2215 = scalar_lea.hbm %s13, %s2214
          %s2216 = sshll.u32 %s2204, 4
          %s2217 = int_to_ptr.vmem [resolvable:$true] %s2216
          %2222 = dma.vmem_to_hbm [thread:$0]  %s2217, 1024, %s2215, %s2201, 64, 64, 4
        $region108: #{tpu_custom_call.1} parent=71 // pred_fallthru
          _
      $region72: #{tpu_custom_call.1} parent=5 // pred_fallthru
        _
      %p2223 = scmp.le.s32.totalorder 2, %s31
      // Predicated region
      $region109: #{tpu_custom_call.1} parent=5 // pred_check
        %p2224 = pneg %p2223
      $region110: #{tpu_custom_call.1} parent=5 // pred_check_branch
        %2226 = sbr.rel (%p2224) target = $region112
      $region111: #{tpu_custom_call.1} parent=5 // pred_region
        %s2227 = ssub.s32 %s31, 2
        // Predicated region
        $region113: #{tpu_custom_call.1} parent=111 // pred_check
          %p2228 = pneg %p364
        $region114: #{tpu_custom_call.1} parent=111 // pred_check_branch
          %2230 = sbr.rel (%p2228) target = $region116
        $region115: #{tpu_custom_call.1} parent=111 // pred_region
          %s2231 = sand.u32 %s349, 1
          %s2232 = scalar_lea.sflag [#allocation4], %s2231
          %s2233 = sand.u32 %s349, 1
          %s2234 = smul.addr %s2233, 64
          %s2235 = scalar_lea.vmem [#allocation16], %s2234
          %2236 = dma.done %s2232, 1024
        $region116: #{tpu_custom_call.1} parent=111 // pred_fallthru
          _
      $region112: #{tpu_custom_call.1} parent=5 // pred_fallthru
        _
    $region6: #{tpu_custom_call.1} parent=1 // loop_footer
      %s35 = sadd.s32 1, %s31
    $region7: #{tpu_custom_call.1} parent=1 // loop_footer_branch
      %30 = sbr.rel target = $region3
    $region8: #{tpu_custom_call.1} parent=1 // loop_exit
      _
    %2237 = vsyncpa [#allocation3], 1
    %s2238 = scalar_lea.sflag [#allocation3], 1
    %2239 = vsyncpa %s2238, 1
    %2240 = vsyncpa [#allocation6], 1
    %s2241 = scalar_lea.sflag [#allocation6], 1
    %2242 = vsyncpa %s2241, 1
    %2243 = vsyncpa [#allocation9], 1
    %2244 = vsyncpa [#allocation12], 1
    %2245 = vsyncpa [#allocation15], 1
    %2246 = vsyncpa [#allocation4], 1
    %s2247 = scalar_lea.sflag [#allocation4], 1
    %2248 = vsyncpa %s2247, 1

// kernel: tpu_custom_call.1
$region0: #{tpu_custom_call.1}
  #allocation0 [shape = 'u32[]', space=smem, size = 0x4, offset = 0x4, fixed_abs, tag = 'smem constant byte address 0x4 - core index']
  #allocation1 [shape = 'u32[144,128]{1,0:T(1,128)}', space=vmem, size = 0x12000, scoped, tag = 'internal scratch']
  %s0 = inlined_call_operand.hbm [shape: bf16[2,256,128], index: 0, kind: input, shape index: {}]
  %s1 = inlined_call_operand.hbm [shape: bf16[2,128,128], index: 1, kind: input, shape index: {}]
  %s2 = inlined_call_operand.hbm [shape: bf16[2,128,128], index: 2, kind: input, shape index: {}]
  %s3 = inlined_call_operand.vmem [shape: f32[1,128], index: 3, kind: input, shape index: {}]
  %s4 = inlined_call_operand.hbm [shape: bf16[128,128], index: 4, kind: input, shape index: {}]
  %s5 = inlined_call_operand.vmem [shape: f32[1,128], index: 5, kind: input, shape index: {}]
  %s6 = inlined_call_operand.hbm [shape: bf16[128,128], index: 6, kind: input, shape index: {}]
  %s7 = inlined_call_operand.vmem [shape: f32[1,128], index: 7, kind: input, shape index: {}]
  %s8 = inlined_call_operand.hbm [shape: bf16[128,128], index: 8, kind: input, shape index: {}]
  %s9 = inlined_call_operand.vmem [shape: f32[1,128], index: 9, kind: input, shape index: {}]
  %s10 = inlined_call_operand.hbm [shape: bf16[128,128], index: 10, kind: input, shape index: {}]
  %s11 = inlined_call_operand.hbm [shape: bf16[128,128], index: 11, kind: input, shape index: {}]
  %s12 = inlined_call_operand.vmem [shape: f32[1,128], index: 12, kind: input, shape index: {}]
  %s13 = inlined_call_operand.hbm [shape: bf16[2,256,128], index: 13, kind: output, shape index: {}]
  %s14 = sld [smem:[#allocation0]]
  $region117: #{tpu_custom_call.1} parent=0
    _
  %s16 = ssub.s32 1, %s14
  %s17 = scalar_select 0, %s16, %s14
  $region1: #{tpu_custom_call.1} parent=0
    #allocation2 [shape = 'u8[65536]{0}', space=vmem, size = 0x10000, scoped, tag = 'input window, operand 0']
    #allocation3 [shape = 's32[2]{0}', space=sflag, size = 0x8, scoped, tag = 'scoped memory for tpu_custom_call.1']
    #allocation4 [shape = 's32[2]{0}', space=sflag, size = 0x8, scoped, tag = 'scoped memory for tpu_custom_call.1']
    #allocation5 [shape = 'u8[65536]{0}', space=vmem, size = 0x10000, scoped, tag = 'input window, operand 1']
    #allocation6 [shape = 's32[2]{0}', space=sflag, size = 0x8, scoped, tag = 'scoped memory for tpu_custom_call.1']
    #allocation7 [shape = 'u8[65536]{0}', space=vmem, size = 0x10000, scoped, tag = 'input window, operand 2']
    #allocation8 [shape = 'u8[32768]{0}', space=vmem, size = 0x8000, scoped, tag = 'input window, operand 4, single buffered']
    #allocation9 [shape = 's32[1]{0}', space=sflag, size = 0x4, scoped, tag = 'scoped memory for tpu_custom_call.1']
    #allocation10 [shape = 'u8[32768]{0}', space=vmem, size = 0x8000, scoped, tag = 'input window, operand 6, single buffered']
    #allocation11 [shape = 'u8[32768]{0}', space=vmem, size = 0x8000, scoped, tag = 'input window, operand 8, single buffered']
    #allocation12 [shape = 's32[1]{0}', space=sflag, size = 0x4, scoped, tag = 'scoped memory for tpu_custom_call.1']
    #allocation13 [shape = 'u8[32768]{0}', space=vmem, size = 0x8000, scoped, tag = 'input window, operand 10, single buffered']
    #allocation14 [shape = 'u8[32768]{0}', space=vmem, size = 0x8000, scoped, tag = 'input window, operand 11, single buffered']
    #allocation15 [shape = 's32[1]{0}', space=sflag, size = 0x4, scoped, tag = 'scoped memory for tpu_custom_call.1']
    #allocation16 [shape = 'u8[65536]{0}', space=vmem, size = 0x10000, scoped, tag = 'output window, operand 0']
    %18 = vsyncpa [#allocation3], 0
    %s19 = scalar_lea.sflag [#allocation3], 1
    %20 = vsyncpa %s19, 0
    %21 = vsyncpa [#allocation6], 0
    %s22 = scalar_lea.sflag [#allocation6], 1
    %23 = vsyncpa %s22, 0
    %24 = vsyncpa [#allocation9], 0
    %25 = vsyncpa [#allocation12], 0
    %26 = vsyncpa [#allocation15], 0
    %27 = vsyncpa [#allocation4], 0
    %s28 = scalar_lea.sflag [#allocation4], 1
    %29 = vsyncpa %s28, 0
    loop: start=0, step=1, limit=6
    $region2: #{tpu_custom_call.1} parent=1 // loop_pre_header
      _
    $region3: #{tpu_custom_call.1} parent=1 // loop_header
      %s31 = sphi 0, %s35
      %p32 = scmp.ge.s32.totalorder %s31, 6
      %s38 = sphi 0, %s50
      %s39 = sphi 0, %s46
      %s40 = sphi 0, %s38
      %s41 = sphi 0, %s39
      %s42 = sphi 0, %s40
      %s43 = sphi 0, %s41
      %s55 = sphi 0, %s57
      %s58 = sphi 0, %s55
      %s59 = sphi 0, %s58
      %s75 = sphi 0, %s59
      %s81 = sphi 0, %s83
      %s84 = sphi 0, %s81
      %s85 = sphi 0, %s84
      %s101 = sphi 0, %s85
      %s107 = sphi 0, %s109
      %s110 = sphi 0, %s107
      %s111 = sphi 0, %s110
      %s127 = sphi 0, %s111
      %s131 = sphi 0, %s131
      %s133 = sphi 0, %s131
      %s134 = sphi 0, %s133
      %s148 = sphi 0, %s134
      %s152 = sphi 0, %s152
      %s154 = sphi 0, %s152
      %s155 = sphi 0, %s154
      %s169 = sphi 0, %s155
      %s173 = sphi 0, %s173
      %s175 = sphi 0, %s173
      %s176 = sphi 0, %s175
      %s190 = sphi 0, %s176
      %s194 = sphi 0, %s194
      %s196 = sphi 0, %s194
      %s197 = sphi 0, %s196
      %s211 = sphi 0, %s197
      %s215 = sphi 0, %s215
      %s217 = sphi 0, %s215
      %s218 = sphi 0, %s217
      %s232 = sphi 0, %s218
      %s236 = sphi 0, %s236
      %s238 = sphi 0, %s236
      %s239 = sphi 0, %s238
      %s253 = sphi 0, %s239
      %s257 = sphi 0, %s257
      %s259 = sphi 0, %s257
      %s260 = sphi 0, %s259
      %s274 = sphi 0, %s260
      %s278 = sphi 0, %s278
      %s280 = sphi 0, %s278
      %s281 = sphi 0, %s280
      %s295 = sphi 0, %s281
      %s299 = sphi 0, %s299
      %s301 = sphi 0, %s299
      %s302 = sphi 0, %s301
      %s316 = sphi 0, %s302
      %s320 = sphi 0, %s320
      %s322 = sphi 0, %s320
      %s323 = sphi 0, %s322
      %s337 = sphi 0, %s323
      %s345 = sphi 0, %s347
      %s348 = sphi 0, %s345
      %s349 = sphi 0, %s348
      %s365 = sphi 0, %s349
    $region4: #{tpu_custom_call.1} parent=1 // loop_header_branch
      %34 = sbr.rel (%p32) target = $region8
    $region5: #{tpu_custom_call.1} parent=1 // loop_body
      %s36 = ssub.s32 %s31, 1
      %s37 = ssub.s32 %s31, 2
      %s44 = sadd.s32 1, %s39
      %p45 = scmp.ge.s32.totalorder %s44, 2
      %s46 = scalar_select %p45, 0, %s44
      %s47 = sadd.s32 1, %s38
      %s48 = scalar_select %p45, %s47, %s38
      %p49 = scmp.ge.s32.totalorder %s48, 2
      %s50 = scalar_select %p49, 0, %s48
      %s51 = ssub.s32 %s38, %s50
      %s52 = ssub.s32 %s39, %s46
      %s53 = sor.u32 %s51, %s52
      %p54 = scmp.eq.s32.totalorder %s53, 0
      %s56 = sadd.s32 %s55, 1
      %s57 = scalar_select %p54, %s55, %s56
      %p60 = pneg %p54
      %p61 = scmp.eq.s32.totalorder %s31, 3
      %p62 = por %p60, %p61
      %p63 = scmp.ne.s32.totalorder %s55, %s58
      %p64 = scmp.eq.s32.totalorder %s31, 0
      %p65 = por %p63, %p64
      %p66 = scmp.ne.s32.totalorder %s55, %s58
      %p67 = scmp.eq.s32.totalorder %s36, 3
      %p68 = por %p66, %p67
      %p69 = scmp.ne.s32.totalorder %s58, %s59
      %p70 = scmp.eq.s32.totalorder %s36, 0
      %p71 = por %p69, %p70
      %p72 = scmp.ne.s32.totalorder %s58, %s59
      %p73 = scmp.eq.s32.totalorder %s37, 3
      %p74 = por %p72, %p73
      %p76 = scmp.ne.s32.totalorder %s59, %s75
      %p77 = scmp.eq.s32.totalorder %s37, 0
      %p78 = por %p76, %p77
      %s79 = ssub.s32 %s38, %s50
      %p80 = scmp.eq.s32.totalorder %s79, 0
      %s82 = sadd.s32 %s81, 1
      %s83 = scalar_select %p80, %s81, %s82
      %p86 = pneg %p80
      %p87 = scmp.eq.s32.totalorder %s31, 3
      %p88 = por %p86, %p87
      %p89 = scmp.ne.s32.totalorder %s81, %s84
      %p90 = scmp.eq.s32.totalorder %s31, 0
      %p91 = por %p89, %p90
      %p92 = scmp.ne.s32.totalorder %s81, %s84
      %p93 = scmp.eq.s32.totalorder %s36, 3
      %p94 = por %p92, %p93
      %p95 = scmp.ne.s32.totalorder %s84, %s85
      %p96 = scmp.eq.s32.totalorder %s36, 0
      %p97 = por %p95, %p96
      %p98 = scmp.ne.s32.totalorder %s84, %s85
      %p99 = scmp.eq.s32.totalorder %s37, 3
      %p100 = por %p98, %p99
      %p102 = scmp.ne.s32.totalorder %s85, %s101
      %p103 = scmp.eq.s32.totalorder %s37, 0
      %p104 = por %p102, %p103
      %s105 = ssub.s32 %s38, %s50
      %p106 = scmp.eq.s32.totalorder %s105, 0
      %s108 = sadd.s32 %s107, 1
      %s109 = scalar_select %p106, %s107, %s108
      %p112 = pneg %p106
      %p113 = scmp.eq.s32.totalorder %s31, 3
      %p114 = por %p112, %p113
      %p115 = scmp.ne.s32.totalorder %s107, %s110
      %p116 = scmp.eq.s32.totalorder %s31, 0
      %p117 = por %p115, %p116
      %p118 = scmp.ne.s32.totalorder %s107, %s110
      %p119 = scmp.eq.s32.totalorder %s36, 3
      %p120 = por %p118, %p119
      %p121 = scmp.ne.s32.totalorder %s110, %s111
      %p122 = scmp.eq.s32.totalorder %s36, 0
      %p123 = por %p121, %p122
      %p124 = scmp.ne.s32.totalorder %s110, %s111
      %p125 = scmp.eq.s32.totalorder %s37, 3
      %p126 = por %p124, %p125
      %p128 = scmp.ne.s32.totalorder %s111, %s127
      %p129 = scmp.eq.s32.totalorder %s37, 0
      %p130 = por %p128, %p129
      %s132 = sadd.s32 %s131, 1
      %p135 = scmp.eq.s32.totalorder %s31, 3
      %p136 = scmp.ne.s32.totalorder %s131, %s133
      %p137 = scmp.eq.s32.totalorder %s31, 0
      %p138 = por %p136, %p137
      %p139 = scmp.ne.s32.totalorder %s131, %s133
      %p140 = scmp.eq.s32.totalorder %s36, 3
      %p141 = por %p139, %p140
      %p142 = scmp.ne.s32.totalorder %s133, %s134
      %p143 = scmp.eq.s32.totalorder %s36, 0
      %p144 = por %p142, %p143
      %p145 = scmp.ne.s32.totalorder %s133, %s134
      %p146 = scmp.eq.s32.totalorder %s37, 3
      %p147 = por %p145, %p146
      %p149 = scmp.ne.s32.totalorder %s134, %s148
      %p150 = scmp.eq.s32.totalorder %s37, 0
      %p151 = por %p149, %p150
      %s153 = sadd.s32 %s152, 1
      %p156 = scmp.eq.s32.totalorder %s31, 3
      %p157 = scmp.ne.s32.totalorder %s152, %s154
      %p158 = scmp.eq.s32.totalorder %s31, 0
      %p159 = por %p157, %p158
      %p160 = scmp.ne.s32.totalorder %s152, %s154
      %p161 = scmp.eq.s32.totalorder %s36, 3
      %p162 = por %p160, %p161
      %p163 = scmp.ne.s32.totalorder %s154, %s155
      %p164 = scmp.eq.s32.totalorder %s36, 0
      %p165 = por %p163, %p164
      %p166 = scmp.ne.s32.totalorder %s154, %s155
      %p167 = scmp.eq.s32.totalorder %s37, 3
      %p168 = por %p166, %p167
      %p170 = scmp.ne.s32.totalorder %s155, %s169
      %p171 = scmp.eq.s32.totalorder %s37, 0
      %p172 = por %p170, %p171
      %s174 = sadd.s32 %s173, 1
      %p177 = scmp.eq.s32.totalorder %s31, 3
      %p178 = scmp.ne.s32.totalorder %s173, %s175
      %p179 = scmp.eq.s32.totalorder %s31, 0
      %p180 = por %p178, %p179
      %p181 = scmp.ne.s32.totalorder %s173, %s175
      %p182 = scmp.eq.s32.totalorder %s36, 3
      %p183 = por %p181, %p182
      %p184 = scmp.ne.s32.totalorder %s175, %s176
      %p185 = scmp.eq.s32.totalorder %s36, 0
      %p186 = por %p184, %p185
      %p187 = scmp.ne.s32.totalorder %s175, %s176
      %p188 = scmp.eq.s32.totalorder %s37, 3
      %p189 = por %p187, %p188
      %p191 = scmp.ne.s32.totalorder %s176, %s190
      %p192 = scmp.eq.s32.totalorder %s37, 0
      %p193 = por %p191, %p192
      %s195 = sadd.s32 %s194, 1
      %p198 = scmp.eq.s32.totalorder %s31, 3
      %p199 = scmp.ne.s32.totalorder %s194, %s196
      %p200 = scmp.eq.s32.totalorder %s31, 0
      %p201 = por %p199, %p200
      %p202 = scmp.ne.s32.totalorder %s194, %s196
      %p203 = scmp.eq.s32.totalorder %s36, 3
      %p204 = por %p202, %p203
      %p205 = scmp.ne.s32.totalorder %s196, %s197
      %p206 = scmp.eq.s32.totalorder %s36, 0
      %p207 = por %p205, %p206
      %p208 = scmp.ne.s32.totalorder %s196, %s197
      %p209 = scmp.eq.s32.totalorder %s37, 3
      %p210 = por %p208, %p209
      %p212 = scmp.ne.s32.totalorder %s197, %s211
      %p213 = scmp.eq.s32.totalorder %s37, 0
      %p214 = por %p212, %p213
      %s216 = sadd.s32 %s215, 1
      %p219 = scmp.eq.s32.totalorder %s31, 3
      %p220 = scmp.ne.s32.totalorder %s215, %s217
      %p221 = scmp.eq.s32.totalorder %s31, 0
      %p222 = por %p220, %p221
      %p223 = scmp.ne.s32.totalorder %s215, %s217
      %p224 = scmp.eq.s32.totalorder %s36, 3
      %p225 = por %p223, %p224
      %p226 = scmp.ne.s32.totalorder %s217, %s218
      %p227 = scmp.eq.s32.totalorder %s36, 0
      %p228 = por %p226, %p227
      %p229 = scmp.ne.s32.totalorder %s217, %s218
      %p230 = scmp.eq.s32.totalorder %s37, 3
      %p231 = por %p229, %p230
      %p233 = scmp.ne.s32.totalorder %s218, %s232
      %p234 = scmp.eq.s32.totalorder %s37, 0
      %p235 = por %p233, %p234
      %s237 = sadd.s32 %s236, 1
      %p240 = scmp.eq.s32.totalorder %s31, 3
      %p241 = scmp.ne.s32.totalorder %s236, %s238
      %p242 = scmp.eq.s32.totalorder %s31, 0
      %p243 = por %p241, %p242
      %p244 = scmp.ne.s32.totalorder %s236, %s238
      %p245 = scmp.eq.s32.totalorder %s36, 3
      %p246 = por %p244, %p245
      %p247 = scmp.ne.s32.totalorder %s238, %s239
      %p248 = scmp.eq.s32.totalorder %s36, 0
      %p249 = por %p247, %p248
      %p250 = scmp.ne.s32.totalorder %s238, %s239
      %p251 = scmp.eq.s32.totalorder %s37, 3
      %p252 = por %p250, %p251
      %p254 = scmp.ne.s32.totalorder %s239, %s253
      %p255 = scmp.eq.s32.totalorder %s37, 0
      %p256 = por %p254, %p255
      %s258 = sadd.s32 %s257, 1
      %p261 = scmp.eq.s32.totalorder %s31, 3
      %p262 = scmp.ne.s32.totalorder %s257, %s259
      %p263 = scmp.eq.s32.totalorder %s31, 0
      %p264 = por %p262, %p263
      %p265 = scmp.ne.s32.totalorder %s257, %s259
      %p266 = scmp.eq.s32.totalorder %s36, 3
      %p267 = por %p265, %p266
      %p268 = scmp.ne.s32.totalorder %s259, %s260
      %p269 = scmp.eq.s32.totalorder %s36, 0
      %p270 = por %p268, %p269
      %p271 = scmp.ne.s32.totalorder %s259, %s260
      %p272 = scmp.eq.s32.totalorder %s37, 3
      %p273 = por %p271, %p272
      %p275 = scmp.ne.s32.totalorder %s260, %s274
      %p276 = scmp.eq.s32.totalorder %s37, 0
      %p277 = por %p275, %p276
      %s279 = sadd.s32 %s278, 1
      %p282 = scmp.eq.s32.totalorder %s31, 3
      %p283 = scmp.ne.s32.totalorder %s278, %s280
      %p284 = scmp.eq.s32.totalorder %s31, 0
      %p285 = por %p283, %p284
      %p286 = scmp.ne.s32.totalorder %s278, %s280
      %p287 = scmp.eq.s32.totalorder %s36, 3
      %p288 = por %p286, %p287
      %p289 = scmp.ne.s32.totalorder %s280, %s281
      %p290 = scmp.eq.s32.totalorder %s36, 0
      %p291 = por %p289, %p290
      %p292 = scmp.ne.s32.totalorder %s280, %s281
      %p293 = scmp.eq.s32.totalorder %s37, 3
      %p294 = por %p292, %p293
      %p296 = scmp.ne.s32.totalorder %s281, %s295
      %p297 = scmp.eq.s32.totalorder %s37, 0
      %p298 = por %p296, %p297
      %s300 = sadd.s32 %s299, 1
      %p303 = scmp.eq.s32.totalorder %s31, 3
      %p304 = scmp.ne.s32.totalorder %s299, %s301
      %p305 = scmp.eq.s32.totalorder %s31, 0
      %p306 = por %p304, %p305
      %p307 = scmp.ne.s32.totalorder %s299, %s301
      %p308 = scmp.eq.s32.totalorder %s36, 3
      %p309 = por %p307, %p308
      %p310 = scmp.ne.s32.totalorder %s301, %s302
      %p311 = scmp.eq.s32.totalorder %s36, 0
      %p312 = por %p310, %p311
      %p313 = scmp.ne.s32.totalorder %s301, %s302
      %p314 = scmp.eq.s32.totalorder %s37, 3
      %p315 = por %p313, %p314
      %p317 = scmp.ne.s32.totalorder %s302, %s316
      %p318 = scmp.eq.s32.totalorder %s37, 0
      %p319 = por %p317, %p318
      %s321 = sadd.s32 %s320, 1
      %p324 = scmp.eq.s32.totalorder %s31, 3
      %p325 = scmp.ne.s32.totalorder %s320, %s322
      %p326 = scmp.eq.s32.totalorder %s31, 0
      %p327 = por %p325, %p326
      %p328 = scmp.ne.s32.totalorder %s320, %s322
      %p329 = scmp.eq.s32.totalorder %s36, 3
      %p330 = por %p328, %p329
      %p331 = scmp.ne.s32.totalorder %s322, %s323
      %p332 = scmp.eq.s32.totalorder %s36, 0
      %p333 = por %p331, %p332
      %p334 = scmp.ne.s32.totalorder %s322, %s323
      %p335 = scmp.eq.s32.totalorder %s37, 3
      %p336 = por %p334, %p335
      %p338 = scmp.ne.s32.totalorder %s323, %s337
      %p339 = scmp.eq.s32.totalorder %s37, 0
      %p340 = por %p338, %p339
      %s341 = ssub.s32 %s38, %s50
      %s342 = ssub.s32 %s39, %s46
      %s343 = sor.u32 %s341, %s342
      %p344 = scmp.eq.s32.totalorder %s343, 0
      %s346 = sadd.s32 %s345, 1
      %s347 = scalar_select %p344, %s345, %s346
      %p350 = pneg %p344
      %p351 = scmp.eq.s32.totalorder %s31, 3
      %p352 = por %p350, %p351
      %p353 = scmp.ne.s32.totalorder %s345, %s348
      %p354 = scmp.eq.s32.totalorder %s31, 0
      %p355 = por %p353, %p354
      %p356 = scmp.ne.s32.totalorder %s345, %s348
      %p357 = scmp.eq.s32.totalorder %s36, 3
      %p358 = por %p356, %p357
      %p359 = scmp.ne.s32.totalorder %s348, %s349
      %p360 = scmp.eq.s32.totalorder %s36, 0
      %p361 = por %p359, %p360
      %p362 = scmp.ne.s32.totalorder %s348, %s349
      %p363 = scmp.eq.s32.totalorder %s37, 3
      %p364 = por %p362, %p363
      %p366 = scmp.ne.s32.totalorder %s349, %s365
      %p367 = scmp.eq.s32.totalorder %s37, 0
      %p368 = por %p366, %p367
      %p369 = scmp.le.s32.totalorder 1, %s31
      %p370 = scmp.lt.s32.totalorder %s31, 5
      %p371 = pnand %p369, %p370
      %p372 = pneg %p371
      // Predicated region
      $region9: #{tpu_custom_call.1} parent=5 // pred_check
        _
      $region10: #{tpu_custom_call.1} parent=5 // pred_check_branch
        %374 = sbr.rel (%p371) target = $region12
      $region11: #{tpu_custom_call.1} parent=5 // pred_region
        %s375 = ssub.s32 %s31, 1
        // Predicated region
        $region13: #{tpu_custom_call.1} parent=11 // pred_check
          %p376 = pneg %p144
        $region14: #{tpu_custom_call.1} parent=11 // pred_check_branch
          %378 = sbr.rel (%p376) target = $region16
        $region15: #{tpu_custom_call.1} parent=11 // pred_region
          _
        $region16: #{tpu_custom_call.1} parent=11 // pred_fallthru
          _
        // Predicated region
        $region17: #{tpu_custom_call.1} parent=11 // pred_check
          %p379 = pneg %p165
        $region18: #{tpu_custom_call.1} parent=11 // pred_check_branch
          %381 = sbr.rel (%p379) target = $region20
        $region19: #{tpu_custom_call.1} parent=11 // pred_region
          %s383 = ssub.s32 1024, 1024
          %384 = vsyncadd [#allocation9], %s383
          %s385 = sshll.u32 [#allocation8], 4
          %s386 = int_to_ptr.vmem [resolvable:$true] %s385
          %391 = dma.hbm_to_vmem [thread:$0]  %s4, 1024, %s386, [#allocation9], 64, 64, 4
        $region20: #{tpu_custom_call.1} parent=11 // pred_fallthru
          _
        // Predicated region
        $region21: #{tpu_custom_call.1} parent=11 // pred_check
          %p392 = pneg %p186
        $region22: #{tpu_custom_call.1} parent=11 // pred_check_branch
          %394 = sbr.rel (%p392) target = $region24
        $region23: #{tpu_custom_call.1} parent=11 // pred_region
          _
        $region24: #{tpu_custom_call.1} parent=11 // pred_fallthru
          _
        // Predicated region
        $region25: #{tpu_custom_call.1} parent=11 // pred_check
          %p395 = pneg %p207
        $region26: #{tpu_custom_call.1} parent=11 // pred_check_branch
          %397 = sbr.rel (%p395) target = $region28
        $region27: #{tpu_custom_call.1} parent=11 // pred_region
          %s399 = ssub.s32 1024, 1024
          %400 = vsyncadd [#allocation9], %s399
          %s401 = sshll.u32 [#allocation10], 4
          %s402 = int_to_ptr.vmem [resolvable:$true] %s401
          %407 = dma.hbm_to_vmem [thread:$0]  %s6, 1024, %s402, [#allocation9], 64, 64, 4
        $region28: #{tpu_custom_call.1} parent=11 // pred_fallthru
          _
        // Predicated region
        $region29: #{tpu_custom_call.1} parent=11 // pred_check
          %p408 = pneg %p228
        $region30: #{tpu_custom_call.1} parent=11 // pred_check_branch
          %410 = sbr.rel (%p408) target = $region32
        $region31: #{tpu_custom_call.1} parent=11 // pred_region
          _
        $region32: #{tpu_custom_call.1} parent=11 // pred_fallthru
          _
        // Predicated region
        $region33: #{tpu_custom_call.1} parent=11 // pred_check
          %p411 = pneg %p249
        $region34: #{tpu_custom_call.1} parent=11 // pred_check_branch
          %413 = sbr.rel (%p411) target = $region36
        $region35: #{tpu_custom_call.1} parent=11 // pred_region
          %s415 = ssub.s32 1024, 1024
          %416 = vsyncadd [#allocation12], %s415
          %s417 = sshll.u32 [#allocation11], 4
          %s418 = int_to_ptr.vmem [resolvable:$true] %s417
          %423 = dma.hbm_to_vmem [thread:$0]  %s8, 1024, %s418, [#allocation12], 64, 64, 4
        $region36: #{tpu_custom_call.1} parent=11 // pred_fallthru
          _
        // Predicated region
        $region37: #{tpu_custom_call.1} parent=11 // pred_check
          %p424 = pneg %p270
        $region38: #{tpu_custom_call.1} parent=11 // pred_check_branch
          %426 = sbr.rel (%p424) target = $region40
        $region39: #{tpu_custom_call.1} parent=11 // pred_region
          _
        $region40: #{tpu_custom_call.1} parent=11 // pred_fallthru
          _
        // Predicated region
        $region41: #{tpu_custom_call.1} parent=11 // pred_check
          %p427 = pneg %p291
        $region42: #{tpu_custom_call.1} parent=11 // pred_check_branch
          %429 = sbr.rel (%p427) target = $region44
        $region43: #{tpu_custom_call.1} parent=11 // pred_region
          %s431 = ssub.s32 1024, 1024
          %432 = vsyncadd [#allocation12], %s431
          %s433 = sshll.u32 [#allocation13], 4
          %s434 = int_to_ptr.vmem [resolvable:$true] %s433
          %439 = dma.hbm_to_vmem [thread:$0]  %s10, 1024, %s434, [#allocation12], 64, 64, 4
        $region44: #{tpu_custom_call.1} parent=11 // pred_fallthru
          _
        // Predicated region
        $region45: #{tpu_custom_call.1} parent=11 // pred_check
          %p440 = pneg %p312
        $region46: #{tpu_custom_call.1} parent=11 // pred_check_branch
          %442 = sbr.rel (%p440) target = $region48
        $region47: #{tpu_custom_call.1} parent=11 // pred_region
          %s444 = ssub.s32 1024, 1024
          %445 = vsyncadd [#allocation15], %s444
          %s446 = sshll.u32 [#allocation14], 4
          %s447 = int_to_ptr.vmem [resolvable:$true] %s446
          %452 = dma.hbm_to_vmem [thread:$0]  %s11, 1024, %s447, [#allocation15], 64, 64, 4
        $region48: #{tpu_custom_call.1} parent=11 // pred_fallthru
          _
        // Predicated region
        $region49: #{tpu_custom_call.1} parent=11 // pred_check
          %p453 = pneg %p333
        $region50: #{tpu_custom_call.1} parent=11 // pred_check_branch
          %455 = sbr.rel (%p453) target = $region52
        $region51: #{tpu_custom_call.1} parent=11 // pred_region
          _
        $region52: #{tpu_custom_call.1} parent=11 // pred_fallthru
          _
      $region12: #{tpu_custom_call.1} parent=5 // pred_fallthru
        _
      %p456 = scmp.lt.s32.totalorder %s31, 4
      // Predicated region
      $region53: #{tpu_custom_call.1} parent=5 // pred_check
        %p457 = pneg %p456
      $region54: #{tpu_custom_call.1} parent=5 // pred_check_branch
        %459 = sbr.rel (%p457) target = $region56
      $region55: #{tpu_custom_call.1} parent=5 // pred_region
        // Predicated region
        $region57: #{tpu_custom_call.1} parent=55 // pred_check
          %p460 = pneg %p65
        $region58: #{tpu_custom_call.1} parent=55 // pred_check_branch
          %462 = sbr.rel (%p460) target = $region60
        $region59: #{tpu_custom_call.1} parent=55 // pred_region
          %s463 = sand.u32 %s55, 1
          %s464 = scalar_lea.sflag [#allocation3], %s463
          %s465 = sand.u32 %s55, 1
          %s466 = smul.addr %s465, 64
          %s467 = scalar_lea.vmem [#allocation2], %s466
          %s468 = smul.u32 16, %s39
          %s470 = ssub.s32 1024, 1024
          %471 = vsyncadd %s464, %s470
          %s472 = smul.addr %s38, 32
          %s473 = sadd.s32 %s468, %s472
          %s474 = smul.addr %s473, 64
          %s475 = scalar_lea.hbm %s0, %s474
          %s476 = sshll.u32 %s467, 4
          %s477 = int_to_ptr.vmem [resolvable:$true] %s476
          %482 = dma.hbm_to_vmem [thread:$0]  %s475, 1024, %s477, %s464, 64, 64, 4
        $region60: #{tpu_custom_call.1} parent=55 // pred_fallthru
          _
        // Predicated region
        $region61: #{tpu_custom_call.1} parent=55 // pred_check
          %p483 = pneg %p91
        $region62: #{tpu_custom_call.1} parent=55 // pred_check_branch
          %485 = sbr.rel (%p483) target = $region64
        $region63: #{tpu_custom_call.1} parent=55 // pred_region
          %s486 = sand.u32 %s31, 1
          %s487 = scalar_lea.sflag [#allocation6], %s486
          %s488 = sand.u32 %s81, 1
          %s489 = smul.addr %s488, 64
          %s490 = scalar_lea.vmem [#allocation5], %s489
          %s492 = ssub.s32 1024, 1024
          %493 = vsyncadd %s487, %s492
          %s494 = smul.addr %s38, 16
          %s495 = smul.addr %s494, 64
          %s496 = scalar_lea.hbm %s1, %s495
          %s497 = sshll.u32 %s490, 4
          %s498 = int_to_ptr.vmem [resolvable:$true] %s497
          %503 = dma.hbm_to_vmem [thread:$0]  %s496, 1024, %s498, %s487, 64, 64, 4
        $region64: #{tpu_custom_call.1} parent=55 // pred_fallthru
          _
        // Predicated region
        $region65: #{tpu_custom_call.1} parent=55 // pred_check
          %p504 = pneg %p117
        $region66: #{tpu_custom_call.1} parent=55 // pred_check_branch
          %506 = sbr.rel (%p504) target = $region68
        $region67: #{tpu_custom_call.1} parent=55 // pred_region
          %s507 = sand.u32 %s31, 1
          %s508 = scalar_lea.sflag [#allocation6], %s507
          %s509 = sand.u32 %s107, 1
          %s510 = smul.addr %s509, 64
          %s511 = scalar_lea.vmem [#allocation7], %s510
          %s513 = ssub.s32 1024, 1024
          %514 = vsyncadd %s508, %s513
          %s515 = smul.addr %s38, 16
          %s516 = smul.addr %s515, 64
          %s517 = scalar_lea.hbm %s2, %s516
          %s518 = sshll.u32 %s511, 4
          %s519 = int_to_ptr.vmem [resolvable:$true] %s518
          %524 = dma.hbm_to_vmem [thread:$0]  %s517, 1024, %s519, %s508, 64, 64, 4
        $region68: #{tpu_custom_call.1} parent=55 // pred_fallthru
          _
      $region56: #{tpu_custom_call.1} parent=5 // pred_fallthru
        _
      %p525 = scmp.le.s32.totalorder 1, %s31
      %p526 = scmp.lt.s32.totalorder %s31, 5
      %p527 = pnand %p525, %p526
      %p528 = pneg %p527
      // Predicated region
      $region69: #{tpu_custom_call.1} parent=5 // pred_check
        _
      $region70: #{tpu_custom_call.1} parent=5 // pred_check_branch
        %530 = sbr.rel (%p527) target = $region72
      $region71: #{tpu_custom_call.1} parent=5 // pred_region
        %s531 = ssub.s32 %s31, 1
        %s532 = sand.u32 %s58, 1
        %s533 = scalar_lea.sflag [#allocation3], %s532
        %s534 = sand.u32 %s58, 1
        %s535 = smul.addr %s534, 64
        %s536 = scalar_lea.vmem [#allocation2], %s535
        // Predicated region
        $region73: #{tpu_custom_call.1} parent=71 // pred_check
          %p537 = pneg %p71
        $region74: #{tpu_custom_call.1} parent=71 // pred_check_branch
          %539 = sbr.rel (%p537) target = $region76
        $region75: #{tpu_custom_call.1} parent=71 // pred_region
          %540 = dma.done %s533, 1024
        $region76: #{tpu_custom_call.1} parent=71 // pred_fallthru
          _
        %s541 = sand.u32 %s36, 1
        %s542 = scalar_lea.sflag [#allocation6], %s541
        %s543 = sand.u32 %s84, 1
        %s544 = smul.addr %s543, 64
        %s545 = scalar_lea.vmem [#allocation5], %s544
        // Predicated region
        $region77: #{tpu_custom_call.1} parent=71 // pred_check
          %p546 = pneg %p97
        $region78: #{tpu_custom_call.1} parent=71 // pred_check_branch
          %548 = sbr.rel (%p546) target = $region80
        $region79: #{tpu_custom_call.1} parent=71 // pred_region
          %549 = dma.done %s542, 1024
        $region80: #{tpu_custom_call.1} parent=71 // pred_fallthru
          _
        %s550 = sand.u32 %s36, 1
        %s551 = scalar_lea.sflag [#allocation6], %s550
        %s552 = sand.u32 %s110, 1
        %s553 = smul.addr %s552, 64
        %s554 = scalar_lea.vmem [#allocation7], %s553
        // Predicated region
        $region81: #{tpu_custom_call.1} parent=71 // pred_check
          %p555 = pneg %p123
        $region82: #{tpu_custom_call.1} parent=71 // pred_check_branch
          %557 = sbr.rel (%p555) target = $region84
        $region83: #{tpu_custom_call.1} parent=71 // pred_region
          %558 = dma.done %s551, 1024
        $region84: #{tpu_custom_call.1} parent=71 // pred_fallthru
          _
        // Predicated region
        $region85: #{tpu_custom_call.1} parent=71 // pred_check
          %p559 = pneg %p165
        $region86: #{tpu_custom_call.1} parent=71 // pred_check_branch
          %561 = sbr.rel (%p559) target = $region88
        $region87: #{tpu_custom_call.1} parent=71 // pred_region
          %562 = dma.done [#allocation9], 1024
        $region88: #{tpu_custom_call.1} parent=71 // pred_fallthru
          _
        // Predicated region
        $region89: #{tpu_custom_call.1} parent=71 // pred_check
          %p563 = pneg %p207
        $region90: #{tpu_custom_call.1} parent=71 // pred_check_branch
          %565 = sbr.rel (%p563) target = $region92
        $region91: #{tpu_custom_call.1} parent=71 // pred_region
          %566 = dma.done [#allocation9], 1024
        $region92: #{tpu_custom_call.1} parent=71 // pred_fallthru
          _
        // Predicated region
        $region93: #{tpu_custom_call.1} parent=71 // pred_check
          %p567 = pneg %p249
        $region94: #{tpu_custom_call.1} parent=71 // pred_check_branch
          %569 = sbr.rel (%p567) target = $region96
        $region95: #{tpu_custom_call.1} parent=71 // pred_region
          %570 = dma.done [#allocation12], 1024
        $region96: #{tpu_custom_call.1} parent=71 // pred_fallthru
          _
        // Predicated region
        $region97: #{tpu_custom_call.1} parent=71 // pred_check
          %p571 = pneg %p291
        $region98: #{tpu_custom_call.1} parent=71 // pred_check_branch
          %573 = sbr.rel (%p571) target = $region100
        $region99: #{tpu_custom_call.1} parent=71 // pred_region
          %574 = dma.done [#allocation12], 1024
        $region100: #{tpu_custom_call.1} parent=71 // pred_fallthru
          _
        // Predicated region
        $region101: #{tpu_custom_call.1} parent=71 // pred_check
          %p575 = pneg %p312
        $region102: #{tpu_custom_call.1} parent=71 // pred_check_branch
          %577 = sbr.rel (%p575) target = $region104
        $region103: #{tpu_custom_call.1} parent=71 // pred_region
          %578 = dma.done [#allocation15], 1024
        $region104: #{tpu_custom_call.1} parent=71 // pred_fallthru
          _
        %s579 = sand.u32 %s58, 1
        %s580 = scalar_lea.sflag [#allocation3], %s579
        %s581 = sand.u32 %s58, 1
        %s582 = smul.addr %s581, 64
        %s583 = scalar_lea.vmem [#allocation2], %s582
        %p584 = pneg %p71
        %p585 = pneg %p68
        %s586 = sand.u32 %s36, 1
        %s587 = scalar_lea.sflag [#allocation6], %s586
        %s588 = sand.u32 %s84, 1
        %s589 = smul.addr %s588, 64
        %s590 = scalar_lea.vmem [#allocation5], %s589
        %p591 = pneg %p97
        %p592 = pneg %p94
        %s593 = sand.u32 %s36, 1
        %s594 = scalar_lea.sflag [#allocation6], %s593
        %s595 = sand.u32 %s110, 1
        %s596 = smul.addr %s595, 64
        %s597 = scalar_lea.vmem [#allocation7], %s596
        %p598 = pneg %p123
        %p599 = pneg %p120
        %p600 = pneg %p144
        %p601 = pneg %p141
        %p602 = pneg %p165
        %p603 = pneg %p162
        %p604 = pneg %p186
        %p605 = pneg %p183
        %p606 = pneg %p207
        %p607 = pneg %p204
        %p608 = pneg %p228
        %p609 = pneg %p225
        %p610 = pneg %p249
        %p611 = pneg %p246
        %p612 = pneg %p270
        %p613 = pneg %p267
        %p614 = pneg %p291
        %p615 = pneg %p288
        %p616 = pneg %p312
        %p617 = pneg %p309
        %p618 = pneg %p333
        %p619 = pneg %p330
        %p620 = pneg %p361
        %p621 = pneg %p358
        %s622 = sand.u32 %s348, 1
        %s623 = scalar_lea.sflag [#allocation4], %s622
        %s624 = sand.u32 %s348, 1
        %s625 = smul.addr %s624, 64
        %s626 = scalar_lea.vmem [#allocation16], %s625
        %s627 = smul.u32 16, %s41
        %s628 = smul.u32 16, %s41
        %v630 = vld [vmem:[%s536] sm:$0xf]
        %v631 = vld [vmem:[%s536 + $0x4] sm:$0xf]
        %v632 = vld [vmem:[%s536 + $0x8] sm:$0xf]
        %v633 = vld [vmem:[%s536 + $0xc] sm:$0xf]
        %v634 = vld [vmem:[%s536 + $0x10] sm:$0xf]
        %v635 = vld [vmem:[%s536 + $0x14] sm:$0xf]
        %v636 = vld [vmem:[%s536 + $0x18] sm:$0xf]
        %v637 = vld [vmem:[%s536 + $0x1c] sm:$0xf]
        %v638 = vld [vmem:[%s536 + $0x20] sm:$0xf]
        %v639 = vld [vmem:[%s536 + $0x24] sm:$0xf]
        %v640 = vld [vmem:[%s536 + $0x28] sm:$0xf]
        %v641 = vld [vmem:[%s536 + $0x2c] sm:$0xf]
        %v642 = vld [vmem:[%s536 + $0x30] sm:$0xf]
        %v643 = vld [vmem:[%s536 + $0x34] sm:$0xf]
        %v644 = vld [vmem:[%s536 + $0x38] sm:$0xf]
        %v645 = vld [vmem:[%s536 + $0x3c] sm:$0xf]
        %v646 = vld [vmem:[%s545] sm:$0xf]
        %v647 = vld [vmem:[%s545 + $0x4] sm:$0xf]
        %v648 = vld [vmem:[%s545 + $0x8] sm:$0xf]
        %v649 = vld [vmem:[%s545 + $0xc] sm:$0xf]
        %v650 = vld [vmem:[%s545 + $0x10] sm:$0xf]
        %v651 = vld [vmem:[%s545 + $0x14] sm:$0xf]
        %v652 = vld [vmem:[%s545 + $0x18] sm:$0xf]
        %v653 = vld [vmem:[%s545 + $0x1c] sm:$0xf]
        %v654 = vld [vmem:[%s545 + $0x20] sm:$0xf]
        %v655 = vld [vmem:[%s545 + $0x24] sm:$0xf]
        %v656 = vld [vmem:[%s545 + $0x28] sm:$0xf]
        %v657 = vld [vmem:[%s545 + $0x2c] sm:$0xf]
        %v658 = vld [vmem:[%s545 + $0x30] sm:$0xf]
        %v659 = vld [vmem:[%s545 + $0x34] sm:$0xf]
        %v660 = vld [vmem:[%s545 + $0x38] sm:$0xf]
        %v661 = vld [vmem:[%s545 + $0x3c] sm:$0xf]
        %v662 = vld [vmem:[%s554] sm:$0xf]
        %v663 = vld [vmem:[%s554 + $0x4] sm:$0xf]
        %v664 = vld [vmem:[%s554 + $0x8] sm:$0xf]
        %v665 = vld [vmem:[%s554 + $0xc] sm:$0xf]
        %v666 = vld [vmem:[%s554 + $0x10] sm:$0xf]
        %v667 = vld [vmem:[%s554 + $0x14] sm:$0xf]
        %v668 = vld [vmem:[%s554 + $0x18] sm:$0xf]
        %v669 = vld [vmem:[%s554 + $0x1c] sm:$0xf]
        %v670 = vld [vmem:[%s554 + $0x20] sm:$0xf]
        %v671 = vld [vmem:[%s554 + $0x24] sm:$0xf]
        %v672 = vld [vmem:[%s554 + $0x28] sm:$0xf]
        %v673 = vld [vmem:[%s554 + $0x2c] sm:$0xf]
        %v674 = vld [vmem:[%s554 + $0x30] sm:$0xf]
        %v675 = vld [vmem:[%s554 + $0x34] sm:$0xf]
        %v676 = vld [vmem:[%s554 + $0x38] sm:$0xf]
        %v677 = vld [vmem:[%s554 + $0x3c] sm:$0xf]
        %v678 = vld [vmem:[#allocation8] sm:$0xf]
        %v679 = vld [vmem:[#allocation8 + $0x4] sm:$0xf]
        %v680 = vld [vmem:[#allocation8 + $0x8] sm:$0xf]
        %v681 = vld [vmem:[#allocation8 + $0xc] sm:$0xf]
        %v682 = vld [vmem:[#allocation8 + $0x10] sm:$0xf]
        %v683 = vld [vmem:[#allocation8 + $0x14] sm:$0xf]
        %v684 = vld [vmem:[#allocation8 + $0x18] sm:$0xf]
        %v685 = vld [vmem:[#allocation8 + $0x1c] sm:$0xf]
        %v686 = vld [vmem:[#allocation8 + $0x20] sm:$0xf]
        %v687 = vld [vmem:[#allocation8 + $0x24] sm:$0xf]
        %v688 = vld [vmem:[#allocation8 + $0x28] sm:$0xf]
        %v689 = vld [vmem:[#allocation8 + $0x2c] sm:$0xf]
        %v690 = vld [vmem:[#allocation8 + $0x30] sm:$0xf]
        %v691 = vld [vmem:[#allocation8 + $0x34] sm:$0xf]
        %v692 = vld [vmem:[#allocation8 + $0x38] sm:$0xf]
        %v693 = vld [vmem:[#allocation8 + $0x3c] sm:$0xf]
        %v694 = vld [vmem:[%s5] sm:$0x1]
        %v696 = vlaneseq
        %v697 = vshrl.u32 %v696, 7
        %v698 = vsub.s32 0, %v697
        %v699 = vrot.slane %v694, %v698
        %v717 = vunpack.c.l.b16 %v630
        %v718 = vunpack.c.l.b16 %v631
        %v719 = vunpack.c.l.b16 %v632
        %v720 = vunpack.c.l.b16 %v633
        %v721 = vunpack.c.l.b16 %v634
        %v722 = vunpack.c.l.b16 %v635
        %v723 = vunpack.c.l.b16 %v636
        %v724 = vunpack.c.l.b16 %v637
        %v725 = vunpack.c.l.b16 %v638
        %v726 = vunpack.c.l.b16 %v639
        %v727 = vunpack.c.l.b16 %v640
        %v728 = vunpack.c.l.b16 %v641
        %v729 = vunpack.c.l.b16 %v642
        %v730 = vunpack.c.l.b16 %v643
        %v731 = vunpack.c.l.b16 %v644
        %v732 = vunpack.c.l.b16 %v645
        %v733 = vpack.c.b16 %v718, %v717
        %v734 = vpack.c.b16 %v720, %v719
        %v735 = vpack.c.b16 %v722, %v721
        %v736 = vpack.c.b16 %v724, %v723
        %v737 = vpack.c.b16 %v726, %v725
        %v738 = vpack.c.b16 %v728, %v727
        %v739 = vpack.c.b16 %v730, %v729
        %v740 = vpack.c.b16 %v732, %v731
        %v765 = vunpack.c.l.b16 %v678
        %v766 = vunpack.c.l.b16 %v679
        %v767 = vunpack.c.l.b16 %v680
        %v768 = vunpack.c.l.b16 %v681
        %v769 = vunpack.c.l.b16 %v682
        %v770 = vunpack.c.l.b16 %v683
        %v771 = vunpack.c.l.b16 %v684
        %v772 = vunpack.c.l.b16 %v685
        %v773 = vunpack.c.l.b16 %v686
        %v774 = vunpack.c.l.b16 %v687
        %v775 = vunpack.c.l.b16 %v688
        %v776 = vunpack.c.l.b16 %v689
        %v777 = vunpack.c.l.b16 %v690
        %v778 = vunpack.c.l.b16 %v691
        %v779 = vunpack.c.l.b16 %v692
        %v780 = vunpack.c.l.b16 %v693
        %v781 = vpack.c.b16 %v766, %v765
        %v782 = vpack.c.b16 %v768, %v767
        %v783 = vpack.c.b16 %v770, %v769
        %v784 = vpack.c.b16 %v772, %v771
        %v785 = vpack.c.b16 %v774, %v773
        %v786 = vpack.c.b16 %v776, %v775
        %v787 = vpack.c.b16 %v778, %v777
        %v788 = vpack.c.b16 %v780, %v779
        %797 = vmatprep.subr.bf16.mxu0 0
        %798 = vmatpush1.bf16.msra.mxu0 %v781
        %799 = vmatprep.subr.bf16.mxu0 0
        %800 = vmatpush1.bf16.msra.mxu0 %v782
        %801 = vmatprep.subr.bf16.mxu0 0
        %802 = vmatpush1.bf16.msra.mxu0 %v783
        %803 = vmatprep.subr.bf16.mxu0 0
        %804 = vmatpush1.bf16.msra.mxu0 %v784
        %805 = vmatprep.subr.bf16.mxu0 0
        %806 = vmatpush1.bf16.msra.mxu0 %v785
        %807 = vmatprep.subr.bf16.mxu0 0
        %808 = vmatpush1.bf16.msra.mxu0 %v786
        %809 = vmatprep.subr.bf16.mxu0 0
        %810 = vmatpush1.bf16.msra.mxu0 %v787
        %811 = vmatprep.subr.bf16.mxu0 0
        %812 = vmatpush1.bf16.msra.mxu0 %v788
        %813 = vmatprep.subr.bf16.mxu0 0
        %814 = vmatpush1.bf16.msra.mxu0 0
        %815 = vmatprep.subr.bf16.mxu0 0
        %816 = vmatpush1.bf16.msra.mxu0 0
        %817 = vmatprep.subr.bf16.mxu0 0
        %818 = vmatpush1.bf16.msra.mxu0 0
        %819 = vmatprep.subr.bf16.mxu0 0
        %820 = vmatpush1.bf16.msra.mxu0 0
        %821 = vmatprep.subr.bf16.mxu0 0
        %822 = vmatpush1.bf16.msra.mxu0 0
        %823 = vmatprep.subr.bf16.mxu0 0
        %824 = vmatpush1.bf16.msra.mxu0 0
        %825 = vmatprep.subr.bf16.mxu0 0
        %826 = vmatpush1.bf16.msra.mxu0 0
        %827 = vmatprep.subr.bf16.mxu0 0
        %828 = vmatpush1.bf16.msra.mxu0 0
        %829 = vmatprep.mubr.bf16.mxu0 0
        %830 = vmatmul.mubr.bf16.gmra.mrb[0].mxu0 %v733
        %v831 = vpop.f32.mrb[0].mxu0
        %v832 = vadd.f32 %v699, %v831
        %v833 = vpop.f32.mrb[0].mxu0
        %v834 = vpop.f32.mrb[0].mxu0
        %v835 = vadd.f32 %v699, %v834
        %v836 = vpop.f32.mrb[0].mxu0
        %837 = vmatprep.mubr.bf16.mxu0 0
        %838 = vmatmul.mubr.bf16.gmra.mrb[0].mxu0 %v734
        %v839 = vpop.f32.mrb[0].mxu0
        %v840 = vadd.f32 %v699, %v839
        %v841 = vpop.f32.mrb[0].mxu0
        %v842 = vpop.f32.mrb[0].mxu0
        %v843 = vadd.f32 %v699, %v842
        %v844 = vpop.f32.mrb[0].mxu0
        %845 = vmatprep.mubr.bf16.mxu0 0
        %846 = vmatmul.mubr.bf16.gmra.mrb[0].mxu0 %v735
        %v847 = vpop.f32.mrb[0].mxu0
        %v848 = vadd.f32 %v699, %v847
        %v849 = vpop.f32.mrb[0].mxu0
        %v850 = vpop.f32.mrb[0].mxu0
        %v851 = vadd.f32 %v699, %v850
        %v852 = vpop.f32.mrb[0].mxu0
        %853 = vmatprep.mubr.bf16.mxu0 0
        %854 = vmatmul.mubr.bf16.gmra.mrb[0].mxu0 %v736
        %v855 = vpop.f32.mrb[0].mxu0
        %v856 = vadd.f32 %v699, %v855
        %v857 = vpop.f32.mrb[0].mxu0
        %v858 = vpop.f32.mrb[0].mxu0
        %v859 = vadd.f32 %v699, %v858
        %v860 = vpop.f32.mrb[0].mxu0
        %861 = vmatprep.mubr.bf16.mxu0 0
        %862 = vmatmul.mubr.bf16.gmra.mrb[0].mxu0 %v737
        %v863 = vpop.f32.mrb[0].mxu0
        %v864 = vadd.f32 %v699, %v863
        %v865 = vpop.f32.mrb[0].mxu0
        %v866 = vpop.f32.mrb[0].mxu0
        %v867 = vadd.f32 %v699, %v866
        %v868 = vpop.f32.mrb[0].mxu0
        %869 = vmatprep.mubr.bf16.mxu0 0
        %870 = vmatmul.mubr.bf16.gmra.mrb[0].mxu0 %v738
        %v871 = vpop.f32.mrb[0].mxu0
        %v872 = vadd.f32 %v699, %v871
        %v873 = vpop.f32.mrb[0].mxu0
        %v874 = vpop.f32.mrb[0].mxu0
        %v875 = vadd.f32 %v699, %v874
        %v876 = vpop.f32.mrb[0].mxu0
        %877 = vmatprep.mubr.bf16.mxu0 0
        %878 = vmatmul.mubr.bf16.gmra.mrb[0].mxu0 %v739
        %v879 = vpop.f32.mrb[0].mxu0
        %v880 = vadd.f32 %v699, %v879
        %v881 = vpop.f32.mrb[0].mxu0
        %v882 = vpop.f32.mrb[0].mxu0
        %v883 = vadd.f32 %v699, %v882
        %v884 = vpop.f32.mrb[0].mxu0
        %885 = vmatprep.mubr.bf16.mxu0 0
        %886 = vmatmul.mubr.bf16.gmra.mrb[0].mxu0 %v740
        %v887 = vpop.f32.mrb[0].mxu0
        %v888 = vadd.f32 %v699, %v887
        %v889 = vpop.f32.mrb[0].mxu0
        %v890 = vpop.f32.mrb[0].mxu0
        %v891 = vadd.f32 %v699, %v890
        %v892 = vpop.f32.mrb[0].mxu0
        %893 = vdwg.mxu0
        %v894 = vmax.f32 %v832, 0.0
        %v895 = vmax.f32 %v835, 0.0
        %v896 = vmax.f32 %v840, 0.0
        %v897 = vmax.f32 %v843, 0.0
        %v898 = vmax.f32 %v848, 0.0
        %v899 = vmax.f32 %v851, 0.0
        %v900 = vmax.f32 %v856, 0.0
        %v901 = vmax.f32 %v859, 0.0
        %v902 = vmax.f32 %v864, 0.0
        %v903 = vmax.f32 %v867, 0.0
        %v904 = vmax.f32 %v872, 0.0
        %v905 = vmax.f32 %v875, 0.0
        %v906 = vmax.f32 %v880, 0.0
        %v907 = vmax.f32 %v883, 0.0
        %v908 = vmax.f32 %v888, 0.0
        %v909 = vmax.f32 %v891, 0.0
        %v910 = vpack.c.bf16 %v895, %v894
        %v911 = vpack.c.bf16 %v897, %v896
        %v912 = vpack.c.bf16 %v899, %v898
        %v913 = vpack.c.bf16 %v901, %v900
        %v914 = vpack.c.bf16 %v903, %v902
        %v915 = vpack.c.bf16 %v905, %v904
        %v916 = vpack.c.bf16 %v907, %v906
        %v917 = vpack.c.bf16 %v909, %v908
        %v918 = vld [vmem:[#allocation10] sm:$0xf]
        %v919 = vld [vmem:[#allocation10 + $0x4] sm:$0xf]
        %v920 = vld [vmem:[#allocation10 + $0x8] sm:$0xf]
        %v921 = vld [vmem:[#allocation10 + $0xc] sm:$0xf]
        %v922 = vld [vmem:[#allocation10 + $0x10] sm:$0xf]
        %v923 = vld [vmem:[#allocation10 + $0x14] sm:$0xf]
        %v924 = vld [vmem:[#allocation10 + $0x18] sm:$0xf]
        %v925 = vld [vmem:[#allocation10 + $0x1c] sm:$0xf]
        %v926 = vld [vmem:[#allocation10 + $0x20] sm:$0xf]
        %v927 = vld [vmem:[#allocation10 + $0x24] sm:$0xf]
        %v928 = vld [vmem:[#allocation10 + $0x28] sm:$0xf]
        %v929 = vld [vmem:[#allocation10 + $0x2c] sm:$0xf]
        %v930 = vld [vmem:[#allocation10 + $0x30] sm:$0xf]
        %v931 = vld [vmem:[#allocation10 + $0x34] sm:$0xf]
        %v932 = vld [vmem:[#allocation10 + $0x38] sm:$0xf]
        %v933 = vld [vmem:[#allocation10 + $0x3c] sm:$0xf]
        %v934 = vld [vmem:[%s7] sm:$0x1]
        %v936 = vlaneseq
        %v937 = vshrl.u32 %v936, 7
        %v938 = vsub.s32 0, %v937
        %v939 = vrot.slane %v934, %v938
        %v957 = vunpack.c.l.b16 %v918
        %v958 = vunpack.c.l.b16 %v919
        %v959 = vunpack.c.l.b16 %v920
        %v960 = vunpack.c.l.b16 %v921
        %v961 = vunpack.c.l.b16 %v922
        %v962 = vunpack.c.l.b16 %v923
        %v963 = vunpack.c.l.b16 %v924
        %v964 = vunpack.c.l.b16 %v925
        %v965 = vunpack.c.l.b16 %v926
        %v966 = vunpack.c.l.b16 %v927
        %v967 = vunpack.c.l.b16 %v928
        %v968 = vunpack.c.l.b16 %v929
        %v969 = vunpack.c.l.b16 %v930
        %v970 = vunpack.c.l.b16 %v931
        %v971 = vunpack.c.l.b16 %v932
        %v972 = vunpack.c.l.b16 %v933
        %v973 = vpack.c.b16 %v958, %v957
        %v974 = vpack.c.b16 %v960, %v959
        %v975 = vpack.c.b16 %v962, %v961
        %v976 = vpack.c.b16 %v964, %v963
        %v977 = vpack.c.b16 %v966, %v965
        %v978 = vpack.c.b16 %v968, %v967
        %v979 = vpack.c.b16 %v970, %v969
        %v980 = vpack.c.b16 %v972, %v971
        %989 = vmatprep.subr.bf16.mxu0 0
        %990 = vmatpush1.bf16.msra.mxu0 %v973
        %991 = vmatprep.subr.bf16.mxu0 0
        %992 = vmatpush1.bf16.msra.mxu0 %v974
        %993 = vmatprep.subr.bf16.mxu0 0
        %994 = vmatpush1.bf16.msra.mxu0 %v975
        %995 = vmatprep.subr.bf16.mxu0 0
        %996 = vmatpush1.bf16.msra.mxu0 %v976
        %997 = vmatprep.subr.bf16.mxu0 0
        %998 = vmatpush1.bf16.msra.mxu0 %v977
        %999 = vmatprep.subr.bf16.mxu0 0
        %1000 = vmatpush1.bf16.msra.mxu0 %v978
        %1001 = vmatprep.subr.bf16.mxu0 0
        %1002 = vmatpush1.bf16.msra.mxu0 %v979
        %1003 = vmatprep.subr.bf16.mxu0 0
        %1004 = vmatpush1.bf16.msra.mxu0 %v980
        %1005 = vmatprep.subr.bf16.mxu0 0
        %1006 = vmatpush1.bf16.msra.mxu0 0
        %1007 = vmatprep.subr.bf16.mxu0 0
        %1008 = vmatpush1.bf16.msra.mxu0 0
        %1009 = vmatprep.subr.bf16.mxu0 0
        %1010 = vmatpush1.bf16.msra.mxu0 0
        %1011 = vmatprep.subr.bf16.mxu0 0
        %1012 = vmatpush1.bf16.msra.mxu0 0
        %1013 = vmatprep.subr.bf16.mxu0 0
        %1014 = vmatpush1.bf16.msra.mxu0 0
        %1015 = vmatprep.subr.bf16.mxu0 0
        %1016 = vmatpush1.bf16.msra.mxu0 0
        %1017 = vmatprep.subr.bf16.mxu0 0
        %1018 = vmatpush1.bf16.msra.mxu0 0
        %1019 = vmatprep.subr.bf16.mxu0 0
        %1020 = vmatpush1.bf16.msra.mxu0 0
        %1021 = vmatprep.mubr.bf16.mxu0 0
        %1022 = vmatmul.mubr.bf16.gmra.mrb[0].mxu0 %v910
        %v1023 = vpop.f32.mrb[0].mxu0
        %v1024 = vadd.f32 %v939, %v1023
        %v1025 = vpop.f32.mrb[0].mxu0
        %v1026 = vpop.f32.mrb[0].mxu0
        %v1027 = vadd.f32 %v939, %v1026
        %v1028 = vpop.f32.mrb[0].mxu0
        %1029 = vmatprep.mubr.bf16.mxu0 0
        %1030 = vmatmul.mubr.bf16.gmra.mrb[0].mxu0 %v911
        %v1031 = vpop.f32.mrb[0].mxu0
        %v1032 = vadd.f32 %v939, %v1031
        %v1033 = vpop.f32.mrb[0].mxu0
        %v1034 = vpop.f32.mrb[0].mxu0
        %v1035 = vadd.f32 %v939, %v1034
        %v1036 = vpop.f32.mrb[0].mxu0
        %1037 = vmatprep.mubr.bf16.mxu0 0
        %1038 = vmatmul.mubr.bf16.gmra.mrb[0].mxu0 %v912
        %v1039 = vpop.f32.mrb[0].mxu0
        %v1040 = vadd.f32 %v939, %v1039
        %v1041 = vpop.f32.mrb[0].mxu0
        %v1042 = vpop.f32.mrb[0].mxu0
        %v1043 = vadd.f32 %v939, %v1042
        %v1044 = vpop.f32.mrb[0].mxu0
        %1045 = vmatprep.mubr.bf16.mxu0 0
        %1046 = vmatmul.mubr.bf16.gmra.mrb[0].mxu0 %v913
        %v1047 = vpop.f32.mrb[0].mxu0
        %v1048 = vadd.f32 %v939, %v1047
        %v1049 = vpop.f32.mrb[0].mxu0
        %v1050 = vpop.f32.mrb[0].mxu0
        %v1051 = vadd.f32 %v939, %v1050
        %v1052 = vpop.f32.mrb[0].mxu0
        %1053 = vmatprep.mubr.bf16.mxu0 0
        %1054 = vmatmul.mubr.bf16.gmra.mrb[0].mxu0 %v914
        %v1055 = vpop.f32.mrb[0].mxu0
        %v1056 = vadd.f32 %v939, %v1055
        %v1057 = vpop.f32.mrb[0].mxu0
        %v1058 = vpop.f32.mrb[0].mxu0
        %v1059 = vadd.f32 %v939, %v1058
        %v1060 = vpop.f32.mrb[0].mxu0
        %1061 = vmatprep.mubr.bf16.mxu0 0
        %1062 = vmatmul.mubr.bf16.gmra.mrb[0].mxu0 %v915
        %v1063 = vpop.f32.mrb[0].mxu0
        %v1064 = vadd.f32 %v939, %v1063
        %v1065 = vpop.f32.mrb[0].mxu0
        %v1066 = vpop.f32.mrb[0].mxu0
        %v1067 = vadd.f32 %v939, %v1066
        %v1068 = vpop.f32.mrb[0].mxu0
        %1069 = vmatprep.mubr.bf16.mxu0 0
        %1070 = vmatmul.mubr.bf16.gmra.mrb[0].mxu0 %v916
        %v1071 = vpop.f32.mrb[0].mxu0
        %v1072 = vadd.f32 %v939, %v1071
        %v1073 = vpop.f32.mrb[0].mxu0
        %v1074 = vpop.f32.mrb[0].mxu0
        %v1075 = vadd.f32 %v939, %v1074
        %v1076 = vpop.f32.mrb[0].mxu0
        %1077 = vmatprep.mubr.bf16.mxu0 0
        %1078 = vmatmul.mubr.bf16.gmra.mrb[0].mxu0 %v917
        %v1079 = vpop.f32.mrb[0].mxu0
        %v1080 = vadd.f32 %v939, %v1079
        %v1081 = vpop.f32.mrb[0].mxu0
        %v1082 = vpop.f32.mrb[0].mxu0
        %v1083 = vadd.f32 %v939, %v1082
        %v1084 = vpop.f32.mrb[0].mxu0
        %1085 = vdwg.mxu0
        %v1086 = vmax.f32 %v1024, 0.0
        %v1087 = vmax.f32 %v1027, 0.0
        %v1088 = vmax.f32 %v1032, 0.0
        %v1089 = vmax.f32 %v1035, 0.0
        %v1090 = vmax.f32 %v1040, 0.0
        %v1091 = vmax.f32 %v1043, 0.0
        %v1092 = vmax.f32 %v1048, 0.0
        %v1093 = vmax.f32 %v1051, 0.0
        %v1094 = vmax.f32 %v1056, 0.0
        %v1095 = vmax.f32 %v1059, 0.0
        %v1096 = vmax.f32 %v1064, 0.0
        %v1097 = vmax.f32 %v1067, 0.0
        %v1098 = vmax.f32 %v1072, 0.0
        %v1099 = vmax.f32 %v1075, 0.0
        %v1100 = vmax.f32 %v1080, 0.0
        %v1101 = vmax.f32 %v1083, 0.0
        %v1102 = vpack.c.bf16 %v1087, %v1086
        %v1103 = vpack.c.bf16 %v1089, %v1088
        %v1104 = vpack.c.bf16 %v1091, %v1090
        %v1105 = vpack.c.bf16 %v1093, %v1092
        %v1106 = vpack.c.bf16 %v1095, %v1094
        %v1107 = vpack.c.bf16 %v1097, %v1096
        %v1108 = vpack.c.bf16 %v1099, %v1098
        %v1109 = vpack.c.bf16 %v1101, %v1100
        %v1110 = vld [vmem:[%s3] sm:$0x1]
        %v1112 = vlaneseq
        %v1113 = vshrl.u32 %v1112, 7
        %v1114 = vsub.s32 0, %v1113
        %v1115 = vrot.slane %v1110, %v1114
        %v1133 = vunpack.c.l.b16 %v646
        %v1134 = vunpack.c.l.b16 %v647
        %v1135 = vunpack.c.l.b16 %v648
        %v1136 = vunpack.c.l.b16 %v649
        %v1137 = vunpack.c.l.b16 %v650
        %v1138 = vunpack.c.l.b16 %v651
        %v1139 = vunpack.c.l.b16 %v652
        %v1140 = vunpack.c.l.b16 %v653
        %v1141 = vunpack.c.l.b16 %v654
        %v1142 = vunpack.c.l.b16 %v655
        %v1143 = vunpack.c.l.b16 %v656
        %v1144 = vunpack.c.l.b16 %v657
        %v1145 = vunpack.c.l.b16 %v658
        %v1146 = vunpack.c.l.b16 %v659
        %v1147 = vunpack.c.l.b16 %v660
        %v1148 = vunpack.c.l.b16 %v661
        %v1149 = vpack.c.b16 %v1134, %v1133
        %v1150 = vpack.c.b16 %v1136, %v1135
        %v1151 = vpack.c.b16 %v1138, %v1137
        %v1152 = vpack.c.b16 %v1140, %v1139
        %v1153 = vpack.c.b16 %v1142, %v1141
        %v1154 = vpack.c.b16 %v1144, %v1143
        %v1155 = vpack.c.b16 %v1146, %v1145
        %v1156 = vpack.c.b16 %v1148, %v1147
        %1165 = vmatprep.subr.bf16.mxu0 0
        %1166 = vmatpush1.bf16.xpose.msra.mxu0 %v1149
        %1167 = vmatprep.subr.bf16.mxu0 0
        %1168 = vmatpush1.bf16.xpose.msra.mxu0 %v1150
        %1169 = vmatprep.subr.bf16.mxu0 0
        %1170 = vmatpush1.bf16.xpose.msra.mxu0 %v1151
        %1171 = vmatprep.subr.bf16.mxu0 0
        %1172 = vmatpush1.bf16.xpose.msra.mxu0 %v1152
        %1173 = vmatprep.subr.bf16.mxu0 0
        %1174 = vmatpush1.bf16.xpose.msra.mxu0 %v1153
        %1175 = vmatprep.subr.bf16.mxu0 0
        %1176 = vmatpush1.bf16.xpose.msra.mxu0 %v1154
        %1177 = vmatprep.subr.bf16.mxu0 0
        %1178 = vmatpush1.bf16.xpose.msra.mxu0 %v1155
        %1179 = vmatprep.subr.bf16.mxu0 0
        %1180 = vmatpush1.bf16.xpose.msra.mxu0 %v1156
        %1181 = vmatprep.subr.bf16.mxu0 0
        %1182 = vmatpush1.bf16.xpose.msra.mxu0 0
        %1183 = vmatprep.subr.bf16.mxu0 0
        %1184 = vmatpush1.bf16.xpose.msra.mxu0 0
        %1185 = vmatprep.subr.bf16.mxu0 0
        %1186 = vmatpush1.bf16.xpose.msra.mxu0 0
        %1187 = vmatprep.subr.bf16.mxu0 0
        %1188 = vmatpush1.bf16.xpose.msra.mxu0 0
        %1189 = vmatprep.subr.bf16.mxu0 0
        %1190 = vmatpush1.bf16.xpose.msra.mxu0 0
        %1191 = vmatprep.subr.bf16.mxu0 0
        %1192 = vmatpush1.bf16.xpose.msra.mxu0 0
        %1193 = vmatprep.subr.bf16.mxu0 0
        %1194 = vmatpush1.bf16.xpose.msra.mxu0 0
        %1195 = vmatprep.subr.bf16.mxu0 0
        %1196 = vmatpush1.bf16.xpose.msra.mxu0 0
        %1197 = vmatprep.mubr.bf16.mxu0 0
        %1198 = vmatmul.mubr.bf16.gmra.mrb[0].mxu0 %v1102
        %v1199 = vpop.f32.mrb[0].mxu0
        %v1200 = vadd.f32 %v1115, %v1199
        %v1201 = vpop.f32.mrb[0].mxu0
        %v1202 = vpop.f32.mrb[0].mxu0
        %v1203 = vadd.f32 %v1115, %v1202
        %v1204 = vpop.f32.mrb[0].mxu0
        %1205 = vmatprep.mubr.bf16.mxu0 0
        %1206 = vmatmul.mubr.bf16.gmra.mrb[0].mxu0 %v1103
        %v1207 = vpop.f32.mrb[0].mxu0
        %v1208 = vadd.f32 %v1115, %v1207
        %v1209 = vpop.f32.mrb[0].mxu0
        %v1210 = vpop.f32.mrb[0].mxu0
        %v1211 = vadd.f32 %v1115, %v1210
        %v1212 = vpop.f32.mrb[0].mxu0
        %1213 = vmatprep.mubr.bf16.mxu0 0
        %1214 = vmatmul.mubr.bf16.gmra.mrb[0].mxu0 %v1104
        %v1215 = vpop.f32.mrb[0].mxu0
        %v1216 = vadd.f32 %v1115, %v1215
        %v1217 = vpop.f32.mrb[0].mxu0
        %v1218 = vpop.f32.mrb[0].mxu0
        %v1219 = vadd.f32 %v1115, %v1218
        %v1220 = vpop.f32.mrb[0].mxu0
        %1221 = vmatprep.mubr.bf16.mxu0 0
        %1222 = vmatmul.mubr.bf16.gmra.mrb[0].mxu0 %v1105
        %v1223 = vpop.f32.mrb[0].mxu0
        %v1224 = vadd.f32 %v1115, %v1223
        %v1225 = vpop.f32.mrb[0].mxu0
        %v1226 = vpop.f32.mrb[0].mxu0
        %v1227 = vadd.f32 %v1115, %v1226
        %v1228 = vpop.f32.mrb[0].mxu0
        %1229 = vmatprep.mubr.bf16.mxu0 0
        %1230 = vmatmul.mubr.bf16.gmra.mrb[0].mxu0 %v1106
        %v1231 = vpop.f32.mrb[0].mxu0
        %v1232 = vadd.f32 %v1115, %v1231
        %v1233 = vpop.f32.mrb[0].mxu0
        %v1234 = vpop.f32.mrb[0].mxu0
        %v1235 = vadd.f32 %v1115, %v1234
        %v1236 = vpop.f32.mrb[0].mxu0
        %1237 = vmatprep.mubr.bf16.mxu0 0
        %1238 = vmatmul.mubr.bf16.gmra.mrb[0].mxu0 %v1107
        %v1239 = vpop.f32.mrb[0].mxu0
        %v1240 = vadd.f32 %v1115, %v1239
        %v1241 = vpop.f32.mrb[0].mxu0
        %v1242 = vpop.f32.mrb[0].mxu0
        %v1243 = vadd.f32 %v1115, %v1242
        %v1244 = vpop.f32.mrb[0].mxu0
        %1245 = vmatprep.mubr.bf16.mxu0 0
        %1246 = vmatmul.mubr.bf16.gmra.mrb[0].mxu0 %v1108
        %v1247 = vpop.f32.mrb[0].mxu0
        %v1248 = vadd.f32 %v1115, %v1247
        %v1249 = vpop.f32.mrb[0].mxu0
        %v1250 = vpop.f32.mrb[0].mxu0
        %v1251 = vadd.f32 %v1115, %v1250
        %v1252 = vpop.f32.mrb[0].mxu0
        %1253 = vmatprep.mubr.bf16.mxu0 0
        %1254 = vmatmul.mubr.bf16.gmra.mrb[0].mxu0 %v1109
        %v1255 = vpop.f32.mrb[0].mxu0
        %v1256 = vadd.f32 %v1115, %v1255
        %v1257 = vpop.f32.mrb[0].mxu0
        %v1258 = vpop.f32.mrb[0].mxu0
        %v1259 = vadd.f32 %v1115, %v1258
        %v1260 = vpop.f32.mrb[0].mxu0
        %1261 = vdwg.mxu0
        %1262 = vmax.xlane.f32.xlu0 %v1200
        %v1263 = vpop.xlane.xlu0 %1262
        %1264 = vmax.xlane.f32.xlu0 %v1203
        %v1265 = vpop.xlane.xlu0 %1264
        %1266 = vmax.xlane.f32.xlu0 %v1208
        %v1267 = vpop.xlane.xlu0 %1266
        %1268 = vmax.xlane.f32.xlu0 %v1211
        %v1269 = vpop.xlane.xlu0 %1268
        %1270 = vmax.xlane.f32.xlu0 %v1216
        %v1271 = vpop.xlane.xlu0 %1270
        %1272 = vmax.xlane.f32.xlu0 %v1219
        %v1273 = vpop.xlane.xlu0 %1272
        %1274 = vmax.xlane.f32.xlu0 %v1224
        %v1275 = vpop.xlane.xlu0 %1274
        %1276 = vmax.xlane.f32.xlu0 %v1227
        %v1277 = vpop.xlane.xlu0 %1276
        %1278 = vmax.xlane.f32.xlu0 %v1232
        %v1279 = vpop.xlane.xlu0 %1278
        %1280 = vmax.xlane.f32.xlu0 %v1235
        %v1281 = vpop.xlane.xlu0 %1280
        %1282 = vmax.xlane.f32.xlu0 %v1240
        %v1283 = vpop.xlane.xlu0 %1282
        %1284 = vmax.xlane.f32.xlu0 %v1243
        %v1285 = vpop.xlane.xlu0 %1284
        %1286 = vmax.xlane.f32.xlu0 %v1248
        %v1287 = vpop.xlane.xlu0 %1286
        %1288 = vmax.xlane.f32.xlu0 %v1251
        %v1289 = vpop.xlane.xlu0 %1288
        %1290 = vmax.xlane.f32.xlu0 %v1256
        %v1291 = vpop.xlane.xlu0 %1290
        %1292 = vmax.xlane.f32.xlu0 %v1259
        %v1293 = vpop.xlane.xlu0 %1292
        %v1294 = vsub.f32 %v1200, %v1263
        %v1295 = vsub.f32 %v1203, %v1265
        %v1296 = vsub.f32 %v1208, %v1267
        %v1297 = vsub.f32 %v1211, %v1269
        %v1298 = vsub.f32 %v1216, %v1271
        %v1299 = vsub.f32 %v1219, %v1273
        %v1300 = vsub.f32 %v1224, %v1275
        %v1301 = vsub.f32 %v1227, %v1277
        %v1302 = vsub.f32 %v1232, %v1279
        %v1303 = vsub.f32 %v1235, %v1281
        %v1304 = vsub.f32 %v1240, %v1283
        %v1305 = vsub.f32 %v1243, %v1285
        %v1306 = vsub.f32 %v1248, %v1287
        %v1307 = vsub.f32 %v1251, %v1289
        %v1308 = vsub.f32 %v1256, %v1291
        %v1309 = vsub.f32 %v1259, %v1293
        %v1310 = vmul.f32 %v1294, 1.442695
        %v1311 = vpow.pop %v1310
        %v1312 = vmul.f32 %v1295, 1.442695
        %v1313 = vpow.pop %v1312
        %v1314 = vmul.f32 %v1296, 1.442695
        %v1315 = vpow.pop %v1314
        %v1316 = vmul.f32 %v1297, 1.442695
        %v1317 = vpow.pop %v1316
        %v1318 = vmul.f32 %v1298, 1.442695
        %v1319 = vpow.pop %v1318
        %v1320 = vmul.f32 %v1299, 1.442695
        %v1321 = vpow.pop %v1320
        %v1322 = vmul.f32 %v1300, 1.442695
        %v1323 = vpow.pop %v1322
        %v1324 = vmul.f32 %v1301, 1.442695
        %v1325 = vpow.pop %v1324
        %v1326 = vmul.f32 %v1302, 1.442695
        %v1327 = vpow.pop %v1326
        %v1328 = vmul.f32 %v1303, 1.442695
        %v1329 = vpow.pop %v1328
        %v1330 = vmul.f32 %v1304, 1.442695
        %v1331 = vpow.pop %v1330
        %v1332 = vmul.f32 %v1305, 1.442695
        %v1333 = vpow.pop %v1332
        %v1334 = vmul.f32 %v1306, 1.442695
        %v1335 = vpow.pop %v1334
        %v1336 = vmul.f32 %v1307, 1.442695
        %v1337 = vpow.pop %v1336
        %v1338 = vmul.f32 %v1308, 1.442695
        %v1339 = vpow.pop %v1338
        %v1340 = vmul.f32 %v1309, 1.442695
        %v1341 = vpow.pop %v1340
        %1342 = vadd.xlane.f32.xlu0 %v1311
        %v1343 = vpop.xlane.xlu0 %1342
        %1344 = vadd.xlane.f32.xlu0 %v1313
        %v1345 = vpop.xlane.xlu0 %1344
        %1346 = vadd.xlane.f32.xlu0 %v1315
        %v1347 = vpop.xlane.xlu0 %1346
        %1348 = vadd.xlane.f32.xlu0 %v1317
        %v1349 = vpop.xlane.xlu0 %1348
        %1350 = vadd.xlane.f32.xlu0 %v1319
        %v1351 = vpop.xlane.xlu0 %1350
        %1352 = vadd.xlane.f32.xlu0 %v1321
        %v1353 = vpop.xlane.xlu0 %1352
        %1354 = vadd.xlane.f32.xlu0 %v1323
        %v1355 = vpop.xlane.xlu0 %1354
        %1356 = vadd.xlane.f32.xlu0 %v1325
        %v1357 = vpop.xlane.xlu0 %1356
        %1358 = vadd.xlane.f32.xlu0 %v1327
        %v1359 = vpop.xlane.xlu0 %1358
        %1360 = vadd.xlane.f32.xlu0 %v1329
        %v1361 = vpop.xlane.xlu0 %1360
        %1362 = vadd.xlane.f32.xlu0 %v1331
        %v1363 = vpop.xlane.xlu0 %1362
        %1364 = vadd.xlane.f32.xlu0 %v1333
        %v1365 = vpop.xlane.xlu0 %1364
        %1366 = vadd.xlane.f32.xlu0 %v1335
        %v1367 = vpop.xlane.xlu0 %1366
        %1368 = vadd.xlane.f32.xlu0 %v1337
        %v1369 = vpop.xlane.xlu0 %1368
        %1370 = vadd.xlane.f32.xlu0 %v1339
        %v1371 = vpop.xlane.xlu0 %1370
        %1372 = vadd.xlane.f32.xlu0 %v1341
        %v1373 = vpop.xlane.xlu0 %1372
        %v1374 = vrcp.pop %v1343
        %v1375 = vrcp.pop %v1345
        %v1376 = vrcp.pop %v1347
        %v1377 = vrcp.pop %v1349
        %v1378 = vrcp.pop %v1351
        %v1379 = vrcp.pop %v1353
        %v1380 = vrcp.pop %v1355
        %v1381 = vrcp.pop %v1357
        %v1382 = vrcp.pop %v1359
        %v1383 = vrcp.pop %v1361
        %v1384 = vrcp.pop %v1363
        %v1385 = vrcp.pop %v1365
        %v1386 = vrcp.pop %v1367
        %v1387 = vrcp.pop %v1369
        %v1388 = vrcp.pop %v1371
        %v1389 = vrcp.pop %v1373
        %v1390 = vmul.f32 %v1311, %v1374
        %v1391 = vmul.f32 %v1313, %v1375
        %v1392 = vmul.f32 %v1315, %v1376
        %v1393 = vmul.f32 %v1317, %v1377
        %v1394 = vmul.f32 %v1319, %v1378
        %v1395 = vmul.f32 %v1321, %v1379
        %v1396 = vmul.f32 %v1323, %v1380
        %v1397 = vmul.f32 %v1325, %v1381
        %v1398 = vmul.f32 %v1327, %v1382
        %v1399 = vmul.f32 %v1329, %v1383
        %v1400 = vmul.f32 %v1331, %v1384
        %v1401 = vmul.f32 %v1333, %v1385
        %v1402 = vmul.f32 %v1335, %v1386
        %v1403 = vmul.f32 %v1337, %v1387
        %v1404 = vmul.f32 %v1339, %v1388
        %v1405 = vmul.f32 %v1341, %v1389
        %v1406 = vpack.c.bf16 %v1391, %v1390
        %v1407 = vpack.c.bf16 %v1393, %v1392
        %v1408 = vpack.c.bf16 %v1395, %v1394
        %v1409 = vpack.c.bf16 %v1397, %v1396
        %v1410 = vpack.c.bf16 %v1399, %v1398
        %v1411 = vpack.c.bf16 %v1401, %v1400
        %v1412 = vpack.c.bf16 %v1403, %v1402
        %v1413 = vpack.c.bf16 %v1405, %v1404
        %v1430 = vunpack.c.l.b16 %v662
        %v1431 = vunpack.c.l.b16 %v663
        %v1432 = vunpack.c.l.b16 %v664
        %v1433 = vunpack.c.l.b16 %v665
        %v1434 = vunpack.c.l.b16 %v666
        %v1435 = vunpack.c.l.b16 %v667
        %v1436 = vunpack.c.l.b16 %v668
        %v1437 = vunpack.c.l.b16 %v669
        %v1438 = vunpack.c.l.b16 %v670
        %v1439 = vunpack.c.l.b16 %v671
        %v1440 = vunpack.c.l.b16 %v672
        %v1441 = vunpack.c.l.b16 %v673
        %v1442 = vunpack.c.l.b16 %v674
        %v1443 = vunpack.c.l.b16 %v675
        %v1444 = vunpack.c.l.b16 %v676
        %v1445 = vunpack.c.l.b16 %v677
        %v1446 = vpack.c.b16 %v1431, %v1430
        %v1447 = vpack.c.b16 %v1433, %v1432
        %v1448 = vpack.c.b16 %v1435, %v1434
        %v1449 = vpack.c.b16 %v1437, %v1436
        %v1450 = vpack.c.b16 %v1439, %v1438
        %v1451 = vpack.c.b16 %v1441, %v1440
        %v1452 = vpack.c.b16 %v1443, %v1442
        %v1453 = vpack.c.b16 %v1445, %v1444
        %1462 = vmatprep.subr.bf16.mxu0 0
        %1463 = vmatpush1.bf16.msra.mxu0 %v1446
        %1464 = vmatprep.subr.bf16.mxu0 0
        %1465 = vmatpush1.bf16.msra.mxu0 %v1447
        %1466 = vmatprep.subr.bf16.mxu0 0
        %1467 = vmatpush1.bf16.msra.mxu0 %v1448
        %1468 = vmatprep.subr.bf16.mxu0 0
        %1469 = vmatpush1.bf16.msra.mxu0 %v1449
        %1470 = vmatprep.subr.bf16.mxu0 0
        %1471 = vmatpush1.bf16.msra.mxu0 %v1450
        %1472 = vmatprep.subr.bf16.mxu0 0
        %1473 = vmatpush1.bf16.msra.mxu0 %v1451
        %1474 = vmatprep.subr.bf16.mxu0 0
        %1475 = vmatpush1.bf16.msra.mxu0 %v1452
        %1476 = vmatprep.subr.bf16.mxu0 0
        %1477 = vmatpush1.bf16.msra.mxu0 %v1453
        %1478 = vmatprep.subr.bf16.mxu0 0
        %1479 = vmatpush1.bf16.msra.mxu0 0
        %1480 = vmatprep.subr.bf16.mxu0 0
        %1481 = vmatpush1.bf16.msra.mxu0 0
        %1482 = vmatprep.subr.bf16.mxu0 0
        %1483 = vmatpush1.bf16.msra.mxu0 0
        %1484 = vmatprep.subr.bf16.mxu0 0
        %1485 = vmatpush1.bf16.msra.mxu0 0
        %1486 = vmatprep.subr.bf16.mxu0 0
        %1487 = vmatpush1.bf16.msra.mxu0 0
        %1488 = vmatprep.subr.bf16.mxu0 0
        %1489 = vmatpush1.bf16.msra.mxu0 0
        %1490 = vmatprep.subr.bf16.mxu0 0
        %1491 = vmatpush1.bf16.msra.mxu0 0
        %1492 = vmatprep.subr.bf16.mxu0 0
        %1493 = vmatpush1.bf16.msra.mxu0 0
        %1494 = vmatprep.mubr.bf16.mxu0 0
        %1495 = vmatmul.mubr.bf16.gmra.mrb[0].mxu0 %v1406
        %v1496 = vpop.f32.mrb[0].mxu0
        %v1497 = vadd.f32 0.0, %v1496
        %v1498 = vpop.f32.mrb[0].mxu0
        %v1499 = vpop.f32.mrb[0].mxu0
        %v1500 = vadd.f32 0.0, %v1499
        %v1501 = vpop.f32.mrb[0].mxu0
        %1502 = vmatprep.mubr.bf16.mxu0 0
        %1503 = vmatmul.mubr.bf16.gmra.mrb[0].mxu0 %v1407
        %v1504 = vpop.f32.mrb[0].mxu0
        %v1505 = vadd.f32 0.0, %v1504
        %v1506 = vpop.f32.mrb[0].mxu0
        %v1507 = vpop.f32.mrb[0].mxu0
        %v1508 = vadd.f32 0.0, %v1507
        %v1509 = vpop.f32.mrb[0].mxu0
        %1510 = vmatprep.mubr.bf16.mxu0 0
        %1511 = vmatmul.mubr.bf16.gmra.mrb[0].mxu0 %v1408
        %v1512 = vpop.f32.mrb[0].mxu0
        %v1513 = vadd.f32 0.0, %v1512
        %v1514 = vpop.f32.mrb[0].mxu0
        %v1515 = vpop.f32.mrb[0].mxu0
        %v1516 = vadd.f32 0.0, %v1515
        %v1517 = vpop.f32.mrb[0].mxu0
        %1518 = vmatprep.mubr.bf16.mxu0 0
        %1519 = vmatmul.mubr.bf16.gmra.mrb[0].mxu0 %v1409
        %v1520 = vpop.f32.mrb[0].mxu0
        %v1521 = vadd.f32 0.0, %v1520
        %v1522 = vpop.f32.mrb[0].mxu0
        %v1523 = vpop.f32.mrb[0].mxu0
        %v1524 = vadd.f32 0.0, %v1523
        %v1525 = vpop.f32.mrb[0].mxu0
        %1526 = vmatprep.mubr.bf16.mxu0 0
        %1527 = vmatmul.mubr.bf16.gmra.mrb[0].mxu0 %v1410
        %v1528 = vpop.f32.mrb[0].mxu0
        %v1529 = vadd.f32 0.0, %v1528
        %v1530 = vpop.f32.mrb[0].mxu0
        %v1531 = vpop.f32.mrb[0].mxu0
        %v1532 = vadd.f32 0.0, %v1531
        %v1533 = vpop.f32.mrb[0].mxu0
        %1534 = vmatprep.mubr.bf16.mxu0 0
        %1535 = vmatmul.mubr.bf16.gmra.mrb[0].mxu0 %v1411
        %v1536 = vpop.f32.mrb[0].mxu0
        %v1537 = vadd.f32 0.0, %v1536
        %v1538 = vpop.f32.mrb[0].mxu0
        %v1539 = vpop.f32.mrb[0].mxu0
        %v1540 = vadd.f32 0.0, %v1539
        %v1541 = vpop.f32.mrb[0].mxu0
        %1542 = vmatprep.mubr.bf16.mxu0 0
        %1543 = vmatmul.mubr.bf16.gmra.mrb[0].mxu0 %v1412
        %v1544 = vpop.f32.mrb[0].mxu0
        %v1545 = vadd.f32 0.0, %v1544
        %v1546 = vpop.f32.mrb[0].mxu0
        %v1547 = vpop.f32.mrb[0].mxu0
        %v1548 = vadd.f32 0.0, %v1547
        %v1549 = vpop.f32.mrb[0].mxu0
        %1550 = vmatprep.mubr.bf16.mxu0 0
        %1551 = vmatmul.mubr.bf16.gmra.mrb[0].mxu0 %v1413
        %v1552 = vpop.f32.mrb[0].mxu0
        %v1553 = vadd.f32 0.0, %v1552
        %v1554 = vpop.f32.mrb[0].mxu0
        %v1555 = vpop.f32.mrb[0].mxu0
        %v1556 = vadd.f32 0.0, %v1555
        %v1557 = vpop.f32.mrb[0].mxu0
        %1558 = vdwg.mxu0
        %v1559 = vpack.c.bf16 %v1500, %v1497
        %v1560 = vpack.c.bf16 %v1508, %v1505
        %v1561 = vpack.c.bf16 %v1516, %v1513
        %v1562 = vpack.c.bf16 %v1524, %v1521
        %v1563 = vpack.c.bf16 %v1532, %v1529
        %v1564 = vpack.c.bf16 %v1540, %v1537
        %v1565 = vpack.c.bf16 %v1548, %v1545
        %v1566 = vpack.c.bf16 %v1556, %v1553
        %v1567 = vld [vmem:[#allocation11] sm:$0xf]
        %v1568 = vld [vmem:[#allocation11 + $0x4] sm:$0xf]
        %v1569 = vld [vmem:[#allocation11 + $0x8] sm:$0xf]
        %v1570 = vld [vmem:[#allocation11 + $0xc] sm:$0xf]
        %v1571 = vld [vmem:[#allocation11 + $0x10] sm:$0xf]
        %v1572 = vld [vmem:[#allocation11 + $0x14] sm:$0xf]
        %v1573 = vld [vmem:[#allocation11 + $0x18] sm:$0xf]
        %v1574 = vld [vmem:[#allocation11 + $0x1c] sm:$0xf]
        %v1575 = vld [vmem:[#allocation11 + $0x20] sm:$0xf]
        %v1576 = vld [vmem:[#allocation11 + $0x24] sm:$0xf]
        %v1577 = vld [vmem:[#allocation11 + $0x28] sm:$0xf]
        %v1578 = vld [vmem:[#allocation11 + $0x2c] sm:$0xf]
        %v1579 = vld [vmem:[#allocation11 + $0x30] sm:$0xf]
        %v1580 = vld [vmem:[#allocation11 + $0x34] sm:$0xf]
        %v1581 = vld [vmem:[#allocation11 + $0x38] sm:$0xf]
        %v1582 = vld [vmem:[#allocation11 + $0x3c] sm:$0xf]
        %v1583 = vld [vmem:[%s9] sm:$0x1]
        %v1585 = vlaneseq
        %v1586 = vshrl.u32 %v1585, 7
        %v1587 = vsub.s32 0, %v1586
        %v1588 = vrot.slane %v1583, %v1587
        %v1606 = vunpack.c.l.b16 %v1567
        %v1607 = vunpack.c.l.b16 %v1568
        %v1608 = vunpack.c.l.b16 %v1569
        %v1609 = vunpack.c.l.b16 %v1570
        %v1610 = vunpack.c.l.b16 %v1571
        %v1611 = vunpack.c.l.b16 %v1572
        %v1612 = vunpack.c.l.b16 %v1573
        %v1613 = vunpack.c.l.b16 %v1574
        %v1614 = vunpack.c.l.b16 %v1575
        %v1615 = vunpack.c.l.b16 %v1576
        %v1616 = vunpack.c.l.b16 %v1577
        %v1617 = vunpack.c.l.b16 %v1578
        %v1618 = vunpack.c.l.b16 %v1579
        %v1619 = vunpack.c.l.b16 %v1580
        %v1620 = vunpack.c.l.b16 %v1581
        %v1621 = vunpack.c.l.b16 %v1582
        %v1622 = vpack.c.b16 %v1607, %v1606
        %v1623 = vpack.c.b16 %v1609, %v1608
        %v1624 = vpack.c.b16 %v1611, %v1610
        %v1625 = vpack.c.b16 %v1613, %v1612
        %v1626 = vpack.c.b16 %v1615, %v1614
        %v1627 = vpack.c.b16 %v1617, %v1616
        %v1628 = vpack.c.b16 %v1619, %v1618
        %v1629 = vpack.c.b16 %v1621, %v1620
        %1638 = vmatprep.subr.bf16.mxu0 0
        %1639 = vmatpush1.bf16.msra.mxu0 %v1622
        %1640 = vmatprep.subr.bf16.mxu0 0
        %1641 = vmatpush1.bf16.msra.mxu0 %v1623
        %1642 = vmatprep.subr.bf16.mxu0 0
        %1643 = vmatpush1.bf16.msra.mxu0 %v1624
        %1644 = vmatprep.subr.bf16.mxu0 0
        %1645 = vmatpush1.bf16.msra.mxu0 %v1625
        %1646 = vmatprep.subr.bf16.mxu0 0
        %1647 = vmatpush1.bf16.msra.mxu0 %v1626
        %1648 = vmatprep.subr.bf16.mxu0 0
        %1649 = vmatpush1.bf16.msra.mxu0 %v1627
        %1650 = vmatprep.subr.bf16.mxu0 0
        %1651 = vmatpush1.bf16.msra.mxu0 %v1628
        %1652 = vmatprep.subr.bf16.mxu0 0
        %1653 = vmatpush1.bf16.msra.mxu0 %v1629
        %1654 = vmatprep.subr.bf16.mxu0 0
        %1655 = vmatpush1.bf16.msra.mxu0 0
        %1656 = vmatprep.subr.bf16.mxu0 0
        %1657 = vmatpush1.bf16.msra.mxu0 0
        %1658 = vmatprep.subr.bf16.mxu0 0
        %1659 = vmatpush1.bf16.msra.mxu0 0
        %1660 = vmatprep.subr.bf16.mxu0 0
        %1661 = vmatpush1.bf16.msra.mxu0 0
        %1662 = vmatprep.subr.bf16.mxu0 0
        %1663 = vmatpush1.bf16.msra.mxu0 0
        %1664 = vmatprep.subr.bf16.mxu0 0
        %1665 = vmatpush1.bf16.msra.mxu0 0
        %1666 = vmatprep.subr.bf16.mxu0 0
        %1667 = vmatpush1.bf16.msra.mxu0 0
        %1668 = vmatprep.subr.bf16.mxu0 0
        %1669 = vmatpush1.bf16.msra.mxu0 0
        %1670 = vmatprep.mubr.bf16.mxu0 0
        %1671 = vmatmul.mubr.bf16.gmra.mrb[0].mxu0 %v1559
        %v1672 = vpop.f32.mrb[0].mxu0
        %v1673 = vadd.f32 %v1588, %v1672
        %v1674 = vpop.f32.mrb[0].mxu0
        %v1675 = vpop.f32.mrb[0].mxu0
        %v1676 = vadd.f32 %v1588, %v1675
        %v1677 = vpop.f32.mrb[0].mxu0
        %1678 = vmatprep.mubr.bf16.mxu0 0
        %1679 = vmatmul.mubr.bf16.gmra.mrb[0].mxu0 %v1560
        %v1680 = vpop.f32.mrb[0].mxu0
        %v1681 = vadd.f32 %v1588, %v1680
        %v1682 = vpop.f32.mrb[0].mxu0
        %v1683 = vpop.f32.mrb[0].mxu0
        %v1684 = vadd.f32 %v1588, %v1683
        %v1685 = vpop.f32.mrb[0].mxu0
        %1686 = vmatprep.mubr.bf16.mxu0 0
        %1687 = vmatmul.mubr.bf16.gmra.mrb[0].mxu0 %v1561
        %v1688 = vpop.f32.mrb[0].mxu0
        %v1689 = vadd.f32 %v1588, %v1688
        %v1690 = vpop.f32.mrb[0].mxu0
        %v1691 = vpop.f32.mrb[0].mxu0
        %v1692 = vadd.f32 %v1588, %v1691
        %v1693 = vpop.f32.mrb[0].mxu0
        %1694 = vmatprep.mubr.bf16.mxu0 0
        %1695 = vmatmul.mubr.bf16.gmra.mrb[0].mxu0 %v1562
        %v1696 = vpop.f32.mrb[0].mxu0
        %v1697 = vadd.f32 %v1588, %v1696
        %v1698 = vpop.f32.mrb[0].mxu0
        %v1699 = vpop.f32.mrb[0].mxu0
        %v1700 = vadd.f32 %v1588, %v1699
        %v1701 = vpop.f32.mrb[0].mxu0
        %1702 = vmatprep.mubr.bf16.mxu0 0
        %1703 = vmatmul.mubr.bf16.gmra.mrb[0].mxu0 %v1563
        %v1704 = vpop.f32.mrb[0].mxu0
        %v1705 = vadd.f32 %v1588, %v1704
        %v1706 = vpop.f32.mrb[0].mxu0
        %v1707 = vpop.f32.mrb[0].mxu0
        %v1708 = vadd.f32 %v1588, %v1707
        %v1709 = vpop.f32.mrb[0].mxu0
        %1710 = vmatprep.mubr.bf16.mxu0 0
        %1711 = vmatmul.mubr.bf16.gmra.mrb[0].mxu0 %v1564
        %v1712 = vpop.f32.mrb[0].mxu0
        %v1713 = vadd.f32 %v1588, %v1712
        %v1714 = vpop.f32.mrb[0].mxu0
        %v1715 = vpop.f32.mrb[0].mxu0
        %v1716 = vadd.f32 %v1588, %v1715
        %v1717 = vpop.f32.mrb[0].mxu0
        %1718 = vmatprep.mubr.bf16.mxu0 0
        %1719 = vmatmul.mubr.bf16.gmra.mrb[0].mxu0 %v1565
        %v1720 = vpop.f32.mrb[0].mxu0
        %v1721 = vadd.f32 %v1588, %v1720
        %v1722 = vpop.f32.mrb[0].mxu0
        %v1723 = vpop.f32.mrb[0].mxu0
        %v1724 = vadd.f32 %v1588, %v1723
        %v1725 = vpop.f32.mrb[0].mxu0
        %1726 = vmatprep.mubr.bf16.mxu0 0
        %1727 = vmatmul.mubr.bf16.gmra.mrb[0].mxu0 %v1566
        %v1728 = vpop.f32.mrb[0].mxu0
        %v1729 = vadd.f32 %v1588, %v1728
        %v1730 = vpop.f32.mrb[0].mxu0
        %v1731 = vpop.f32.mrb[0].mxu0
        %v1732 = vadd.f32 %v1588, %v1731
        %v1733 = vpop.f32.mrb[0].mxu0
        %1734 = vdwg.mxu0
        %v1735 = vmax.f32 %v1673, 0.0
        %v1736 = vmax.f32 %v1676, 0.0
        %v1737 = vmax.f32 %v1681, 0.0
        %v1738 = vmax.f32 %v1684, 0.0
        %v1739 = vmax.f32 %v1689, 0.0
        %v1740 = vmax.f32 %v1692, 0.0
        %v1741 = vmax.f32 %v1697, 0.0
        %v1742 = vmax.f32 %v1700, 0.0
        %v1743 = vmax.f32 %v1705, 0.0
        %v1744 = vmax.f32 %v1708, 0.0
        %v1745 = vmax.f32 %v1713, 0.0
        %v1746 = vmax.f32 %v1716, 0.0
        %v1747 = vmax.f32 %v1721, 0.0
        %v1748 = vmax.f32 %v1724, 0.0
        %v1749 = vmax.f32 %v1729, 0.0
        %v1750 = vmax.f32 %v1732, 0.0
        %v1751 = vpack.c.bf16 %v1736, %v1735
        %v1752 = vpack.c.bf16 %v1738, %v1737
        %v1753 = vpack.c.bf16 %v1740, %v1739
        %v1754 = vpack.c.bf16 %v1742, %v1741
        %v1755 = vpack.c.bf16 %v1744, %v1743
        %v1756 = vpack.c.bf16 %v1746, %v1745
        %v1757 = vpack.c.bf16 %v1748, %v1747
        %v1758 = vpack.c.bf16 %v1750, %v1749
        %v1759 = vld [vmem:[#allocation13] sm:$0xf]
        %v1760 = vld [vmem:[#allocation13 + $0x4] sm:$0xf]
        %v1761 = vld [vmem:[#allocation13 + $0x8] sm:$0xf]
        %v1762 = vld [vmem:[#allocation13 + $0xc] sm:$0xf]
        %v1763 = vld [vmem:[#allocation13 + $0x10] sm:$0xf]
        %v1764 = vld [vmem:[#allocation13 + $0x14] sm:$0xf]
        %v1765 = vld [vmem:[#allocation13 + $0x18] sm:$0xf]
        %v1766 = vld [vmem:[#allocation13 + $0x1c] sm:$0xf]
        %v1767 = vld [vmem:[#allocation13 + $0x20] sm:$0xf]
        %v1768 = vld [vmem:[#allocation13 + $0x24] sm:$0xf]
        %v1769 = vld [vmem:[#allocation13 + $0x28] sm:$0xf]
        %v1770 = vld [vmem:[#allocation13 + $0x2c] sm:$0xf]
        %v1771 = vld [vmem:[#allocation13 + $0x30] sm:$0xf]
        %v1772 = vld [vmem:[#allocation13 + $0x34] sm:$0xf]
        %v1773 = vld [vmem:[#allocation13 + $0x38] sm:$0xf]
        %v1774 = vld [vmem:[#allocation13 + $0x3c] sm:$0xf]
        %v1775 = vld [vmem:[#allocation14] sm:$0xf]
        %v1776 = vld [vmem:[#allocation14 + $0x4] sm:$0xf]
        %v1777 = vld [vmem:[#allocation14 + $0x8] sm:$0xf]
        %v1778 = vld [vmem:[#allocation14 + $0xc] sm:$0xf]
        %v1779 = vld [vmem:[#allocation14 + $0x10] sm:$0xf]
        %v1780 = vld [vmem:[#allocation14 + $0x14] sm:$0xf]
        %v1781 = vld [vmem:[#allocation14 + $0x18] sm:$0xf]
        %v1782 = vld [vmem:[#allocation14 + $0x1c] sm:$0xf]
        %v1783 = vld [vmem:[#allocation14 + $0x20] sm:$0xf]
        %v1784 = vld [vmem:[#allocation14 + $0x24] sm:$0xf]
        %v1785 = vld [vmem:[#allocation14 + $0x28] sm:$0xf]
        %v1786 = vld [vmem:[#allocation14 + $0x2c] sm:$0xf]
        %v1787 = vld [vmem:[#allocation14 + $0x30] sm:$0xf]
        %v1788 = vld [vmem:[#allocation14 + $0x34] sm:$0xf]
        %v1789 = vld [vmem:[#allocation14 + $0x38] sm:$0xf]
        %v1790 = vld [vmem:[#allocation14 + $0x3c] sm:$0xf]
        %v1807 = vunpack.c.l.b16 %v1775
        %v1808 = vunpack.c.l.b16 %v1776
        %v1809 = vunpack.c.l.b16 %v1777
        %v1810 = vunpack.c.l.b16 %v1778
        %v1811 = vunpack.c.l.b16 %v1779
        %v1812 = vunpack.c.l.b16 %v1780
        %v1813 = vunpack.c.l.b16 %v1781
        %v1814 = vunpack.c.l.b16 %v1782
        %v1815 = vunpack.c.l.b16 %v1783
        %v1816 = vunpack.c.l.b16 %v1784
        %v1817 = vunpack.c.l.b16 %v1785
        %v1818 = vunpack.c.l.b16 %v1786
        %v1819 = vunpack.c.l.b16 %v1787
        %v1820 = vunpack.c.l.b16 %v1788
        %v1821 = vunpack.c.l.b16 %v1789
        %v1822 = vunpack.c.l.b16 %v1790
        %v1823 = vpack.c.b16 %v1808, %v1807
        %v1824 = vpack.c.b16 %v1810, %v1809
        %v1825 = vpack.c.b16 %v1812, %v1811
        %v1826 = vpack.c.b16 %v1814, %v1813
        %v1827 = vpack.c.b16 %v1816, %v1815
        %v1828 = vpack.c.b16 %v1818, %v1817
        %v1829 = vpack.c.b16 %v1820, %v1819
        %v1830 = vpack.c.b16 %v1822, %v1821
        %1839 = vmatprep.subr.bf16.mxu0 0
        %1840 = vmatpush1.bf16.msra.mxu0 %v1823
        %1841 = vmatprep.subr.bf16.mxu0 0
        %1842 = vmatpush1.bf16.msra.mxu0 %v1824
        %1843 = vmatprep.subr.bf16.mxu0 0
        %1844 = vmatpush1.bf16.msra.mxu0 %v1825
        %1845 = vmatprep.subr.bf16.mxu0 0
        %1846 = vmatpush1.bf16.msra.mxu0 %v1826
        %1847 = vmatprep.subr.bf16.mxu0 0
        %1848 = vmatpush1.bf16.msra.mxu0 %v1827
        %1849 = vmatprep.subr.bf16.mxu0 0
        %1850 = vmatpush1.bf16.msra.mxu0 %v1828
        %1851 = vmatprep.subr.bf16.mxu0 0
        %1852 = vmatpush1.bf16.msra.mxu0 %v1829
        %1853 = vmatprep.subr.bf16.mxu0 0
        %1854 = vmatpush1.bf16.msra.mxu0 %v1830
        %1855 = vmatprep.subr.bf16.mxu0 0
        %1856 = vmatpush1.bf16.msra.mxu0 0
        %1857 = vmatprep.subr.bf16.mxu0 0
        %1858 = vmatpush1.bf16.msra.mxu0 0
        %1859 = vmatprep.subr.bf16.mxu0 0
        %1860 = vmatpush1.bf16.msra.mxu0 0
        %1861 = vmatprep.subr.bf16.mxu0 0
        %1862 = vmatpush1.bf16.msra.mxu0 0
        %1863 = vmatprep.subr.bf16.mxu0 0
        %1864 = vmatpush1.bf16.msra.mxu0 0
        %1865 = vmatprep.subr.bf16.mxu0 0
        %1866 = vmatpush1.bf16.msra.mxu0 0
        %1867 = vmatprep.subr.bf16.mxu0 0
        %1868 = vmatpush1.bf16.msra.mxu0 0
        %1869 = vmatprep.subr.bf16.mxu0 0
        %1870 = vmatpush1.bf16.msra.mxu0 0
        %1871 = vmatprep.mubr.bf16.mxu0 0
        %1872 = vmatmul.mubr.bf16.gmra.mrb[0].mxu0 %v733
        %v1873 = vpop.f32.mrb[0].mxu0
        %v1874 = vadd.f32 0.0, %v1873
        %v1875 = vpop.f32.mrb[0].mxu0
        %v1876 = vpop.f32.mrb[0].mxu0
        %v1877 = vadd.f32 0.0, %v1876
        %v1878 = vpop.f32.mrb[0].mxu0
        %1879 = vmatprep.mubr.bf16.mxu0 0
        %1880 = vmatmul.mubr.bf16.gmra.mrb[0].mxu0 %v734
        %v1881 = vpop.f32.mrb[0].mxu0
        %v1882 = vadd.f32 0.0, %v1881
        %v1883 = vpop.f32.mrb[0].mxu0
        %v1884 = vpop.f32.mrb[0].mxu0
        %v1885 = vadd.f32 0.0, %v1884
        %v1886 = vpop.f32.mrb[0].mxu0
        %1887 = vmatprep.mubr.bf16.mxu0 0
        %1888 = vmatmul.mubr.bf16.gmra.mrb[0].mxu0 %v735
        %v1889 = vpop.f32.mrb[0].mxu0
        %v1890 = vadd.f32 0.0, %v1889
        %v1891 = vpop.f32.mrb[0].mxu0
        %v1892 = vpop.f32.mrb[0].mxu0
        %v1893 = vadd.f32 0.0, %v1892
        %v1894 = vpop.f32.mrb[0].mxu0
        %1895 = vmatprep.mubr.bf16.mxu0 0
        %1896 = vmatmul.mubr.bf16.gmra.mrb[0].mxu0 %v736
        %v1897 = vpop.f32.mrb[0].mxu0
        %v1898 = vadd.f32 0.0, %v1897
        %v1899 = vpop.f32.mrb[0].mxu0
        %v1900 = vpop.f32.mrb[0].mxu0
        %v1901 = vadd.f32 0.0, %v1900
        %v1902 = vpop.f32.mrb[0].mxu0
        %1903 = vmatprep.mubr.bf16.mxu0 0
        %1904 = vmatmul.mubr.bf16.gmra.mrb[0].mxu0 %v737
        %v1905 = vpop.f32.mrb[0].mxu0
        %v1906 = vadd.f32 0.0, %v1905
        %v1907 = vpop.f32.mrb[0].mxu0
        %v1908 = vpop.f32.mrb[0].mxu0
        %v1909 = vadd.f32 0.0, %v1908
        %v1910 = vpop.f32.mrb[0].mxu0
        %1911 = vmatprep.mubr.bf16.mxu0 0
        %1912 = vmatmul.mubr.bf16.gmra.mrb[0].mxu0 %v738
        %v1913 = vpop.f32.mrb[0].mxu0
        %v1914 = vadd.f32 0.0, %v1913
        %v1915 = vpop.f32.mrb[0].mxu0
        %v1916 = vpop.f32.mrb[0].mxu0
        %v1917 = vadd.f32 0.0, %v1916
        %v1918 = vpop.f32.mrb[0].mxu0
        %1919 = vmatprep.mubr.bf16.mxu0 0
        %1920 = vmatmul.mubr.bf16.gmra.mrb[0].mxu0 %v739
        %v1921 = vpop.f32.mrb[0].mxu0
        %v1922 = vadd.f32 0.0, %v1921
        %v1923 = vpop.f32.mrb[0].mxu0
        %v1924 = vpop.f32.mrb[0].mxu0
        %v1925 = vadd.f32 0.0, %v1924
        %v1926 = vpop.f32.mrb[0].mxu0
        %1927 = vmatprep.mubr.bf16.mxu0 0
        %1928 = vmatmul.mubr.bf16.gmra.mrb[0].mxu0 %v740
        %v1929 = vpop.f32.mrb[0].mxu0
        %v1930 = vadd.f32 0.0, %v1929
        %v1931 = vpop.f32.mrb[0].mxu0
        %v1932 = vpop.f32.mrb[0].mxu0
        %v1933 = vadd.f32 0.0, %v1932
        %v1934 = vpop.f32.mrb[0].mxu0
        %1935 = vdwg.mxu0
        %v1952 = vunpack.c.l.b16 %v1759
        %v1953 = vunpack.c.l.b16 %v1760
        %v1954 = vunpack.c.l.b16 %v1761
        %v1955 = vunpack.c.l.b16 %v1762
        %v1956 = vunpack.c.l.b16 %v1763
        %v1957 = vunpack.c.l.b16 %v1764
        %v1958 = vunpack.c.l.b16 %v1765
        %v1959 = vunpack.c.l.b16 %v1766
        %v1960 = vunpack.c.l.b16 %v1767
        %v1961 = vunpack.c.l.b16 %v1768
        %v1962 = vunpack.c.l.b16 %v1769
        %v1963 = vunpack.c.l.b16 %v1770
        %v1964 = vunpack.c.l.b16 %v1771
        %v1965 = vunpack.c.l.b16 %v1772
        %v1966 = vunpack.c.l.b16 %v1773
        %v1967 = vunpack.c.l.b16 %v1774
        %v1968 = vpack.c.b16 %v1953, %v1952
        %v1969 = vpack.c.b16 %v1955, %v1954
        %v1970 = vpack.c.b16 %v1957, %v1956
        %v1971 = vpack.c.b16 %v1959, %v1958
        %v1972 = vpack.c.b16 %v1961, %v1960
        %v1973 = vpack.c.b16 %v1963, %v1962
        %v1974 = vpack.c.b16 %v1965, %v1964
        %v1975 = vpack.c.b16 %v1967, %v1966
        %1984 = vmatprep.subr.bf16.mxu0 0
        %1985 = vmatpush1.bf16.msra.mxu0 %v1968
        %1986 = vmatprep.subr.bf16.mxu0 0
        %1987 = vmatpush1.bf16.msra.mxu0 %v1969
        %1988 = vmatprep.subr.bf16.mxu0 0
        %1989 = vmatpush1.bf16.msra.mxu0 %v1970
        %1990 = vmatprep.subr.bf16.mxu0 0
        %1991 = vmatpush1.bf16.msra.mxu0 %v1971
        %1992 = vmatprep.subr.bf16.mxu0 0
        %1993 = vmatpush1.bf16.msra.mxu0 %v1972
        %1994 = vmatprep.subr.bf16.mxu0 0
        %1995 = vmatpush1.bf16.msra.mxu0 %v1973
        %1996 = vmatprep.subr.bf16.mxu0 0
        %1997 = vmatpush1.bf16.msra.mxu0 %v1974
        %1998 = vmatprep.subr.bf16.mxu0 0
        %1999 = vmatpush1.bf16.msra.mxu0 %v1975
        %2000 = vmatprep.subr.bf16.mxu0 0
        %2001 = vmatpush1.bf16.msra.mxu0 0
        %2002 = vmatprep.subr.bf16.mxu0 0
        %2003 = vmatpush1.bf16.msra.mxu0 0
        %2004 = vmatprep.subr.bf16.mxu0 0
        %2005 = vmatpush1.bf16.msra.mxu0 0
        %2006 = vmatprep.subr.bf16.mxu0 0
        %2007 = vmatpush1.bf16.msra.mxu0 0
        %2008 = vmatprep.subr.bf16.mxu0 0
        %2009 = vmatpush1.bf16.msra.mxu0 0
        %2010 = vmatprep.subr.bf16.mxu0 0
        %2011 = vmatpush1.bf16.msra.mxu0 0
        %2012 = vmatprep.subr.bf16.mxu0 0
        %2013 = vmatpush1.bf16.msra.mxu0 0
        %2014 = vmatprep.subr.bf16.mxu0 0
        %2015 = vmatpush1.bf16.msra.mxu0 0
        %2016 = vmatprep.mubr.bf16.mxu0 0
        %2017 = vmatmul.mubr.bf16.gmra.mrb[0].mxu0 %v1751
        %v2018 = vpop.f32.mrb[0].mxu0
        %v2019 = vadd.f32 %v1874, %v2018
        %v2020 = vpop.f32.mrb[0].mxu0
        %v2021 = vpop.f32.mrb[0].mxu0
        %v2022 = vadd.f32 %v1877, %v2021
        %v2023 = vpop.f32.mrb[0].mxu0
        %2024 = vmatprep.mubr.bf16.mxu0 0
        %2025 = vmatmul.mubr.bf16.gmra.mrb[0].mxu0 %v1752
        %v2026 = vpop.f32.mrb[0].mxu0
        %v2027 = vadd.f32 %v1882, %v2026
        %v2028 = vpop.f32.mrb[0].mxu0
        %v2029 = vpop.f32.mrb[0].mxu0
        %v2030 = vadd.f32 %v1885, %v2029
        %v2031 = vpop.f32.mrb[0].mxu0
        %2032 = vmatprep.mubr.bf16.mxu0 0
        %2033 = vmatmul.mubr.bf16.gmra.mrb[0].mxu0 %v1753
        %v2034 = vpop.f32.mrb[0].mxu0
        %v2035 = vadd.f32 %v1890, %v2034
        %v2036 = vpop.f32.mrb[0].mxu0
        %v2037 = vpop.f32.mrb[0].mxu0
        %v2038 = vadd.f32 %v1893, %v2037
        %v2039 = vpop.f32.mrb[0].mxu0
        %2040 = vmatprep.mubr.bf16.mxu0 0
        %2041 = vmatmul.mubr.bf16.gmra.mrb[0].mxu0 %v1754
        %v2042 = vpop.f32.mrb[0].mxu0
        %v2043 = vadd.f32 %v1898, %v2042
        %v2044 = vpop.f32.mrb[0].mxu0
        %v2045 = vpop.f32.mrb[0].mxu0
        %v2046 = vadd.f32 %v1901, %v2045
        %v2047 = vpop.f32.mrb[0].mxu0
        %2048 = vmatprep.mubr.bf16.mxu0 0
        %2049 = vmatmul.mubr.bf16.gmra.mrb[0].mxu0 %v1755
        %v2050 = vpop.f32.mrb[0].mxu0
        %v2051 = vadd.f32 %v1906, %v2050
        %v2052 = vpop.f32.mrb[0].mxu0
        %v2053 = vpop.f32.mrb[0].mxu0
        %v2054 = vadd.f32 %v1909, %v2053
        %v2055 = vpop.f32.mrb[0].mxu0
        %2056 = vmatprep.mubr.bf16.mxu0 0
        %2057 = vmatmul.mubr.bf16.gmra.mrb[0].mxu0 %v1756
        %v2058 = vpop.f32.mrb[0].mxu0
        %v2059 = vadd.f32 %v1914, %v2058
        %v2060 = vpop.f32.mrb[0].mxu0
        %v2061 = vpop.f32.mrb[0].mxu0
        %v2062 = vadd.f32 %v1917, %v2061
        %v2063 = vpop.f32.mrb[0].mxu0
        %2064 = vmatprep.mubr.bf16.mxu0 0
        %2065 = vmatmul.mubr.bf16.gmra.mrb[0].mxu0 %v1757
        %v2066 = vpop.f32.mrb[0].mxu0
        %v2067 = vadd.f32 %v1922, %v2066
        %v2068 = vpop.f32.mrb[0].mxu0
        %v2069 = vpop.f32.mrb[0].mxu0
        %v2070 = vadd.f32 %v1925, %v2069
        %v2071 = vpop.f32.mrb[0].mxu0
        %2072 = vmatprep.mubr.bf16.mxu0 0
        %2073 = vmatmul.mubr.bf16.gmra.mrb[0].mxu0 %v1758
        %v2074 = vpop.f32.mrb[0].mxu0
        %v2075 = vadd.f32 %v1930, %v2074
        %v2076 = vpop.f32.mrb[0].mxu0
        %v2077 = vpop.f32.mrb[0].mxu0
        %v2078 = vadd.f32 %v1933, %v2077
        %v2079 = vpop.f32.mrb[0].mxu0
        %2080 = vdwg.mxu0
        %v2081 = vld [vmem:[%s12] sm:$0x1]
        %v2083 = vlaneseq
        %v2084 = vshrl.u32 %v2083, 7
        %v2085 = vsub.s32 0, %v2084
        %v2086 = vrot.slane %v2081, %v2085
        %v2088 = vadd.f32 %v2019, %v2086
        %v2089 = vadd.f32 %v2022, %v2086
        %v2090 = vadd.f32 %v2027, %v2086
        %v2091 = vadd.f32 %v2030, %v2086
        %v2092 = vadd.f32 %v2035, %v2086
        %v2093 = vadd.f32 %v2038, %v2086
        %v2094 = vadd.f32 %v2043, %v2086
        %v2095 = vadd.f32 %v2046, %v2086
        %v2096 = vadd.f32 %v2051, %v2086
        %v2097 = vadd.f32 %v2054, %v2086
        %v2098 = vadd.f32 %v2059, %v2086
        %v2099 = vadd.f32 %v2062, %v2086
        %v2100 = vadd.f32 %v2067, %v2086
        %v2101 = vadd.f32 %v2070, %v2086
        %v2102 = vadd.f32 %v2075, %v2086
        %v2103 = vadd.f32 %v2078, %v2086
        %v2104 = vmax.f32 %v2088, 0.0
        %v2105 = vmax.f32 %v2089, 0.0
        %v2106 = vmax.f32 %v2090, 0.0
        %v2107 = vmax.f32 %v2091, 0.0
        %v2108 = vmax.f32 %v2092, 0.0
        %v2109 = vmax.f32 %v2093, 0.0
        %v2110 = vmax.f32 %v2094, 0.0
        %v2111 = vmax.f32 %v2095, 0.0
        %v2112 = vmax.f32 %v2096, 0.0
        %v2113 = vmax.f32 %v2097, 0.0
        %v2114 = vmax.f32 %v2098, 0.0
        %v2115 = vmax.f32 %v2099, 0.0
        %v2116 = vmax.f32 %v2100, 0.0
        %v2117 = vmax.f32 %v2101, 0.0
        %v2118 = vmax.f32 %v2102, 0.0
        %v2119 = vmax.f32 %v2103, 0.0
        %v2120 = vpack.c.bf16 %v2105, %v2104
        %v2121 = vpack.c.bf16 %v2107, %v2106
        %v2122 = vpack.c.bf16 %v2109, %v2108
        %v2123 = vpack.c.bf16 %v2111, %v2110
        %v2124 = vpack.c.bf16 %v2113, %v2112
        %v2125 = vpack.c.bf16 %v2115, %v2114
        %v2126 = vpack.c.bf16 %v2117, %v2116
        %v2127 = vpack.c.bf16 %v2119, %v2118
        %v2136 = vunpack.c.l.b16 %v2120
        %v2137 = vunpack.c.h.b16 %v2120
        %v2138 = vunpack.c.l.b16 %v2121
        %v2139 = vunpack.c.h.b16 %v2121
        %v2140 = vunpack.c.l.b16 %v2122
        %v2141 = vunpack.c.h.b16 %v2122
        %v2142 = vunpack.c.l.b16 %v2123
        %v2143 = vunpack.c.h.b16 %v2123
        %v2144 = vunpack.c.l.b16 %v2124
        %v2145 = vunpack.c.h.b16 %v2124
        %v2146 = vunpack.c.l.b16 %v2125
        %v2147 = vunpack.c.h.b16 %v2125
        %v2148 = vunpack.c.l.b16 %v2126
        %v2149 = vunpack.c.h.b16 %v2126
        %v2150 = vunpack.c.l.b16 %v2127
        %v2151 = vunpack.c.h.b16 %v2127
        %v2152 = vpack.c.b16 %v2136, %v2136
        %v2153 = vpack.c.b16 %v2137, %v2137
        %v2154 = vpack.c.b16 %v2138, %v2138
        %v2155 = vpack.c.b16 %v2139, %v2139
        %v2156 = vpack.c.b16 %v2140, %v2140
        %v2157 = vpack.c.b16 %v2141, %v2141
        %v2158 = vpack.c.b16 %v2142, %v2142
        %v2159 = vpack.c.b16 %v2143, %v2143
        %v2160 = vpack.c.b16 %v2144, %v2144
        %v2161 = vpack.c.b16 %v2145, %v2145
        %v2162 = vpack.c.b16 %v2146, %v2146
        %v2163 = vpack.c.b16 %v2147, %v2147
        %v2164 = vpack.c.b16 %v2148, %v2148
        %v2165 = vpack.c.b16 %v2149, %v2149
        %v2166 = vpack.c.b16 %v2150, %v2150
        %v2167 = vpack.c.b16 %v2151, %v2151
        %2184 = vst [vmem:[%s626] sm:$0xf] %v2152
        %2185 = vst [vmem:[%s626 + $0x4] sm:$0xf] %v2153
        %2186 = vst [vmem:[%s626 + $0x8] sm:$0xf] %v2154
        %2187 = vst [vmem:[%s626 + $0xc] sm:$0xf] %v2155
        %2188 = vst [vmem:[%s626 + $0x10] sm:$0xf] %v2156
        %2189 = vst [vmem:[%s626 + $0x14] sm:$0xf] %v2157
        %2190 = vst [vmem:[%s626 + $0x18] sm:$0xf] %v2158
        %2191 = vst [vmem:[%s626 + $0x1c] sm:$0xf] %v2159
        %2192 = vst [vmem:[%s626 + $0x20] sm:$0xf] %v2160
        %2193 = vst [vmem:[%s626 + $0x24] sm:$0xf] %v2161
        %2194 = vst [vmem:[%s626 + $0x28] sm:$0xf] %v2162
        %2195 = vst [vmem:[%s626 + $0x2c] sm:$0xf] %v2163
        %2196 = vst [vmem:[%s626 + $0x30] sm:$0xf] %v2164
        %2197 = vst [vmem:[%s626 + $0x34] sm:$0xf] %v2165
        %2198 = vst [vmem:[%s626 + $0x38] sm:$0xf] %v2166
        %2199 = vst [vmem:[%s626 + $0x3c] sm:$0xf] %v2167
        %s2200 = sand.u32 %s348, 1
        %s2201 = scalar_lea.sflag [#allocation4], %s2200
        %s2202 = sand.u32 %s348, 1
        %s2203 = smul.addr %s2202, 64
        %s2204 = scalar_lea.vmem [#allocation16], %s2203
        // Predicated region
        $region105: #{tpu_custom_call.1} parent=71 // pred_check
          %p2205 = pneg %p358
        $region106: #{tpu_custom_call.1} parent=71 // pred_check_branch
          %2207 = sbr.rel (%p2205) target = $region108
        $region107: #{tpu_custom_call.1} parent=71 // pred_region
          %s2208 = smul.u32 16, %s41
          %s2210 = ssub.s32 1024, 1024
          %2211 = vsyncadd %s2201, %s2210
          %s2212 = smul.addr %s40, 32
          %s2213 = sadd.s32 %s2208, %s2212
          %s2214 = smul.addr %s2213, 64
          %s2215 = scalar_lea.hbm %s13, %s2214
          %s2216 = sshll.u32 %s2204, 4
          %s2217 = int_to_ptr.vmem [resolvable:$true] %s2216
          %2222 = dma.vmem_to_hbm [thread:$0]  %s2217, 1024, %s2215, %s2201, 64, 64, 4
        $region108: #{tpu_custom_call.1} parent=71 // pred_fallthru
          _
      $region72: #{tpu_custom_call.1} parent=5 // pred_fallthru
        _
      %p2223 = scmp.le.s32.totalorder 2, %s31
      // Predicated region
      $region109: #{tpu_custom_call.1} parent=5 // pred_check
        %p2224 = pneg %p2223
      $region110: #{tpu_custom_call.1} parent=5 // pred_check_branch
        %2226 = sbr.rel (%p2224) target = $region112
      $region111: #{tpu_custom_call.1} parent=5 // pred_region
        %s2227 = ssub.s32 %s31, 2
        // Predicated region
        $region113: #{tpu_custom_call.1} parent=111 // pred_check
          %p2228 = pneg %p364
        $region114: #{tpu_custom_call.1} parent=111 // pred_check_branch
          %2230 = sbr.rel (%p2228) target = $region116
        $region115: #{tpu_custom_call.1} parent=111 // pred_region
          %s2231 = sand.u32 %s349, 1
          %s2232 = scalar_lea.sflag [#allocation4], %s2231
          %s2233 = sand.u32 %s349, 1
          %s2234 = smul.addr %s2233, 64
          %s2235 = scalar_lea.vmem [#allocation16], %s2234
          %2236 = dma.done %s2232, 1024
        $region116: #{tpu_custom_call.1} parent=111 // pred_fallthru
          _
      $region112: #{tpu_custom_call.1} parent=5 // pred_fallthru
        _
    $region6: #{tpu_custom_call.1} parent=1 // loop_footer
      %s35 = sadd.s32 1, %s31
    $region7: #{tpu_custom_call.1} parent=1 // loop_footer_branch
      %30 = sbr.rel target = $region3
    $region8: #{tpu_custom_call.1} parent=1 // loop_exit
      _
    %2237 = vsyncpa [#allocation3], 1
    %s2238 = scalar_lea.sflag [#allocation3], 1
    %2239 = vsyncpa %s2238, 1
    %2240 = vsyncpa [#allocation6], 1
    %s2241 = scalar_lea.sflag [#allocation6], 1
    %2242 = vsyncpa %s2241, 1
    %2243 = vsyncpa [#allocation9], 1
    %2244 = vsyncpa [#allocation12], 1
    %2245 = vsyncpa [#allocation15], 1
    %2246 = vsyncpa [#allocation4], 1
    %s2247 = scalar_lea.sflag [#allocation4], 1
    %2248 = vsyncpa %s2247, 1

</llo_original>
